<compile_context>
chip_gen: v5e
topology: v5e:2x2
jax: 0.10.0
libtpu: 0.0.40
codegen_flags: <defaults>
</compile_context>

<pallas_src>
import math

import jax
import jax.numpy as jnp
from jax.experimental import pallas as pl
from jax.experimental.pallas import tpu as pltpu


# ---------------------------------------------------------------------------
# Tiling helpers
# ---------------------------------------------------------------------------

def _row_tile(m, target=512):
    """Largest row tile (multiple of 8) dividing m, capped at `target`."""
    if m <= target:
        return m
    for t in (target, 256, 128, 64, 32, 16, 8):
        if m % t == 0:
            return t
    return m


def _q_tile(n, target=128):
    if n <= target:
        return n
    for t in (target, 64, 32, 16, 8):
        if n % t == 0:
            return t
    return n


def _par(n):
    return pltpu.CompilerParams(dimension_semantics=("parallel",) * n)


# ---------------------------------------------------------------------------
# Fused linear / LayerNorm Pallas kernels (row-tiled, software pipelined)
# ---------------------------------------------------------------------------

def _fused_linear(x2, w, b, *, res2=None, relu=False, ln=None, eps=1e-5):
    """y = x2 @ w + b ; optional ReLU ; optional +res2 ; optional LayerNorm."""
    M, K = x2.shape
    O = w.shape[1]
    tm = _row_tile(M)
    have_res = res2 is not None
    have_ln = ln is not None

    def kernel(*refs):
        it = iter(refs)
        x_ref, w_ref, b_ref = next(it), next(it), next(it)
        r_ref = next(it) if have_res else None
        g_ref = next(it) if have_ln else None
        be_ref = next(it) if have_ln else None
        o_ref = next(it)
        y = jnp.dot(x_ref[...], w_ref[...],
                    preferred_element_type=jnp.float32) + b_ref[...]
        if relu:
            y = jnp.maximum(y, 0.0)
        if have_res:
            y = y + r_ref[...]
        if have_ln:
            mu = jnp.mean(y, axis=-1, keepdims=True)
            var = jnp.mean((y - mu) ** 2, axis=-1, keepdims=True)
            y = (y - mu) * jax.lax.rsqrt(var + eps) * g_ref[...] + be_ref[...]
        o_ref[...] = y

    in_specs = [pl.BlockSpec((tm, K), lambda i: (i, 0)),
                pl.BlockSpec((K, O), lambda i: (0, 0)),
                pl.BlockSpec((1, O), lambda i: (0, 0))]
    args = [x2, w, b.reshape(1, O)]
    if have_res:
        in_specs.append(pl.BlockSpec((tm, O), lambda i: (i, 0)))
        args.append(res2)
    if have_ln:
        g, be = ln
        in_specs += [pl.BlockSpec((1, O), lambda i: (0, 0)),
                     pl.BlockSpec((1, O), lambda i: (0, 0))]
        args += [g.reshape(1, O), be.reshape(1, O)]

    return pl.pallas_call(
        kernel,
        out_shape=jax.ShapeDtypeStruct((M, O), jnp.float32),
        grid=(M // tm,),
        in_specs=in_specs,
        out_specs=pl.BlockSpec((tm, O), lambda i: (i, 0)),
        compiler_params=_par(1),
    )(*args)


def linear_nd(x, w, b, *, relu=False, res=None, ln=None):
    shp = x.shape
    x2 = x.reshape(-1, shp[-1])
    res2 = None if res is None else res.reshape(-1, w.shape[1])
    y = _fused_linear(x2, w, b, res2=res2, relu=relu, ln=ln)
    return y.reshape(shp[:-1] + (w.shape[1],))


def pallas_add_layernorm(x2, y2, gamma, beta, eps=1e-5):
    M, D = x2.shape
    tm = _row_tile(M)

    def kernel(x_ref, y_ref, g_ref, b_ref, o_ref):
        v = x_ref[...] + y_ref[...]
        mu = jnp.mean(v, axis=-1, keepdims=True)
        var = jnp.mean((v - mu) ** 2, axis=-1, keepdims=True)
        o_ref[...] = (v - mu) * jax.lax.rsqrt(var + eps) * g_ref[...] + b_ref[...]

    return pl.pallas_call(
        kernel,
        out_shape=jax.ShapeDtypeStruct((M, D), jnp.float32),
        grid=(M // tm,),
        in_specs=[pl.BlockSpec((tm, D), lambda i: (i, 0)),
                  pl.BlockSpec((tm, D), lambda i: (i, 0)),
                  pl.BlockSpec((1, D), lambda i: (0, 0)),
                  pl.BlockSpec((1, D), lambda i: (0, 0))],
        out_specs=pl.BlockSpec((tm, D), lambda i: (i, 0)),
        compiler_params=_par(1),
    )(x2, y2, gamma.reshape(1, D), beta.reshape(1, D))


def add_layernorm_nd(x, y, gamma, beta, eps=1e-5):
    shp = x.shape
    return pallas_add_layernorm(x.reshape(-1, shp[-1]), y.reshape(-1, shp[-1]),
                                gamma, beta, eps).reshape(shp)


def pallas_ffn_layernorm(x2, w1, b1, w2, b2, gamma, beta, eps=1e-5):
    """LayerNorm(x + relu(x@w1+b1) @ w2 + b2) — transformer FFN + norm2, fused."""
    M, E = x2.shape
    F = w1.shape[1]
    tm = _row_tile(M)

    def kernel(x_ref, w1_ref, b1_ref, w2_ref, b2_ref, g_ref, be_ref, o_ref):
        x = x_ref[...]
        h = jnp.maximum(
            jnp.dot(x, w1_ref[...], preferred_element_type=jnp.float32)
            + b1_ref[...], 0.0)
        y = x + jnp.dot(h, w2_ref[...],
                        preferred_element_type=jnp.float32) + b2_ref[...]
        mu = jnp.mean(y, axis=-1, keepdims=True)
        var = jnp.mean((y - mu) ** 2, axis=-1, keepdims=True)
        o_ref[...] = (y - mu) * jax.lax.rsqrt(var + eps) * g_ref[...] + be_ref[...]

    return pl.pallas_call(
        kernel,
        out_shape=jax.ShapeDtypeStruct((M, E), jnp.float32),
        grid=(M // tm,),
        in_specs=[pl.BlockSpec((tm, E), lambda i: (i, 0)),
                  pl.BlockSpec((E, F), lambda i: (0, 0)),
                  pl.BlockSpec((1, F), lambda i: (0, 0)),
                  pl.BlockSpec((F, E), lambda i: (0, 0)),
                  pl.BlockSpec((1, E), lambda i: (0, 0)),
                  pl.BlockSpec((1, E), lambda i: (0, 0)),
                  pl.BlockSpec((1, E), lambda i: (0, 0))],
        out_specs=pl.BlockSpec((tm, E), lambda i: (i, 0)),
        compiler_params=_par(1),
    )(x2, w1, b1.reshape(1, F), w2, b2.reshape(1, E),
      gamma.reshape(1, E), beta.reshape(1, E))


def ffn_layernorm_nd(x, lin1, lin2, norm):
    shp = x.shape
    y = pallas_ffn_layernorm(x.reshape(-1, shp[-1]), lin1[0], lin1[1],
                             lin2[0], lin2[1], norm[0], norm[1])
    return y.reshape(shp)


# ---------------------------------------------------------------------------
# Attention Pallas kernels (head-batched MXU matmuls, query-tiled grids)
# ---------------------------------------------------------------------------

def ipa_attention_pallas(qext, kext, v_hm, vp_hm, bias_hm, zdown_t, mask_bias,
                         *, H, C, Pv, Cz4):
    """Invariant-Point-Attention core, tiled over (batch, query rows).

    qext/kext : [B, H, N, Dk] augmented features so qext.kext^T already equals
                scale_qk*q.k - 0.5*w_h*|qp-kp|^2 (|.|^2 folded via two columns)
    v_hm      : [B, H, N, C]
    vp_hm     : [B, H, N, Pv*3]  rigid-transformed value points, head-major
    bias_hm   : [B, H, N, N]     pair bias, head-major
    zdown_t   : [B, N, Cz4, N]   down-projected pair rep, key axis last
    mask_bias : [B, N, N]
    returns o [B,N,H*C], o_pt(global) [B,N,H*Pv*3], o_pair [B,N,H*Cz4]
    """
    B, _, N, Dk = qext.shape
    tq = _q_tile(N)
    scale_b = math.sqrt(1.0 / 3)

    def kernel(qe_ref, ke_ref, v_ref, vp_ref, b_ref, z_ref, mb_ref,
               o_ref, opt_ref, opair_ref):
        # QK^T + point attention in one head-batched MXU matmul: [H, tq, N]
        logits = jnp.einsum('hqd,hkd->hqk', qe_ref[0], ke_ref[0],
                            preferred_element_type=jnp.float32)
        logits = logits + scale_b * b_ref[0] + mb_ref[0][None, :, :]
        m = jnp.max(logits, axis=-1, keepdims=True)
        e = jnp.exp(logits - m)
        a = e * pl.reciprocal(jnp.sum(e, axis=-1, keepdims=True), approx=True)
        # head-batched MXU matmuls for the value / value-point outputs
        o_hm = jnp.einsum('hqk,hkc->hqc', a, v_ref[0],
                          preferred_element_type=jnp.float32)        # [H,tq,C]
        opt_hm = jnp.einsum('hqk,hkp->hqp', a, vp_ref[0],
                            preferred_element_type=jnp.float32)      # [H,tq,Pv*3]
        zt = z_ref[0]                                                # [tq,Cz4,N]
        o_parts, opt_parts, opair_parts = [], [], []
        for h in range(H):                     # leading-dim head indexing only
            o_parts.append(o_hm[h])
            opt_parts.append(opt_hm[h])
            # o_pair[i,c] = sum_j a[i,j] * z[i,j,c]; key axis kept on lanes.
            # TODO(synk): move this onto the MXU once a [N_q,H,N_k] relayout of
            # `a` is cheap; kept as VPU multiply + lane-reduce for robustness.
            opair_parts.append(jnp.sum(a[h][:, None, :] * zt, axis=-1))
        # one lane-dense store per output per grid step
        o_ref[0] = jnp.concatenate(o_parts, axis=-1)
        opt_ref[0] = jnp.concatenate(opt_parts, axis=-1)
        opair_ref[0] = jnp.concatenate(opair_parts, axis=-1)

    return pl.pallas_call(
        kernel,
        out_shape=[jax.ShapeDtypeStruct((B, N, H * C), jnp.float32),
                   jax.ShapeDtypeStruct((B, N, H * Pv * 3), jnp.float32),
                   jax.ShapeDtypeStruct((B, N, H * Cz4), jnp.float32)],
        grid=(B, N // tq),
        in_specs=[pl.BlockSpec((1, H, tq, Dk), lambda b, q: (b, 0, q, 0)),
                  pl.BlockSpec((1, H, N, Dk), lambda b, q: (b, 0, 0, 0)),
                  pl.BlockSpec((1, H, N, C), lambda b, q: (b, 0, 0, 0)),
                  pl.BlockSpec((1, H, N, Pv * 3), lambda b, q: (b, 0, 0, 0)),
                  pl.BlockSpec((1, H, tq, N), lambda b, q: (b, 0, q, 0)),
                  pl.BlockSpec((1, tq, Cz4, N), lambda b, q: (b, q, 0, 0)),
                  pl.BlockSpec((1, tq, N), lambda b, q: (b, q, 0))],
        out_specs=[pl.BlockSpec((1, tq, H * C), lambda b, q: (b, q, 0)),
                   pl.BlockSpec((1, tq, H * Pv * 3), lambda b, q: (b, q, 0)),
                   pl.BlockSpec((1, tq, H * Cz4), lambda b, q: (b, q, 0))],
        compiler_params=_par(2),
    )(qext, kext, v_hm, vp_hm, bias_hm, zdown_t, mask_bias)


def mha_attention_pallas(q_hm, k_hm, v_hm, key_pad_add, nh):
    """Standard MHA core; head-major [B,nh,N,hd] inputs; additive float mask."""
    B, _, N, hd = q_hm.shape
    E = nh * hd
    scale = 1.0 / math.sqrt(hd)
    tq = _q_tile(N)

    def kernel(q_ref, k_ref, v_ref, m_ref, o_ref):
        s = jnp.einsum('hqd,hkd->hqk', q_ref[0], k_ref[0],
                       preferred_element_type=jnp.float32) * scale
        s = s + m_ref[0]                                   # [1,N] additive mask
        mx = jnp.max(s, axis=-1, keepdims=True)
        e = jnp.exp(s - mx)
        a = e * pl.reciprocal(jnp.sum(e, axis=-1, keepdims=True), approx=True)
        o_hm = jnp.einsum('hqk,hkd->hqd', a, v_ref[0],
                          preferred_element_type=jnp.float32)       # [nh,tq,hd]
        o_ref[0] = jnp.concatenate([o_hm[h] for h in range(nh)], axis=-1)

    return pl.pallas_call(
        kernel,
        out_shape=jax.ShapeDtypeStruct((B, N, E), jnp.float32),
        grid=(B, N // tq),
        in_specs=[pl.BlockSpec((1, nh, tq, hd), lambda b, q: (b, 0, q, 0)),
                  pl.BlockSpec((1, nh, N, hd), lambda b, q: (b, 0, 0, 0)),
                  pl.BlockSpec((1, nh, N, hd), lambda b, q: (b, 0, 0, 0)),
                  pl.BlockSpec((1, 1, N), lambda b, q: (b, 0, 0))],
        out_specs=pl.BlockSpec((1, tq, E), lambda b, q: (b, q, 0)),
        compiler_params=_par(2),
    )(q_hm, k_hm, v_hm, key_pad_add)


# ---------------------------------------------------------------------------
# Rigid-frame helpers (JAX glue; OpenFold/FrameDiff conventions)
# ---------------------------------------------------------------------------

def quat_to_rot(q):
    # OpenFold quat->rot formula (from_tensor_7 does not normalize).
    w, x, y, z = q[..., 0], q[..., 1], q[..., 2], q[..., 3]
    rows = jnp.stack([
        w * w + x * x - y * y - z * z, 2 * (x * y - w * z), 2 * (x * z + w * y),
        2 * (x * y + w * z), w * w - x * x + y * y - z * z, 2 * (y * z - w * x),
        2 * (x * z - w * y), 2 * (y * z + w * x), w * w - x * x - y * y + z * z,
    ], axis=-1)
    return rows.reshape(q.shape[:-1] + (3, 3))


def rigid_apply(R, t, pts):            # pts: [B, N, P, 3]
    return jnp.einsum('bnij,bnpj->bnpi', R, pts) + t[:, :, None, :]


def rigid_invert_apply(R, t, pts):
    return jnp.einsum('bnji,bnpj->bnpi', R, pts - t[:, :, None, :])


def compose_q_update_vec(quat, trans, update, update_mask):
    # TODO(synk): Rigid class source not provided; follows OpenFold/FrameDiff
    # compose_q_update_vec (quaternion update (1,b,c,d); translation update
    # rotated by the current frame and masked by the diffuse mask).
    q_vec, t_vec = update[..., :3], update[..., 3:]
    w, x, y, z = quat[..., 0], quat[..., 1], quat[..., 2], quat[..., 3]
    b_, c_, d_ = q_vec[..., 0], q_vec[..., 1], q_vec[..., 2]
    dq = jnp.stack([-x * b_ - y * c_ - z * d_,
                    w * b_ + y * d_ - z * c_,
                    w * c_ - x * d_ + z * b_,
                    w * d_ + x * c_ - y * b_], axis=-1)
    new_quat = quat + dq
    new_quat = new_quat / jnp.linalg.norm(new_quat, axis=-1, keepdims=True)
    R = quat_to_rot(quat)
    trans_update = jnp.einsum('bnij,bnj->bni', R, t_vec) * update_mask
    return new_quat, trans + trans_update


# ---------------------------------------------------------------------------
# Sub-modules (parameters as pytrees)
# ---------------------------------------------------------------------------

def ipa_forward(p, s, z, R, t, mask, cfg):
    B, N, _ = s.shape
    H, C = cfg['no_heads'], cfg['c_hidden']
    Pq, Pv = cfg['no_qk_points'], cfg['no_v_points']
    Cz4 = cfg['c_z'] // 4
    scale_qk = math.sqrt(1.0 / (3 * C))
    sqrt2 = math.sqrt(2.0)

    # Fused node projections: q | kv | q_points | kv_points in ONE matmul.
    w_all = jnp.concatenate([p['linear_q'][0], p['linear_kv'][0],
                             p['linear_q_points'][0], p['linear_kv_points'][0]],
                            axis=1)
    b_all = jnp.concatenate([p['linear_q'][1], p['linear_kv'][1],
                             p['linear_q_points'][1], p['linear_kv_points'][1]],
                            axis=0)
    proj = linear_nd(s, w_all, b_all)
    o0 = H * C
    o1 = o0 + 2 * H * C
    o2 = o1 + H * Pq * 3
    q = proj[..., :o0].reshape(B, N, H, C)
    kv = proj[..., o0:o1].reshape(B, N, H, 2 * C)
    k, v = kv[..., :C], kv[..., C:]

    def pts_from_linear(flat):
        # mirrors torch.split(..., 3 chunks) + stack(dim=-1)
        return jnp.stack(jnp.split(flat, 3, axis=-1), axis=-1)    # [B,N,HP,3]

    qp = rigid_apply(R, t, pts_from_linear(proj[..., o1:o2]))     # [B,N,H*Pq,3]
    kvp = rigid_apply(R, t, pts_from_linear(proj[..., o2:]))
    kvp = kvp.reshape(B, N, H, Pq + Pv, 3)
    kp, vp = kvp[..., :Pq, :], kvp[..., Pq:, :]

    # Fold the per-head point weight into sqrt-scaled points.
    hw = jax.nn.softplus(p['head_weights']) * math.sqrt(1.0 / (3 * (Pq * 9.0 / 2)))
    pt_scale = jnp.sqrt(0.5 * hw)                                  # [H]
    qp_s = qp.reshape(B, N, H, Pq, 3) * pt_scale[None, None, :, None, None]
    kp_s = kp * pt_scale[None, None, :, None, None]
    sq_q = jnp.sum(qp_s ** 2, axis=(-2, -1))                       # [B,N,H]
    sq_k = jnp.sum(kp_s ** 2, axis=(-2, -1))

    # Augmented features: qext.kext^T == scale_qk*q.k - 0.5*w_h*|qp-kp|^2
    ones = jnp.ones((B, N, H, 1), jnp.float32)
    qext = jnp.concatenate([q * scale_qk,
                            sqrt2 * qp_s.reshape(B, N, H, Pq * 3),
                            -sq_q[..., None], ones], axis=-1)
    kext = jnp.concatenate([k,
                            sqrt2 * kp_s.reshape(B, N, H, Pq * 3),
                            ones, -sq_k[..., None]], axis=-1)
    to_hm = lambda x: jnp.transpose(x, (0, 2, 1, 3))               # head-major
    qext, kext = to_hm(qext), to_hm(kext)
    v_hm = to_hm(v)
    vp_hm = to_hm(vp.reshape(B, N, H, Pv * 3))

    # TODO(synk): fold this head-major transpose of the bias into a fused
    # pair-projection kernel to save one HBM pass per block.
    bias_hm = jnp.transpose(linear_nd(z, *p['linear_b']), (0, 3, 1, 2))
    zdown_t = jnp.transpose(linear_nd(z, *p['down_z']), (0, 1, 3, 2))
    mask_bias = cfg['inf'] * (mask[:, :, None] * mask[:, None, :] - 1.0)

    o, o_pt_g, o_pair = ipa_attention_pallas(
        qext, kext, v_hm, vp_hm, bias_hm, zdown_t, mask_bias,
        H=H, C=C, Pv=Pv, Cz4=Cz4)

    o_pt = rigid_invert_apply(R, t, o_pt_g.reshape(B, N, H * Pv, 3))
    o_pt_norm = jnp.sqrt(jnp.sum(o_pt ** 2, axis=-1) + cfg['eps'])
    feats = jnp.concatenate(
        [o, o_pt[..., 0], o_pt[..., 1], o_pt[..., 2], o_pt_norm, o_pair], axis=-1)
    return linear_nd(feats, *p['linear_out'])


def transformer_layer(p, x, key_pad_add, nh):
    # TODO(synk): PyTorch passes a *float* src_key_padding_mask (1 - mask); per
    # current PyTorch semantics it is additive on the logits. Dropout = eval.
    B, N, E = x.shape
    hd = E // nh
    qkv = linear_nd(x, *p['in_proj'])
    to_hm = lambda u: jnp.transpose(u.reshape(B, N, nh, hd), (0, 2, 1, 3))
    attn = mha_attention_pallas(to_hm(qkv[..., :E]), to_hm(qkv[..., E:2 * E]),
                                to_hm(qkv[..., 2 * E:]), key_pad_add, nh)
    # fused out_proj + residual + LayerNorm (norm1)
    x = linear_nd(attn, *p['out_proj'], res=x, ln=p['norm1'])
    # fused FFN (lin1 -> relu -> lin2) + residual + LayerNorm (norm2)
    return ffn_layernorm_nd(x, p['lin1'], p['lin2'], p['norm2'])


def node_transition(p, s):
    # TODO(synk): NodeTransition source not provided; FrameDiff convention used.
    s0 = s
    h = linear_nd(s, *p['l1'], relu=True)
    h = linear_nd(h, *p['l2'], relu=True)
    return linear_nd(h, *p['l3'], res=s0, ln=p['ln'])   # fused l3 + res + LN


def edge_transition(p, node_embed, edge_embed):
    # TODO(synk): EdgeTransition source not provided; FrameDiff convention used.
    B, N, _ = node_embed.shape
    ne = linear_nd(node_embed, *p['initial'])
    edge_bias = jnp.concatenate(
        [jnp.tile(ne[:, :, None, :], (1, 1, N, 1)),
         jnp.tile(ne[:, None, :, :], (1, N, 1, 1))], axis=-1)
    ee = jnp.concatenate([edge_embed, edge_bias], axis=-1)
    h = ee
    for tw in p['trunk']:
        h = linear_nd(h, *tw, relu=True)
    return linear_nd(h + ee, *p['final'], ln=p['ln'])   # fused final + LN


def torsion_head(p, s, eps=1e-8):
    # TODO(synk): TorsionAngleHead source not provided; FrameDiff convention,
    # returning the normalized (sin, cos) prediction.
    s0 = s
    h = linear_nd(s, *p['l1'], relu=True)
    h = linear_nd(h, *p['l2'], relu=True, res=s0)
    u = linear_nd(h, *p['final'])
    denom = jnp.sqrt(jnp.maximum(jnp.sum(u ** 2, axis=-1, keepdims=True), eps))
    return u / denom


# ---------------------------------------------------------------------------
# TranslationIPA forward
# ---------------------------------------------------------------------------

def translation_ipa_forward(params, node_embed, edge_embed, batch, cfg):
    node_mask = batch['residue_mask'].astype(jnp.float32)
    diffuse_mask = (1.0 - batch['fixed_mask'].astype(jnp.float32)) * node_mask
    edge_mask = node_mask[..., None] * node_mask[..., None, :]

    init_frames = batch['rigids_t'].astype(jnp.float32)
    quat = init_frames[..., :4]
    trans = init_frames[..., 4:] * cfg['coordinate_scaling']   # scale_rigids
    init_node_embed = node_embed
    B, N, _ = node_embed.shape
    key_pad_add = (1.0 - node_mask).reshape(B, 1, N)

    for b in range(cfg['no_ipa_blocks']):
        R = quat_to_rot(quat)
        ipa_embed = ipa_forward(params[f'ipa_{b}'], node_embed, edge_embed,
                                R, trans, node_mask, cfg)
        ipa_embed = ipa_embed * node_mask[..., None]
        node_embed = add_layernorm_nd(node_embed, ipa_embed,
                                      *params[f'ipa_ln_{b}'])

        skip = linear_nd(init_node_embed, *params[f'skip_embed_{b}'])
        t_emb = jnp.concatenate([node_embed, skip], axis=-1)
        for lp in params[f'transformer_{b}']:
            t_emb = transformer_layer(lp, t_emb, key_pad_add,
                                      cfg['transformer_num_heads'])
        node_embed = linear_nd(t_emb, *params[f'linear_{b}'], res=node_embed)
        node_embed = node_transition(params[f'node_transition_{b}'], node_embed)
        node_embed = node_embed * node_mask[..., None]

        rigid_update = linear_nd(node_embed * diffuse_mask[..., None],
                                 *params[f'bb_update_{b}'])
        quat, trans = compose_q_update_vec(quat, trans, rigid_update,
                                           diffuse_mask[..., None])

        if b < cfg['no_ipa_blocks'] - 1:
            edge_embed = edge_transition(params[f'edge_transition_{b}'],
                                         node_embed, edge_embed)
            edge_embed = edge_embed * edge_mask[..., None]

    psi_pred = torsion_head(params['torsion_pred'], node_embed)
    trans = trans / cfg['coordinate_scaling']                   # unscale_rigids
    # TODO(synk): Rigid objects are returned as tensor_7 ([quat, trans]) arrays.
    out_rigids = jnp.concatenate([quat, trans], axis=-1)
    return {'in_rigids': init_frames, 'out_rigids': out_rigids, 'psi': psi_pred}


# ---------------------------------------------------------------------------
# Deterministic parameter init (synthetic; not a checkpoint load)
# ---------------------------------------------------------------------------

def init_params(key, cfg):
    c_s, c_z = cfg['c_s'], cfg['c_z']
    H, C = cfg['no_heads'], cfg['c_hidden']
    Pq, Pv = cfg['no_qk_points'], cfg['no_v_points']
    skip = cfg['skip_embed_size']
    E = c_s + skip
    counter = [0]

    def lin(din, dout):
        counter[0] += 1
        kw = jax.random.fold_in(key, counter[0])
        counter[0] += 1
        kb = jax.random.fold_in(key, counter[0])
        w = jax.random.normal(kw, (din, dout), jnp.float32) / math.sqrt(din)
        b = jax.random.normal(kb, (dout,), jnp.float32) * 0.02
        return (w, b)

    def ln(d):
        return (jnp.ones((d,), jnp.float32), jnp.zeros((d,), jnp.float32))

    P = {}
    concat_out = c_z // 4 + C + Pv * 4
    hidden_edge = c_z + 2 * (c_s // 2)
    for b in range(cfg['no_ipa_blocks']):
        P[f'ipa_{b}'] = dict(
            linear_q=lin(c_s, H * C),
            linear_kv=lin(c_s, 2 * H * C),
            linear_q_points=lin(c_s, H * Pq * 3),
            linear_kv_points=lin(c_s, H * (Pq + Pv) * 3),
            linear_b=lin(c_z, H),
            down_z=lin(c_z, c_z // 4),
            head_weights=jnp.full((H,), 0.541324854612918, jnp.float32),
            linear_out=lin(H * concat_out, c_s),
        )
        P[f'ipa_ln_{b}'] = ln(c_s)
        P[f'skip_embed_{b}'] = lin(c_s, skip)
        P[f'transformer_{b}'] = [
            dict(in_proj=lin(E, 3 * E), out_proj=lin(E, E), norm1=ln(E),
                 lin1=lin(E, E), lin2=lin(E, E), norm2=ln(E))
            for _ in range(cfg['transformer_num_layers'])]
        P[f'linear_{b}'] = lin(E, c_s)
        P[f'node_transition_{b}'] = dict(l1=lin(c_s, c_s), l2=lin(c_s, c_s),
                                         l3=lin(c_s, c_s), ln=ln(c_s))
        P[f'bb_update_{b}'] = lin(c_s, 6)
        if b < cfg['no_ipa_blocks'] - 1:
            P[f'edge_transition_{b}'] = dict(
                initial=lin(c_s, c_s // 2),
                trunk=[lin(hidden_edge, hidden_edge) for _ in range(2)],
                final=lin(hidden_edge, c_z), ln=ln(c_z))
    P['torsion_pred'] = dict(l1=lin(c_s, c_s), l2=lin(c_s, c_s), final=lin(c_s, 2))
    return P


# ---------------------------------------------------------------------------

if __name__ == "__main__":
    CFG = dict(c_s=32, c_z=16, coordinate_scaling=0.1, no_ipa_blocks=2,
               skip_embed_size=16, transformer_num_heads=4,
               transformer_num_layers=2, c_hidden=16, no_heads=4,
               no_qk_points=4, no_v_points=8, inf=1e5, eps=1e-8)
    B, N = 2, 8

    key = jax.random.PRNGKey(0)
    ks = jax.random.split(key, 6)
    params = init_params(ks[0], CFG)
    node_embed = jax.random.normal(ks[1], (B, N, CFG['c_s']), jnp.float32)
    edge_embed = jax.random.normal(ks[2], (B, N, N, CFG['c_z']), jnp.float32)
    quat = jax.random.normal(ks[3], (B, N, 4), jnp.float32)
    quat = quat / jnp.linalg.norm(quat, axis=-1, keepdims=True)
    trans = jax.random.normal(ks[4], (B, N, 3), jnp.float32) * 2.0
    rigids_t = jnp.concatenate([quat, trans], axis=-1)
    residue_mask = jnp.ones((B, N), jnp.float32).at[0, -1].set(0.0)
    fixed_mask = jnp.zeros((B, N), jnp.float32).at[1, 0].set(1.0)
    batch = {'residue_mask': residue_mask, 'fixed_mask': fixed_mask,
             'rigids_t': rigids_t}

    fwd = jax.jit(lambda p, ne, ee, bt: translation_ipa_forward(p, ne, ee, bt, CFG))
    out = fwd(params, node_embed, edge_embed, batch)
    out = jax.block_until_ready(out)

    assert out['psi'].shape == (B, N, 2)
    assert out['out_rigids'].shape == (B, N, 7)
    assert out['in_rigids'].shape == (B, N, 7)
    assert bool(jnp.all(jnp.isfinite(out['psi'])))
    assert bool(jnp.all(jnp.isfinite(out['out_rigids'])))
    print("KERNEL_OK")
</pallas_src>

<mosaic_0001>
module attributes {stable_mosaic.version = 11 : i64} {
  func.func @kernel(%arg0: i32, %arg1: memref<16x32xf32, #tpu.memory_space<vmem>>, %arg2: memref<32x16xf32, #tpu.memory_space<vmem>>, %arg3: memref<1x16xf32, #tpu.memory_space<vmem>>, %arg4: memref<16x16xf32, #tpu.memory_space<vmem>>) attributes {dimension_semantics = [#tpu.dimension_semantics<parallel>], iteration_bounds = array<i64: 1>, scalar_prefetch = 0 : i64, scratch_operands = 0 : i64, tpu.core_type = #tpu.core_type<tc>, window_params = [{transform_indices = @transform_0, window_bounds = array<i64: 16, 32>}, {pipeline_mode = #tpu.pipeline_mode<synchronous>, transform_indices = @transform_1, window_bounds = array<i64: 32, 16>}, {pipeline_mode = #tpu.pipeline_mode<synchronous>, transform_indices = @transform_2, window_bounds = array<i64: 1, 16>}, {transform_indices = @transform_3, window_bounds = array<i64: 16, 16>}]} {
    %c0 = arith.constant 0 : index
    %c0_0 = arith.constant 0 : index
    %0 = vector.load %arg1[%c0, %c0_0] : memref<16x32xf32, #tpu.memory_space<vmem>>, vector<16x32xf32>
    %c0_1 = arith.constant 0 : index
    %c0_2 = arith.constant 0 : index
    %1 = vector.load %arg2[%c0_1, %c0_2] : memref<32x16xf32, #tpu.memory_space<vmem>>, vector<32x16xf32>
    %cst = arith.constant dense<0.000000e+00> : vector<16x16xf32>
    %2 = tpu.matmul %0, %1, %cst {dimension_numbers = #tpu.dot_dimension_numbers<[1], [0], [0], [1], [0, 0, 1, 1], [], []>} : vector<16x32xf32>, vector<32x16xf32>, vector<16x16xf32> -> vector<16x16xf32>
    %c0_3 = arith.constant 0 : index
    %c0_4 = arith.constant 0 : index
    %3 = vector.load %arg3[%c0_3, %c0_4] : memref<1x16xf32, #tpu.memory_space<vmem>>, vector<1x16xf32>
    %4 = vector.broadcast %3 : vector<1x16xf32> to vector<16x16xf32>
    %5 = arith.addf %2, %4 : vector<16x16xf32>
    %c0_5 = arith.constant 0 : index
    %c0_6 = arith.constant 0 : index
    %6 = vector.load %arg4[%c0_5, %c0_6] : memref<16x16xf32, #tpu.memory_space<vmem>>, vector<16x16xf32>
    tpu.vector_store %arg4[%c0_5, %c0_6], %5 {strides = array<i32>} : memref<16x16xf32, #tpu.memory_space<vmem>>, vector<16x16xf32>,
    return
  }
  func.func @transform_0(%arg0: i32) -> (i32, i32) {
    %c0_i32 = arith.constant 0 : i32
    %c0_i32_0 = arith.constant 0 : i32
    return %arg0, %c0_i32 : i32, i32
  }
  func.func @transform_1(%arg0: i32) -> (i32, i32) {
    %c0_i32 = arith.constant 0 : i32
    %c0_i32_0 = arith.constant 0 : i32
    %c0_i32_1 = arith.constant 0 : i32
    return %c0_i32, %c0_i32_0 : i32, i32
  }
  func.func @transform_2(%arg0: i32) -> (i32, i32) {
    %c0_i32 = arith.constant 0 : i32
    %c0_i32_0 = arith.constant 0 : i32
    %c0_i32_1 = arith.constant 0 : i32
    return %c0_i32, %c0_i32_0 : i32, i32
  }
  func.func @transform_3(%arg0: i32) -> (i32, i32) {
    %c0_i32 = arith.constant 0 : i32
    %c0_i32_0 = arith.constant 0 : i32
    return %arg0, %c0_i32 : i32, i32
  }
}

module attributes {stable_mosaic.version = 11 : i64} {
  func.func @kernel(%arg0: i32, %arg1: memref<16x32xf32, #tpu.memory_space<vmem>>, %arg2: memref<32x384xf32, #tpu.memory_space<vmem>>, %arg3: memref<1x384xf32, #tpu.memory_space<vmem>>, %arg4: memref<16x384xf32, #tpu.memory_space<vmem>>) attributes {dimension_semantics = [#tpu.dimension_semantics<parallel>], iteration_bounds = array<i64: 1>, scalar_prefetch = 0 : i64, scratch_operands = 0 : i64, tpu.core_type = #tpu.core_type<tc>, window_params = [{transform_indices = @transform_0, window_bounds = array<i64: 16, 32>}, {pipeline_mode = #tpu.pipeline_mode<synchronous>, transform_indices = @transform_1, window_bounds = array<i64: 32, 384>}, {pipeline_mode = #tpu.pipeline_mode<synchronous>, transform_indices = @transform_2, window_bounds = array<i64: 1, 384>}, {transform_indices = @transform_3, window_bounds = array<i64: 16, 384>}]} {
    %c0 = arith.constant 0 : index
    %c0_0 = arith.constant 0 : index
    %0 = vector.load %arg1[%c0, %c0_0] : memref<16x32xf32, #tpu.memory_space<vmem>>, vector<16x32xf32>
    %c0_1 = arith.constant 0 : index
    %c0_2 = arith.constant 0 : index
    %1 = vector.load %arg2[%c0_1, %c0_2] : memref<32x384xf32, #tpu.memory_space<vmem>>, vector<32x384xf32>
    %cst = arith.constant dense<0.000000e+00> : vector<16x384xf32>
    %2 = tpu.matmul %0, %1, %cst {dimension_numbers = #tpu.dot_dimension_numbers<[1], [0], [0], [1], [0, 0, 1, 1], [], []>} : vector<16x32xf32>, vector<32x384xf32>, vector<16x384xf32> -> vector<16x384xf32>
    %c0_3 = arith.constant 0 : index
    %c0_4 = arith.constant 0 : index
    %3 = vector.load %arg3[%c0_3, %c0_4] : memref<1x384xf32, #tpu.memory_space<vmem>>, vector<1x384xf32>
    %4 = vector.broadcast %3 : vector<1x384xf32> to vector<16x384xf32>
    %5 = arith.addf %2, %4 : vector<16x384xf32>
    %c0_5 = arith.constant 0 : index
    %c0_6 = arith.constant 0 : index
    %6 = vector.load %arg4[%c0_5, %c0_6] : memref<16x384xf32, #tpu.memory_space<vmem>>, vector<16x384xf32>
    tpu.vector_store %arg4[%c0_5, %c0_6], %5 {strides = array<i32>} : memref<16x384xf32, #tpu.memory_space<vmem>>, vector<16x384xf32>,
    return
  }
  func.func @transform_0(%arg0: i32) -> (i32, i32) {
    %c0_i32 = arith.constant 0 : i32
    %c0_i32_0 = arith.constant 0 : i32
    return %arg0, %c0_i32 : i32, i32
  }
  func.func @transform_1(%arg0: i32) -> (i32, i32) {
    %c0_i32 = arith.constant 0 : i32
    %c0_i32_0 = arith.constant 0 : i32
    %c0_i32_1 = arith.constant 0 : i32
    return %c0_i32, %c0_i32_0 : i32, i32
  }
  func.func @transform_2(%arg0: i32) -> (i32, i32) {
    %c0_i32 = arith.constant 0 : i32
    %c0_i32_0 = arith.constant 0 : i32
    %c0_i32_1 = arith.constant 0 : i32
    return %c0_i32, %c0_i32_0 : i32, i32
  }
  func.func @transform_3(%arg0: i32) -> (i32, i32) {
    %c0_i32 = arith.constant 0 : i32
    %c0_i32_0 = arith.constant 0 : i32
    return %arg0, %c0_i32 : i32, i32
  }
}

module attributes {stable_mosaic.version = 11 : i64} {
  func.func @kernel(%arg0: i32, %arg1: memref<128x16xf32, #tpu.memory_space<vmem>>, %arg2: memref<16x4xf32, #tpu.memory_space<vmem>>, %arg3: memref<1x4xf32, #tpu.memory_space<vmem>>, %arg4: memref<128x4xf32, #tpu.memory_space<vmem>>) attributes {dimension_semantics = [#tpu.dimension_semantics<parallel>], iteration_bounds = array<i64: 1>, scalar_prefetch = 0 : i64, scratch_operands = 0 : i64, tpu.core_type = #tpu.core_type<tc>, window_params = [{transform_indices = @transform_0, window_bounds = array<i64: 128, 16>}, {pipeline_mode = #tpu.pipeline_mode<synchronous>, transform_indices = @transform_1, window_bounds = array<i64: 16, 4>}, {pipeline_mode = #tpu.pipeline_mode<synchronous>, transform_indices = @transform_2, window_bounds = array<i64: 1, 4>}, {transform_indices = @transform_3, window_bounds = array<i64: 128, 4>}]} {
    %c0 = arith.constant 0 : index
    %c0_0 = arith.constant 0 : index
    %0 = vector.load %arg1[%c0, %c0_0] : memref<128x16xf32, #tpu.memory_space<vmem>>, vector<128x16xf32>
    %c0_1 = arith.constant 0 : index
    %c0_2 = arith.constant 0 : index
    %1 = vector.load %arg2[%c0_1, %c0_2] : memref<16x4xf32, #tpu.memory_space<vmem>>, vector<16x4xf32>
    %cst = arith.constant dense<0.000000e+00> : vector<128x4xf32>
    %2 = tpu.matmul %0, %1, %cst {dimension_numbers = #tpu.dot_dimension_numbers<[1], [0], [0], [1], [0, 0, 1, 1], [], []>} : vector<128x16xf32>, vector<16x4xf32>, vector<128x4xf32> -> vector<128x4xf32>
    %c0_3 = arith.constant 0 : index
    %c0_4 = arith.constant 0 : index
    %3 = vector.load %arg3[%c0_3, %c0_4] : memref<1x4xf32, #tpu.memory_space<vmem>>, vector<1x4xf32>
    %4 = vector.broadcast %3 : vector<1x4xf32> to vector<128x4xf32>
    %5 = arith.addf %2, %4 : vector<128x4xf32>
    %c0_5 = arith.constant 0 : index
    %c0_6 = arith.constant 0 : index
    %6 = vector.load %arg4[%c0_5, %c0_6] : memref<128x4xf32, #tpu.memory_space<vmem>>, vector<128x4xf32>
    tpu.vector_store %arg4[%c0_5, %c0_6], %5 {strides = array<i32>} : memref<128x4xf32, #tpu.memory_space<vmem>>, vector<128x4xf32>,
    return
  }
  func.func @transform_0(%arg0: i32) -> (i32, i32) {
    %c0_i32 = arith.constant 0 : i32
    %c0_i32_0 = arith.constant 0 : i32
    return %arg0, %c0_i32 : i32, i32
  }
  func.func @transform_1(%arg0: i32) -> (i32, i32) {
    %c0_i32 = arith.constant 0 : i32
    %c0_i32_0 = arith.constant 0 : i32
    %c0_i32_1 = arith.constant 0 : i32
    return %c0_i32, %c0_i32_0 : i32, i32
  }
  func.func @transform_2(%arg0: i32) -> (i32, i32) {
    %c0_i32 = arith.constant 0 : i32
    %c0_i32_0 = arith.constant 0 : i32
    %c0_i32_1 = arith.constant 0 : i32
    return %c0_i32, %c0_i32_0 : i32, i32
  }
  func.func @transform_3(%arg0: i32) -> (i32, i32) {
    %c0_i32 = arith.constant 0 : i32
    %c0_i32_0 = arith.constant 0 : i32
    return %arg0, %c0_i32 : i32, i32
  }
}

module attributes {stable_mosaic.version = 11 : i64} {
  func.func @kernel(%arg0: i32, %arg1: i32, %arg2: memref<1x4x8x30xf32, #tpu.memory_space<vmem>>, %arg3: memref<1x4x8x30xf32, #tpu.memory_space<vmem>>, %arg4: memref<1x4x8x16xf32, #tpu.memory_space<vmem>>, %arg5: memref<1x4x8x24xf32, #tpu.memory_space<vmem>>, %arg6: memref<1x4x8x8xf32, #tpu.memory_space<vmem>>, %arg7: memref<1x8x4x8xf32, #tpu.memory_space<vmem>>, %arg8: memref<1x8x8xf32, #tpu.memory_space<vmem>>, %arg9: memref<1x8x64xf32, #tpu.memory_space<vmem>>, %arg10: memref<1x8x96xf32, #tpu.memory_space<vmem>>, %arg11: memref<1x8x16xf32, #tpu.memory_space<vmem>>) attributes {dimension_semantics = [#tpu.dimension_semantics<parallel>, #tpu.dimension_semantics<parallel>], iteration_bounds = array<i64: 2, 1>, scalar_prefetch = 0 : i64, scratch_operands = 0 : i64, tpu.core_type = #tpu.core_type<tc>, window_params = [{transform_indices = @transform_0, window_bounds = array<i64: 1, 4, 8, 30>}, {transform_indices = @transform_1, window_bounds = array<i64: 1, 4, 8, 30>}, {transform_indices = @transform_2, window_bounds = array<i64: 1, 4, 8, 16>}, {transform_indices = @transform_3, window_bounds = array<i64: 1, 4, 8, 24>}, {transform_indices = @transform_4, window_bounds = array<i64: 1, 4, 8, 8>}, {transform_indices = @transform_5, window_bounds = array<i64: 1, 8, 4, 8>}, {transform_indices = @transform_6, window_bounds = array<i64: 1, 8, 8>}, {transform_indices = @transform_7, window_bounds = array<i64: 1, 8, 64>}, {transform_indices = @transform_8, window_bounds = array<i64: 1, 8, 96>}, {transform_indices = @transform_9, window_bounds = array<i64: 1, 8, 16>}]} {
    %c0 = arith.constant 0 : index
    %c0_0 = arith.constant 0 : index
    %c0_1 = arith.constant 0 : index
    %c0_2 = arith.constant 0 : index
    %0 = vector.load %arg2[%c0, %c0_0, %c0_1, %c0_2] : memref<1x4x8x30xf32, #tpu.memory_space<vmem>>, vector<1x4x8x30xf32>
    %1 = vector.shape_cast %0 : vector<1x4x8x30xf32> to vector<4x8x30xf32>
    %c0_3 = arith.constant 0 : index
    %c0_4 = arith.constant 0 : index
    %c0_5 = arith.constant 0 : index
    %c0_6 = arith.constant 0 : index
    %2 = vector.load %arg3[%c0_3, %c0_4, %c0_5, %c0_6] : memref<1x4x8x30xf32, #tpu.memory_space<vmem>>, vector<1x4x8x30xf32>
    %3 = vector.shape_cast %2 : vector<1x4x8x30xf32> to vector<4x8x30xf32>
    "tpu.trace_start"() <{level = 10 : i32, message = "hqd,hkd->hqk"}> : () -> ()
    %cst = arith.constant dense<0.000000e+00> : vector<4x8x8xf32>
    %4 = tpu.matmul %1, %3, %cst {dimension_numbers = #tpu.dot_dimension_numbers<[2], [2], [1], [1], [0, 0, 0, 1, 1, 1], [0], [0]>} : vector<4x8x30xf32>, vector<4x8x30xf32>, vector<4x8x8xf32> -> vector<4x8x8xf32>
    "tpu.trace_stop"() : () -> ()
    %c0_7 = arith.constant 0 : index
    %c0_8 = arith.constant 0 : index
    %c0_9 = arith.constant 0 : index
    %c0_10 = arith.constant 0 : index
    %5 = vector.load %arg6[%c0_7, %c0_8, %c0_9, %c0_10] : memref<1x4x8x8xf32, #tpu.memory_space<vmem>>, vector<1x4x8x8xf32>
    %6 = vector.shape_cast %5 : vector<1x4x8x8xf32> to vector<4x8x8xf32>
    %cst_11 = arith.constant 0.577350259 : f32
    %7 = vector.broadcast %cst_11 : f32 to vector<4x8x8xf32>
    %8 = arith.mulf %7, %6 : vector<4x8x8xf32>
    %9 = arith.addf %4, %8 : vector<4x8x8xf32>
    %c0_12 = arith.constant 0 : index
    %c0_13 = arith.constant 0 : index
    %c0_14 = arith.constant 0 : index
    %10 = vector.load %arg8[%c0_12, %c0_13, %c0_14] : memref<1x8x8xf32, #tpu.memory_space<vmem>>, vector<1x8x8xf32>
    %11 = vector.shape_cast %10 : vector<1x8x8xf32> to vector<8x8xf32>
    %12 = vector.shape_cast %11 : vector<8x8xf32> to vector<1x8x8xf32>
    %13 = vector.broadcast %12 : vector<1x8x8xf32> to vector<4x8x8xf32>
    %14 = arith.addf %9, %13 : vector<4x8x8xf32>
    %cst_15 = arith.constant dense<0xFF800000> : vector<4x8xf32>
    %15 = vector.multi_reduction <maximumf>, %14, %cst_15 [2] : vector<4x8x8xf32> to vector<4x8xf32>
    %16 = vector.shape_cast %15 : vector<4x8xf32> to vector<4x8x1xf32>
    %17 = vector.broadcast %16 : vector<4x8x1xf32> to vector<4x8x8xf32>
    %18 = arith.subf %14, %17 : vector<4x8x8xf32>
    %19 = math.exp %18 : vector<4x8x8xf32>
    %cst_16 = arith.constant dense<0.000000e+00> : vector<4x8xf32>
    %20 = vector.multi_reduction <add>, %19, %cst_16 [2] : vector<4x8x8xf32> to vector<4x8xf32>
    %21 = vector.shape_cast %20 : vector<4x8xf32> to vector<4x8x1xf32>
    %22 = tpu.reciprocal %21 {approx = true} : vector<4x8x1xf32> -> vector<4x8x1xf32>
    %23 = vector.broadcast %22 : vector<4x8x1xf32> to vector<4x8x8xf32>
    %24 = arith.mulf %19, %23 : vector<4x8x8xf32>
    %c0_17 = arith.constant 0 : index
    %c0_18 = arith.constant 0 : index
    %c0_19 = arith.constant 0 : index
    %c0_20 = arith.constant 0 : index
    %25 = vector.load %arg4[%c0_17, %c0_18, %c0_19, %c0_20] : memref<1x4x8x16xf32, #tpu.memory_space<vmem>>, vector<1x4x8x16xf32>
    %26 = vector.shape_cast %25 : vector<1x4x8x16xf32> to vector<4x8x16xf32>
    "tpu.trace_start"() <{level = 10 : i32, message = "hqk,hkc->hqc"}> : () -> ()
    %cst_21 = arith.constant dense<0.000000e+00> : vector<4x8x16xf32>
    %27 = tpu.matmul %24, %26, %cst_21 {dimension_numbers = #tpu.dot_dimension_numbers<[2], [1], [1], [2], [0, 0, 0, 1, 1, 2], [0], [0]>} : vector<4x8x8xf32>, vector<4x8x16xf32>, vector<4x8x16xf32> -> vector<4x8x16xf32>
    "tpu.trace_stop"() : () -> ()
    %c0_22 = arith.constant 0 : index
    %c0_23 = arith.constant 0 : index
    %c0_24 = arith.constant 0 : index
    %c0_25 = arith.constant 0 : index
    %28 = vector.load %arg5[%c0_22, %c0_23, %c0_24, %c0_25] : memref<1x4x8x24xf32, #tpu.memory_space<vmem>>, vector<1x4x8x24xf32>
    %29 = vector.shape_cast %28 : vector<1x4x8x24xf32> to vector<4x8x24xf32>
    "tpu.trace_start"() <{level = 10 : i32, message = "hqk,hkp->hqp"}> : () -> ()
    %cst_26 = arith.constant dense<0.000000e+00> : vector<4x8x24xf32>
    %30 = tpu.matmul %24, %29, %cst_26 {dimension_numbers = #tpu.dot_dimension_numbers<[2], [1], [1], [2], [0, 0, 0, 1, 1, 2], [0], [0]>} : vector<4x8x8xf32>, vector<4x8x24xf32>, vector<4x8x24xf32> -> vector<4x8x24xf32>
    "tpu.trace_stop"() : () -> ()
    %c0_27 = arith.constant 0 : index
    %c0_28 = arith.constant 0 : index
    %c0_29 = arith.constant 0 : index
    %c0_30 = arith.constant 0 : index
    %31 = vector.load %arg7[%c0_27, %c0_28, %c0_29, %c0_30] : memref<1x8x4x8xf32, #tpu.memory_space<vmem>>, vector<1x8x4x8xf32>
    %32 = vector.shape_cast %31 : vector<1x8x4x8xf32> to vector<8x4x8xf32>
    %33 = vector.extract_strided_slice %27 {offsets = [0, 0, 0], sizes = [1, 8, 16], strides = [1, 1, 1]} : vector<4x8x16xf32> to vector<1x8x16xf32>
    %34 = vector.shape_cast %33 : vector<1x8x16xf32> to vector<8x16xf32>
    %35 = vector.extract_strided_slice %30 {offsets = [0, 0, 0], sizes = [1, 8, 24], strides = [1, 1, 1]} : vector<4x8x24xf32> to vector<1x8x24xf32>
    %36 = vector.shape_cast %35 : vector<1x8x24xf32> to vector<8x24xf32>
    %37 = vector.extract_strided_slice %24 {offsets = [0, 0, 0], sizes = [1, 8, 8], strides = [1, 1, 1]} : vector<4x8x8xf32> to vector<1x8x8xf32>
    %38 = vector.shape_cast %37 : vector<1x8x8xf32> to vector<8x8xf32>
    %39 = vector.shape_cast %38 : vector<8x8xf32> to vector<8x1x8xf32>
    %40 = vector.broadcast %39 : vector<8x1x8xf32> to vector<8x4x8xf32>
    %41 = arith.mulf %40, %32 : vector<8x4x8xf32>
    %cst_31 = arith.constant dense<0.000000e+00> : vector<8x4xf32>
    %42 = vector.multi_reduction <add>, %41, %cst_31 [2] : vector<8x4x8xf32> to vector<8x4xf32>
    %43 = vector.extract_strided_slice %27 {offsets = [1, 0, 0], sizes = [1, 8, 16], strides = [1, 1, 1]} : vector<4x8x16xf32> to vector<1x8x16xf32>
    %44 = vector.shape_cast %43 : vector<1x8x16xf32> to vector<8x16xf32>
    %45 = vector.extract_strided_slice %30 {offsets = [1, 0, 0], sizes = [1, 8, 24], strides = [1, 1, 1]} : vector<4x8x24xf32> to vector<1x8x24xf32>
    %46 = vector.shape_cast %45 : vector<1x8x24xf32> to vector<8x24xf32>
    %47 = vector.extract_strided_slice %24 {offsets = [1, 0, 0], sizes = [1, 8, 8], strides = [1, 1, 1]} : vector<4x8x8xf32> to vector<1x8x8xf32>
    %48 = vector.shape_cast %47 : vector<1x8x8xf32> to vector<8x8xf32>
    %49 = vector.shape_cast %48 : vector<8x8xf32> to vector<8x1x8xf32>
    %50 = vector.broadcast %49 : vector<8x1x8xf32> to vector<8x4x8xf32>
    %51 = arith.mulf %50, %32 : vector<8x4x8xf32>
    %cst_32 = arith.constant dense<0.000000e+00> : vector<8x4xf32>
    %52 = vector.multi_reduction <add>, %51, %cst_32 [2] : vector<8x4x8xf32> to vector<8x4xf32>
    %53 = vector.extract_strided_slice %27 {offsets = [2, 0, 0], sizes = [1, 8, 16], strides = [1, 1, 1]} : vector<4x8x16xf32> to vector<1x8x16xf32>
    %54 = vector.shape_cast %53 : vector<1x8x16xf32> to vector<8x16xf32>
    %55 = vector.extract_strided_slice %30 {offsets = [2, 0, 0], sizes = [1, 8, 24], strides = [1, 1, 1]} : vector<4x8x24xf32> to vector<1x8x24xf32>
    %56 = vector.shape_cast %55 : vector<1x8x24xf32> to vector<8x24xf32>
    %57 = vector.extract_strided_slice %24 {offsets = [2, 0, 0], sizes = [1, 8, 8], strides = [1, 1, 1]} : vector<4x8x8xf32> to vector<1x8x8xf32>
    %58 = vector.shape_cast %57 : vector<1x8x8xf32> to vector<8x8xf32>
    %59 = vector.shape_cast %58 : vector<8x8xf32> to vector<8x1x8xf32>
    %60 = vector.broadcast %59 : vector<8x1x8xf32> to vector<8x4x8xf32>
    %61 = arith.mulf %60, %32 : vector<8x4x8xf32>
    %cst_33 = arith.constant dense<0.000000e+00> : vector<8x4xf32>
    %62 = vector.multi_reduction <add>, %61, %cst_33 [2] : vector<8x4x8xf32> to vector<8x4xf32>
    %63 = vector.extract_strided_slice %27 {offsets = [3, 0, 0], sizes = [1, 8, 16], strides = [1, 1, 1]} : vector<4x8x16xf32> to vector<1x8x16xf32>
    %64 = vector.shape_cast %63 : vector<1x8x16xf32> to vector<8x16xf32>
    %65 = vector.extract_strided_slice %30 {offsets = [3, 0, 0], sizes = [1, 8, 24], strides = [1, 1, 1]} : vector<4x8x24xf32> to vector<1x8x24xf32>
    %66 = vector.shape_cast %65 : vector<1x8x24xf32> to vector<8x24xf32>
    %67 = vector.extract_strided_slice %24 {offsets = [3, 0, 0], sizes = [1, 8, 8], strides = [1, 1, 1]} : vector<4x8x8xf32> to vector<1x8x8xf32>
    %68 = vector.shape_cast %67 : vector<1x8x8xf32> to vector<8x8xf32>
    %69 = vector.shape_cast %68 : vector<8x8xf32> to vector<8x1x8xf32>
    %70 = vector.broadcast %69 : vector<8x1x8xf32> to vector<8x4x8xf32>
    %71 = arith.mulf %70, %32 : vector<8x4x8xf32>
    %cst_34 = arith.constant dense<0.000000e+00> : vector<8x4xf32>
    %72 = vector.multi_reduction <add>, %71, %cst_34 [2] : vector<8x4x8xf32> to vector<8x4xf32>
    %73 = tpu.concatenate %34, %44, %54, %64 in 1 : vector<8x16xf32>, vector<8x16xf32>, vector<8x16xf32>, vector<8x16xf32> -> vector<8x64xf32>
    %c0_35 = arith.constant 0 : index
    %c0_36 = arith.constant 0 : index
    %c0_37 = arith.constant 0 : index
    %74 = vector.load %arg9[%c0_35, %c0_36, %c0_37] : memref<1x8x64xf32, #tpu.memory_space<vmem>>, vector<1x8x64xf32>
    %75 = vector.shape_cast %74 : vector<1x8x64xf32> to vector<8x64xf32>
    %76 = vector.shape_cast %73 : vector<8x64xf32> to vector<1x8x64xf32>
    tpu.vector_store %arg9[%c0_35, %c0_36, %c0_37], %76 {strides = array<i32>} : memref<1x8x64xf32, #tpu.memory_space<vmem>>, vector<1x8x64xf32>,
    %77 = tpu.concatenate %36, %46, %56, %66 in 1 : vector<8x24xf32>, vector<8x24xf32>, vector<8x24xf32>, vector<8x24xf32> -> vector<8x96xf32>
    %c0_38 = arith.constant 0 : index
    %c0_39 = arith.constant 0 : index
    %c0_40 = arith.constant 0 : index
    %78 = vector.load %arg10[%c0_38, %c0_39, %c0_40] : memref<1x8x96xf32, #tpu.memory_space<vmem>>, vector<1x8x96xf32>
    %79 = vector.shape_cast %78 : vector<1x8x96xf32> to vector<8x96xf32>
    %80 = vector.shape_cast %77 : vector<8x96xf32> to vector<1x8x96xf32>
    tpu.vector_store %arg10[%c0_38, %c0_39, %c0_40], %80 {strides = array<i32>} : memref<1x8x96xf32, #tpu.memory_space<vmem>>, vector<1x8x96xf32>,
    %81 = tpu.concatenate %42, %52, %62, %72 in 1 : vector<8x4xf32>, vector<8x4xf32>, vector<8x4xf32>, vector<8x4xf32> -> vector<8x16xf32>
    %c0_41 = arith.constant 0 : index
    %c0_42 = arith.constant 0 : index
    %c0_43 = arith.constant 0 : index
    %82 = vector.load %arg11[%c0_41, %c0_42, %c0_43] : memref<1x8x16xf32, #tpu.memory_space<vmem>>, vector<1x8x16xf32>
    %83 = vector.shape_cast %82 : vector<1x8x16xf32> to vector<8x16xf32>
    %84 = vector.shape_cast %81 : vector<8x16xf32> to vector<1x8x16xf32>
    tpu.vector_store %arg11[%c0_41, %c0_42, %c0_43], %84 {strides = array<i32>} : memref<1x8x16xf32, #tpu.memory_space<vmem>>, vector<1x8x16xf32>,
    return
  }
  func.func @transform_0(%arg0: i32, %arg1: i32) -> (i32, i32, i32, i32) {
    %c0_i32 = arith.constant 0 : i32
    %c0_i32_0 = arith.constant 0 : i32
    %c0_i32_1 = arith.constant 0 : i32
    return %arg0, %c0_i32, %arg1, %c0_i32_0 : i32, i32, i32, i32
  }
  func.func @transform_1(%arg0: i32, %arg1: i32) -> (i32, i32, i32, i32) {
    %c0_i32 = arith.constant 0 : i32
    %c0_i32_0 = arith.constant 0 : i32
    %c0_i32_1 = arith.constant 0 : i32
    %c0_i32_2 = arith.constant 0 : i32
    return %arg0, %c0_i32, %c0_i32_0, %c0_i32_1 : i32, i32, i32, i32
  }
  func.func @transform_2(%arg0: i32, %arg1: i32) -> (i32, i32, i32, i32) {
    %c0_i32 = arith.constant 0 : i32
    %c0_i32_0 = arith.constant 0 : i32
    %c0_i32_1 = arith.constant 0 : i32
    %c0_i32_2 = arith.constant 0 : i32
    return %arg0, %c0_i32, %c0_i32_0, %c0_i32_1 : i32, i32, i32, i32
  }
  func.func @transform_3(%arg0: i32, %arg1: i32) -> (i32, i32, i32, i32) {
    %c0_i32 = arith.constant 0 : i32
    %c0_i32_0 = arith.constant 0 : i32
    %c0_i32_1 = arith.constant 0 : i32
    %c0_i32_2 = arith.constant 0 : i32
    return %arg0, %c0_i32, %c0_i32_0, %c0_i32_1 : i32, i32, i32, i32
  }
  func.func @transform_4(%arg0: i32, %arg1: i32) -> (i32, i32, i32, i32) {
    %c0_i32 = arith.constant 0 : i32
    %c0_i32_0 = arith.constant 0 : i32
    %c0_i32_1 = arith.constant 0 : i32
    return %arg0, %c0_i32, %arg1, %c0_i32_0 : i32, i32, i32, i32
  }
  func.func @transform_5(%arg0: i32, %arg1: i32) -> (i32, i32, i32, i32) {
    %c0_i32 = arith.constant 0 : i32
    %c0_i32_0 = arith.constant 0 : i32
    %c0_i32_1 = arith.constant 0 : i32
    return %arg0, %arg1, %c0_i32, %c0_i32_0 : i32, i32, i32, i32
  }
  func.func @transform_6(%arg0: i32, %arg1: i32) -> (i32, i32, i32) {
    %c0_i32 = arith.constant 0 : i32
    %c0_i32_0 = arith.constant 0 : i32
    return %arg0, %arg1, %c0_i32 : i32, i32, i32
  }
  func.func @transform_7(%arg0: i32, %arg1: i32) -> (i32, i32, i32) {
    %c0_i32 = arith.constant 0 : i32
    %c0_i32_0 = arith.constant 0 : i32
    return %arg0, %arg1, %c0_i32 : i32, i32, i32
  }
  func.func @transform_8(%arg0: i32, %arg1: i32) -> (i32, i32, i32) {
    %c0_i32 = arith.constant 0 : i32
    %c0_i32_0 = arith.constant 0 : i32
    return %arg0, %arg1, %c0_i32 : i32, i32, i32
  }
  func.func @transform_9(%arg0: i32, %arg1: i32) -> (i32, i32, i32) {
    %c0_i32 = arith.constant 0 : i32
    %c0_i32_0 = arith.constant 0 : i32
    return %arg0, %arg1, %c0_i32 : i32, i32, i32
  }
}

module attributes {stable_mosaic.version = 11 : i64} {
  func.func @kernel(%arg0: i32, %arg1: memref<16x48xf32, #tpu.memory_space<vmem>>, %arg2: memref<48x144xf32, #tpu.memory_space<vmem>>, %arg3: memref<1x144xf32, #tpu.memory_space<vmem>>, %arg4: memref<16x144xf32, #tpu.memory_space<vmem>>) attributes {dimension_semantics = [#tpu.dimension_semantics<parallel>], iteration_bounds = array<i64: 1>, scalar_prefetch = 0 : i64, scratch_operands = 0 : i64, tpu.core_type = #tpu.core_type<tc>, window_params = [{transform_indices = @transform_0, window_bounds = array<i64: 16, 48>}, {pipeline_mode = #tpu.pipeline_mode<synchronous>, transform_indices = @transform_1, window_bounds = array<i64: 48, 144>}, {pipeline_mode = #tpu.pipeline_mode<synchronous>, transform_indices = @transform_2, window_bounds = array<i64: 1, 144>}, {transform_indices = @transform_3, window_bounds = array<i64: 16, 144>}]} {
    %c0 = arith.constant 0 : index
    %c0_0 = arith.constant 0 : index
    %0 = vector.load %arg1[%c0, %c0_0] : memref<16x48xf32, #tpu.memory_space<vmem>>, vector<16x48xf32>
    %c0_1 = arith.constant 0 : index
    %c0_2 = arith.constant 0 : index
    %1 = vector.load %arg2[%c0_1, %c0_2] : memref<48x144xf32, #tpu.memory_space<vmem>>, vector<48x144xf32>
    %cst = arith.constant dense<0.000000e+00> : vector<16x144xf32>
    %2 = tpu.matmul %0, %1, %cst {dimension_numbers = #tpu.dot_dimension_numbers<[1], [0], [0], [1], [0, 0, 1, 1], [], []>} : vector<16x48xf32>, vector<48x144xf32>, vector<16x144xf32> -> vector<16x144xf32>
    %c0_3 = arith.constant 0 : index
    %c0_4 = arith.constant 0 : index
    %3 = vector.load %arg3[%c0_3, %c0_4] : memref<1x144xf32, #tpu.memory_space<vmem>>, vector<1x144xf32>
    %4 = vector.broadcast %3 : vector<1x144xf32> to vector<16x144xf32>
    %5 = arith.addf %2, %4 : vector<16x144xf32>
    %c0_5 = arith.constant 0 : index
    %c0_6 = arith.constant 0 : index
    %6 = vector.load %arg4[%c0_5, %c0_6] : memref<16x144xf32, #tpu.memory_space<vmem>>, vector<16x144xf32>
    tpu.vector_store %arg4[%c0_5, %c0_6], %5 {strides = array<i32>} : memref<16x144xf32, #tpu.memory_space<vmem>>, vector<16x144xf32>,
    return
  }
  func.func @transform_0(%arg0: i32) -> (i32, i32) {
    %c0_i32 = arith.constant 0 : i32
    %c0_i32_0 = arith.constant 0 : i32
    return %arg0, %c0_i32 : i32, i32
  }
  func.func @transform_1(%arg0: i32) -> (i32, i32) {
    %c0_i32 = arith.constant 0 : i32
    %c0_i32_0 = arith.constant 0 : i32
    %c0_i32_1 = arith.constant 0 : i32
    return %c0_i32, %c0_i32_0 : i32, i32
  }
  func.func @transform_2(%arg0: i32) -> (i32, i32) {
    %c0_i32 = arith.constant 0 : i32
    %c0_i32_0 = arith.constant 0 : i32
    %c0_i32_1 = arith.constant 0 : i32
    return %c0_i32, %c0_i32_0 : i32, i32
  }
  func.func @transform_3(%arg0: i32) -> (i32, i32) {
    %c0_i32 = arith.constant 0 : i32
    %c0_i32_0 = arith.constant 0 : i32
    return %arg0, %c0_i32 : i32, i32
  }
}

module attributes {stable_mosaic.version = 11 : i64} {
  func.func @kernel(%arg0: i32, %arg1: memref<16x32xf32, #tpu.memory_space<vmem>>, %arg2: memref<16x32xf32, #tpu.memory_space<vmem>>, %arg3: memref<1x32xf32, #tpu.memory_space<vmem>>, %arg4: memref<1x32xf32, #tpu.memory_space<vmem>>, %arg5: memref<16x32xf32, #tpu.memory_space<vmem>>) attributes {dimension_semantics = [#tpu.dimension_semantics<parallel>], iteration_bounds = array<i64: 1>, scalar_prefetch = 0 : i64, scratch_operands = 0 : i64, tpu.core_type = #tpu.core_type<tc>, window_params = [{transform_indices = @transform_0, window_bounds = array<i64: 16, 32>}, {transform_indices = @transform_1, window_bounds = array<i64: 16, 32>}, {pipeline_mode = #tpu.pipeline_mode<synchronous>, transform_indices = @transform_2, window_bounds = array<i64: 1, 32>}, {pipeline_mode = #tpu.pipeline_mode<synchronous>, transform_indices = @transform_3, window_bounds = array<i64: 1, 32>}, {transform_indices = @transform_4, window_bounds = array<i64: 16, 32>}]} {
    %c0 = arith.constant 0 : index
    %c0_0 = arith.constant 0 : index
    %0 = vector.load %arg1[%c0, %c0_0] : memref<16x32xf32, #tpu.memory_space<vmem>>, vector<16x32xf32>
    %c0_1 = arith.constant 0 : index
    %c0_2 = arith.constant 0 : index
    %1 = vector.load %arg2[%c0_1, %c0_2] : memref<16x32xf32, #tpu.memory_space<vmem>>, vector<16x32xf32>
    %2 = arith.addf %0, %1 : vector<16x32xf32>
    %cst = arith.constant dense<0.000000e+00> : vector<16xf32>
    %3 = vector.multi_reduction <add>, %2, %cst [1] : vector<16x32xf32> to vector<16xf32>
    %4 = vector.shape_cast %3 : vector<16xf32> to vector<16x1xf32>
    %cst_3 = arith.constant 3.200000e+01 : f32
    %5 = vector.broadcast %cst_3 : f32 to vector<16x1xf32>
    %6 = arith.divf %4, %5 : vector<16x1xf32>
    %7 = vector.broadcast %6 : vector<16x1xf32> to vector<16x32xf32>
    %8 = arith.subf %2, %7 : vector<16x32xf32>
    %9 = arith.mulf %8, %8 : vector<16x32xf32>
    %cst_4 = arith.constant dense<0.000000e+00> : vector<16xf32>
    %10 = vector.multi_reduction <add>, %9, %cst_4 [1] : vector<16x32xf32> to vector<16xf32>
    %11 = vector.shape_cast %10 : vector<16xf32> to vector<16x1xf32>
    %cst_5 = arith.constant 3.200000e+01 : f32
    %12 = vector.broadcast %cst_5 : f32 to vector<16x1xf32>
    %13 = arith.divf %11, %12 : vector<16x1xf32>
    %14 = vector.broadcast %6 : vector<16x1xf32> to vector<16x32xf32>
    %15 = arith.subf %2, %14 : vector<16x32xf32>
    %cst_6 = arith.constant 9.99999974E-6 : f32
    %16 = vector.broadcast %cst_6 : f32 to vector<16x1xf32>
    %17 = arith.addf %13, %16 : vector<16x1xf32>
    %18 = math.rsqrt %17 : vector<16x1xf32>
    %19 = vector.broadcast %18 : vector<16x1xf32> to vector<16x32xf32>
    %20 = arith.mulf %15, %19 : vector<16x32xf32>
    %c0_7 = arith.constant 0 : index
    %c0_8 = arith.constant 0 : index
    %21 = vector.load %arg3[%c0_7, %c0_8] : memref<1x32xf32, #tpu.memory_space<vmem>>, vector<1x32xf32>
    %22 = vector.broadcast %21 : vector<1x32xf32> to vector<16x32xf32>
    %23 = arith.mulf %20, %22 : vector<16x32xf32>
    %c0_9 = arith.constant 0 : index
    %c0_10 = arith.constant 0 : index
    %24 = vector.load %arg4[%c0_9, %c0_10] : memref<1x32xf32, #tpu.memory_space<vmem>>, vector<1x32xf32>
    %25 = vector.broadcast %24 : vector<1x32xf32> to vector<16x32xf32>
    %26 = arith.addf %23, %25 : vector<16x32xf32>
    %c0_11 = arith.constant 0 : index
    %c0_12 = arith.constant 0 : index
    %27 = vector.load %arg5[%c0_11, %c0_12] : memref<16x32xf32, #tpu.memory_space<vmem>>, vector<16x32xf32>
    tpu.vector_store %arg5[%c0_11, %c0_12], %26 {strides = array<i32>} : memref<16x32xf32, #tpu.memory_space<vmem>>, vector<16x32xf32>,
    return
  }
  func.func @transform_0(%arg0: i32) -> (i32, i32) {
    %c0_i32 = arith.constant 0 : i32
    %c0_i32_0 = arith.constant 0 : i32
    return %arg0, %c0_i32 : i32, i32
  }
  func.func @transform_1(%arg0: i32) -> (i32, i32) {
    %c0_i32 = arith.constant 0 : i32
    %c0_i32_0 = arith.constant 0 : i32
    return %arg0, %c0_i32 : i32, i32
  }
  func.func @transform_2(%arg0: i32) -> (i32, i32) {
    %c0_i32 = arith.constant 0 : i32
    %c0_i32_0 = arith.constant 0 : i32
    %c0_i32_1 = arith.constant 0 : i32
    return %c0_i32, %c0_i32_0 : i32, i32
  }
  func.func @transform_3(%arg0: i32) -> (i32, i32) {
    %c0_i32 = arith.constant 0 : i32
    %c0_i32_0 = arith.constant 0 : i32
    %c0_i32_1 = arith.constant 0 : i32
    return %c0_i32, %c0_i32_0 : i32, i32
  }
  func.func @transform_4(%arg0: i32) -> (i32, i32) {
    %c0_i32 = arith.constant 0 : i32
    %c0_i32_0 = arith.constant 0 : i32
    return %arg0, %c0_i32 : i32, i32
  }
}

module attributes {stable_mosaic.version = 11 : i64} {
  func.func @kernel(%arg0: i32, %arg1: memref<16x208xf32, #tpu.memory_space<vmem>>, %arg2: memref<208x32xf32, #tpu.memory_space<vmem>>, %arg3: memref<1x32xf32, #tpu.memory_space<vmem>>, %arg4: memref<16x32xf32, #tpu.memory_space<vmem>>) attributes {dimension_semantics = [#tpu.dimension_semantics<parallel>], iteration_bounds = array<i64: 1>, scalar_prefetch = 0 : i64, scratch_operands = 0 : i64, tpu.core_type = #tpu.core_type<tc>, window_params = [{transform_indices = @transform_0, window_bounds = array<i64: 16, 208>}, {pipeline_mode = #tpu.pipeline_mode<synchronous>, transform_indices = @transform_1, window_bounds = array<i64: 208, 32>}, {pipeline_mode = #tpu.pipeline_mode<synchronous>, transform_indices = @transform_2, window_bounds = array<i64: 1, 32>}, {transform_indices = @transform_3, window_bounds = array<i64: 16, 32>}]} {
    %c0 = arith.constant 0 : index
    %c0_0 = arith.constant 0 : index
    %0 = vector.load %arg1[%c0, %c0_0] : memref<16x208xf32, #tpu.memory_space<vmem>>, vector<16x208xf32>
    %c0_1 = arith.constant 0 : index
    %c0_2 = arith.constant 0 : index
    %1 = vector.load %arg2[%c0_1, %c0_2] : memref<208x32xf32, #tpu.memory_space<vmem>>, vector<208x32xf32>
    %cst = arith.constant dense<0.000000e+00> : vector<16x32xf32>
    %2 = tpu.matmul %0, %1, %cst {dimension_numbers = #tpu.dot_dimension_numbers<[1], [0], [0], [1], [0, 0, 1, 1], [], []>} : vector<16x208xf32>, vector<208x32xf32>, vector<16x32xf32> -> vector<16x32xf32>
    %c0_3 = arith.constant 0 : index
    %c0_4 = arith.constant 0 : index
    %3 = vector.load %arg3[%c0_3, %c0_4] : memref<1x32xf32, #tpu.memory_space<vmem>>, vector<1x32xf32>
    %4 = vector.broadcast %3 : vector<1x32xf32> to vector<16x32xf32>
    %5 = arith.addf %2, %4 : vector<16x32xf32>
    %c0_5 = arith.constant 0 : index
    %c0_6 = arith.constant 0 : index
    %6 = vector.load %arg4[%c0_5, %c0_6] : memref<16x32xf32, #tpu.memory_space<vmem>>, vector<16x32xf32>
    tpu.vector_store %arg4[%c0_5, %c0_6], %5 {strides = array<i32>} : memref<16x32xf32, #tpu.memory_space<vmem>>, vector<16x32xf32>,
    return
  }
  func.func @transform_0(%arg0: i32) -> (i32, i32) {
    %c0_i32 = arith.constant 0 : i32
    %c0_i32_0 = arith.constant 0 : i32
    return %arg0, %c0_i32 : i32, i32
  }
  func.func @transform_1(%arg0: i32) -> (i32, i32) {
    %c0_i32 = arith.constant 0 : i32
    %c0_i32_0 = arith.constant 0 : i32
    %c0_i32_1 = arith.constant 0 : i32
    return %c0_i32, %c0_i32_0 : i32, i32
  }
  func.func @transform_2(%arg0: i32) -> (i32, i32) {
    %c0_i32 = arith.constant 0 : i32
    %c0_i32_0 = arith.constant 0 : i32
    %c0_i32_1 = arith.constant 0 : i32
    return %c0_i32, %c0_i32_0 : i32, i32
  }
  func.func @transform_3(%arg0: i32) -> (i32, i32) {
    %c0_i32 = arith.constant 0 : i32
    %c0_i32_0 = arith.constant 0 : i32
    return %arg0, %c0_i32 : i32, i32
  }
}

module attributes {stable_mosaic.version = 11 : i64} {
  func.func @kernel(%arg0: i32, %arg1: memref<16x48xf32, #tpu.memory_space<vmem>>, %arg2: memref<48x48xf32, #tpu.memory_space<vmem>>, %arg3: memref<1x48xf32, #tpu.memory_space<vmem>>, %arg4: memref<48x48xf32, #tpu.memory_space<vmem>>, %arg5: memref<1x48xf32, #tpu.memory_space<vmem>>, %arg6: memref<1x48xf32, #tpu.memory_space<vmem>>, %arg7: memref<1x48xf32, #tpu.memory_space<vmem>>, %arg8: memref<16x48xf32, #tpu.memory_space<vmem>>) attributes {dimension_semantics = [#tpu.dimension_semantics<parallel>], iteration_bounds = array<i64: 1>, scalar_prefetch = 0 : i64, scratch_operands = 0 : i64, tpu.core_type = #tpu.core_type<tc>, window_params = [{transform_indices = @transform_0, window_bounds = array<i64: 16, 48>}, {pipeline_mode = #tpu.pipeline_mode<synchronous>, transform_indices = @transform_1, window_bounds = array<i64: 48, 48>}, {pipeline_mode = #tpu.pipeline_mode<synchronous>, transform_indices = @transform_2, window_bounds = array<i64: 1, 48>}, {pipeline_mode = #tpu.pipeline_mode<synchronous>, transform_indices = @transform_3, window_bounds = array<i64: 48, 48>}, {pipeline_mode = #tpu.pipeline_mode<synchronous>, transform_indices = @transform_4, window_bounds = array<i64: 1, 48>}, {pipeline_mode = #tpu.pipeline_mode<synchronous>, transform_indices = @transform_5, window_bounds = array<i64: 1, 48>}, {pipeline_mode = #tpu.pipeline_mode<synchronous>, transform_indices = @transform_6, window_bounds = array<i64: 1, 48>}, {transform_indices = @transform_7, window_bounds = array<i64: 16, 48>}]} {
    %c0 = arith.constant 0 : index
    %c0_0 = arith.constant 0 : index
    %0 = vector.load %arg1[%c0, %c0_0] : memref<16x48xf32, #tpu.memory_space<vmem>>, vector<16x48xf32>
    %c0_1 = arith.constant 0 : index
    %c0_2 = arith.constant 0 : index
    %1 = vector.load %arg2[%c0_1, %c0_2] : memref<48x48xf32, #tpu.memory_space<vmem>>, vector<48x48xf32>
    %cst = arith.constant dense<0.000000e+00> : vector<16x48xf32>
    %2 = tpu.matmul %0, %1, %cst {dimension_numbers = #tpu.dot_dimension_numbers<[1], [0], [0], [1], [0, 0, 1, 1], [], []>} : vector<16x48xf32>, vector<48x48xf32>, vector<16x48xf32> -> vector<16x48xf32>
    %c0_3 = arith.constant 0 : index
    %c0_4 = arith.constant 0 : index
    %3 = vector.load %arg3[%c0_3, %c0_4] : memref<1x48xf32, #tpu.memory_space<vmem>>, vector<1x48xf32>
    %4 = vector.broadcast %3 : vector<1x48xf32> to vector<16x48xf32>
    %5 = arith.addf %2, %4 : vector<16x48xf32>
    %cst_5 = arith.constant 0.000000e+00 : f32
    %6 = vector.broadcast %cst_5 : f32 to vector<16x48xf32>
    %7 = arith.maximumf %5, %6 : vector<16x48xf32>
    %c0_6 = arith.constant 0 : index
    %c0_7 = arith.constant 0 : index
    %8 = vector.load %arg4[%c0_6, %c0_7] : memref<48x48xf32, #tpu.memory_space<vmem>>, vector<48x48xf32>
    %cst_8 = arith.constant dense<0.000000e+00> : vector<16x48xf32>
    %9 = tpu.matmul %7, %8, %cst_8 {dimension_numbers = #tpu.dot_dimension_numbers<[1], [0], [0], [1], [0, 0, 1, 1], [], []>} : vector<16x48xf32>, vector<48x48xf32>, vector<16x48xf32> -> vector<16x48xf32>
    %10 = arith.addf %0, %9 : vector<16x48xf32>
    %c0_9 = arith.constant 0 : index
    %c0_10 = arith.constant 0 : index
    %11 = vector.load %arg5[%c0_9, %c0_10] : memref<1x48xf32, #tpu.memory_space<vmem>>, vector<1x48xf32>
    %12 = vector.broadcast %11 : vector<1x48xf32> to vector<16x48xf32>
    %13 = arith.addf %10, %12 : vector<16x48xf32>
    %cst_11 = arith.constant dense<0.000000e+00> : vector<16xf32>
    %14 = vector.multi_reduction <add>, %13, %cst_11 [1] : vector<16x48xf32> to vector<16xf32>
    %15 = vector.shape_cast %14 : vector<16xf32> to vector<16x1xf32>
    %cst_12 = arith.constant 4.800000e+01 : f32
    %16 = vector.broadcast %cst_12 : f32 to vector<16x1xf32>
    %17 = arith.divf %15, %16 : vector<16x1xf32>
    %18 = vector.broadcast %17 : vector<16x1xf32> to vector<16x48xf32>
    %19 = arith.subf %13, %18 : vector<16x48xf32>
    %20 = arith.mulf %19, %19 : vector<16x48xf32>
    %cst_13 = arith.constant dense<0.000000e+00> : vector<16xf32>
    %21 = vector.multi_reduction <add>, %20, %cst_13 [1] : vector<16x48xf32> to vector<16xf32>
    %22 = vector.shape_cast %21 : vector<16xf32> to vector<16x1xf32>
    %cst_14 = arith.constant 4.800000e+01 : f32
    %23 = vector.broadcast %cst_14 : f32 to vector<16x1xf32>
    %24 = arith.divf %22, %23 : vector<16x1xf32>
    %25 = vector.broadcast %17 : vector<16x1xf32> to vector<16x48xf32>
    %26 = arith.subf %13, %25 : vector<16x48xf32>
    %cst_15 = arith.constant 9.99999974E-6 : f32
    %27 = vector.broadcast %cst_15 : f32 to vector<16x1xf32>
    %28 = arith.addf %24, %27 : vector<16x1xf32>
    %29 = math.rsqrt %28 : vector<16x1xf32>
    %30 = vector.broadcast %29 : vector<16x1xf32> to vector<16x48xf32>
    %31 = arith.mulf %26, %30 : vector<16x48xf32>
    %c0_16 = arith.constant 0 : index
    %c0_17 = arith.constant 0 : index
    %32 = vector.load %arg6[%c0_16, %c0_17] : memref<1x48xf32, #tpu.memory_space<vmem>>, vector<1x48xf32>
    %33 = vector.broadcast %32 : vector<1x48xf32> to vector<16x48xf32>
    %34 = arith.mulf %31, %33 : vector<16x48xf32>
    %c0_18 = arith.constant 0 : index
    %c0_19 = arith.constant 0 : index
    %35 = vector.load %arg7[%c0_18, %c0_19] : memref<1x48xf32, #tpu.memory_space<vmem>>, vector<1x48xf32>
    %36 = vector.broadcast %35 : vector<1x48xf32> to vector<16x48xf32>
    %37 = arith.addf %34, %36 : vector<16x48xf32>
    %c0_20 = arith.constant 0 : index
    %c0_21 = arith.constant 0 : index
    %38 = vector.load %arg8[%c0_20, %c0_21] : memref<16x48xf32, #tpu.memory_space<vmem>>, vector<16x48xf32>
    tpu.vector_store %arg8[%c0_20, %c0_21], %37 {strides = array<i32>} : memref<16x48xf32, #tpu.memory_space<vmem>>, vector<16x48xf32>,
    return
  }
  func.func @transform_0(%arg0: i32) -> (i32, i32) {
    %c0_i32 = arith.constant 0 : i32
    %c0_i32_0 = arith.constant 0 : i32
    return %arg0, %c0_i32 : i32, i32
  }
  func.func @transform_1(%arg0: i32) -> (i32, i32) {
    %c0_i32 = arith.constant 0 : i32
    %c0_i32_0 = arith.constant 0 : i32
    %c0_i32_1 = arith.constant 0 : i32
    return %c0_i32, %c0_i32_0 : i32, i32
  }
  func.func @transform_2(%arg0: i32) -> (i32, i32) {
    %c0_i32 = arith.constant 0 : i32
    %c0_i32_0 = arith.constant 0 : i32
    %c0_i32_1 = arith.constant 0 : i32
    return %c0_i32, %c0_i32_0 : i32, i32
  }
  func.func @transform_3(%arg0: i32) -> (i32, i32) {
    %c0_i32 = arith.constant 0 : i32
    %c0_i32_0 = arith.constant 0 : i32
    %c0_i32_1 = arith.constant 0 : i32
    return %c0_i32, %c0_i32_0 : i32, i32
  }
  func.func @transform_4(%arg0: i32) -> (i32, i32) {
    %c0_i32 = arith.constant 0 : i32
    %c0_i32_0 = arith.constant 0 : i32
    %c0_i32_1 = arith.constant 0 : i32
    return %c0_i32, %c0_i32_0 : i32, i32
  }
  func.func @transform_5(%arg0: i32) -> (i32, i32) {
    %c0_i32 = arith.constant 0 : i32
    %c0_i32_0 = arith.constant 0 : i32
    %c0_i32_1 = arith.constant 0 : i32
    return %c0_i32, %c0_i32_0 : i32, i32
  }
  func.func @transform_6(%arg0: i32) -> (i32, i32) {
    %c0_i32 = arith.constant 0 : i32
    %c0_i32_0 = arith.constant 0 : i32
    %c0_i32_1 = arith.constant 0 : i32
    return %c0_i32, %c0_i32_0 : i32, i32
  }
  func.func @transform_7(%arg0: i32) -> (i32, i32) {
    %c0_i32 = arith.constant 0 : i32
    %c0_i32_0 = arith.constant 0 : i32
    return %arg0, %c0_i32 : i32, i32
  }
}

module attributes {stable_mosaic.version = 11 : i64} {
  func.func @kernel(%arg0: i32, %arg1: memref<16x48xf32, #tpu.memory_space<vmem>>, %arg2: memref<48x48xf32, #tpu.memory_space<vmem>>, %arg3: memref<1x48xf32, #tpu.memory_space<vmem>>, %arg4: memref<16x48xf32, #tpu.memory_space<vmem>>, %arg5: memref<1x48xf32, #tpu.memory_space<vmem>>, %arg6: memref<1x48xf32, #tpu.memory_space<vmem>>, %arg7: memref<16x48xf32, #tpu.memory_space<vmem>>) attributes {dimension_semantics = [#tpu.dimension_semantics<parallel>], iteration_bounds = array<i64: 1>, scalar_prefetch = 0 : i64, scratch_operands = 0 : i64, tpu.core_type = #tpu.core_type<tc>, window_params = [{transform_indices = @transform_0, window_bounds = array<i64: 16, 48>}, {pipeline_mode = #tpu.pipeline_mode<synchronous>, transform_indices = @transform_1, window_bounds = array<i64: 48, 48>}, {pipeline_mode = #tpu.pipeline_mode<synchronous>, transform_indices = @transform_2, window_bounds = array<i64: 1, 48>}, {transform_indices = @transform_3, window_bounds = array<i64: 16, 48>}, {pipeline_mode = #tpu.pipeline_mode<synchronous>, transform_indices = @transform_4, window_bounds = array<i64: 1, 48>}, {pipeline_mode = #tpu.pipeline_mode<synchronous>, transform_indices = @transform_5, window_bounds = array<i64: 1, 48>}, {transform_indices = @transform_6, window_bounds = array<i64: 16, 48>}]} {
    %c0 = arith.constant 0 : index
    %c0_0 = arith.constant 0 : index
    %0 = vector.load %arg1[%c0, %c0_0] : memref<16x48xf32, #tpu.memory_space<vmem>>, vector<16x48xf32>
    %c0_1 = arith.constant 0 : index
    %c0_2 = arith.constant 0 : index
    %1 = vector.load %arg2[%c0_1, %c0_2] : memref<48x48xf32, #tpu.memory_space<vmem>>, vector<48x48xf32>
    %cst = arith.constant dense<0.000000e+00> : vector<16x48xf32>
    %2 = tpu.matmul %0, %1, %cst {dimension_numbers = #tpu.dot_dimension_numbers<[1], [0], [0], [1], [0, 0, 1, 1], [], []>} : vector<16x48xf32>, vector<48x48xf32>, vector<16x48xf32> -> vector<16x48xf32>
    %c0_3 = arith.constant 0 : index
    %c0_4 = arith.constant 0 : index
    %3 = vector.load %arg3[%c0_3, %c0_4] : memref<1x48xf32, #tpu.memory_space<vmem>>, vector<1x48xf32>
    %4 = vector.broadcast %3 : vector<1x48xf32> to vector<16x48xf32>
    %5 = arith.addf %2, %4 : vector<16x48xf32>
    %c0_5 = arith.constant 0 : index
    %c0_6 = arith.constant 0 : index
    %6 = vector.load %arg4[%c0_5, %c0_6] : memref<16x48xf32, #tpu.memory_space<vmem>>, vector<16x48xf32>
    %7 = arith.addf %5, %6 : vector<16x48xf32>
    %cst_7 = arith.constant dense<0.000000e+00> : vector<16xf32>
    %8 = vector.multi_reduction <add>, %7, %cst_7 [1] : vector<16x48xf32> to vector<16xf32>
    %9 = vector.shape_cast %8 : vector<16xf32> to vector<16x1xf32>
    %cst_8 = arith.constant 4.800000e+01 : f32
    %10 = vector.broadcast %cst_8 : f32 to vector<16x1xf32>
    %11 = arith.divf %9, %10 : vector<16x1xf32>
    %12 = vector.broadcast %11 : vector<16x1xf32> to vector<16x48xf32>
    %13 = arith.subf %7, %12 : vector<16x48xf32>
    %14 = arith.mulf %13, %13 : vector<16x48xf32>
    %cst_9 = arith.constant dense<0.000000e+00> : vector<16xf32>
    %15 = vector.multi_reduction <add>, %14, %cst_9 [1] : vector<16x48xf32> to vector<16xf32>
    %16 = vector.shape_cast %15 : vector<16xf32> to vector<16x1xf32>
    %cst_10 = arith.constant 4.800000e+01 : f32
    %17 = vector.broadcast %cst_10 : f32 to vector<16x1xf32>
    %18 = arith.divf %16, %17 : vector<16x1xf32>
    %19 = vector.broadcast %11 : vector<16x1xf32> to vector<16x48xf32>
    %20 = arith.subf %7, %19 : vector<16x48xf32>
    %cst_11 = arith.constant 9.99999974E-6 : f32
    %21 = vector.broadcast %cst_11 : f32 to vector<16x1xf32>
    %22 = arith.addf %18, %21 : vector<16x1xf32>
    %23 = math.rsqrt %22 : vector<16x1xf32>
    %24 = vector.broadcast %23 : vector<16x1xf32> to vector<16x48xf32>
    %25 = arith.mulf %20, %24 : vector<16x48xf32>
    %c0_12 = arith.constant 0 : index
    %c0_13 = arith.constant 0 : index
    %26 = vector.load %arg5[%c0_12, %c0_13] : memref<1x48xf32, #tpu.memory_space<vmem>>, vector<1x48xf32>
    %27 = vector.broadcast %26 : vector<1x48xf32> to vector<16x48xf32>
    %28 = arith.mulf %25, %27 : vector<16x48xf32>
    %c0_14 = arith.constant 0 : index
    %c0_15 = arith.constant 0 : index
    %29 = vector.load %arg6[%c0_14, %c0_15] : memref<1x48xf32, #tpu.memory_space<vmem>>, vector<1x48xf32>
    %30 = vector.broadcast %29 : vector<1x48xf32> to vector<16x48xf32>
    %31 = arith.addf %28, %30 : vector<16x48xf32>
    %c0_16 = arith.constant 0 : index
    %c0_17 = arith.constant 0 : index
    %32 = vector.load %arg7[%c0_16, %c0_17] : memref<16x48xf32, #tpu.memory_space<vmem>>, vector<16x48xf32>
    tpu.vector_store %arg7[%c0_16, %c0_17], %31 {strides = array<i32>} : memref<16x48xf32, #tpu.memory_space<vmem>>, vector<16x48xf32>,
    return
  }
  func.func @transform_0(%arg0: i32) -> (i32, i32) {
    %c0_i32 = arith.constant 0 : i32
    %c0_i32_0 = arith.constant 0 : i32
    return %arg0, %c0_i32 : i32, i32
  }
  func.func @transform_1(%arg0: i32) -> (i32, i32) {
    %c0_i32 = arith.constant 0 : i32
    %c0_i32_0 = arith.constant 0 : i32
    %c0_i32_1 = arith.constant 0 : i32
    return %c0_i32, %c0_i32_0 : i32, i32
  }
  func.func @transform_2(%arg0: i32) -> (i32, i32) {
    %c0_i32 = arith.constant 0 : i32
    %c0_i32_0 = arith.constant 0 : i32
    %c0_i32_1 = arith.constant 0 : i32
    return %c0_i32, %c0_i32_0 : i32, i32
  }
  func.func @transform_3(%arg0: i32) -> (i32, i32) {
    %c0_i32 = arith.constant 0 : i32
    %c0_i32_0 = arith.constant 0 : i32
    return %arg0, %c0_i32 : i32, i32
  }
  func.func @transform_4(%arg0: i32) -> (i32, i32) {
    %c0_i32 = arith.constant 0 : i32
    %c0_i32_0 = arith.constant 0 : i32
    %c0_i32_1 = arith.constant 0 : i32
    return %c0_i32, %c0_i32_0 : i32, i32
  }
  func.func @transform_5(%arg0: i32) -> (i32, i32) {
    %c0_i32 = arith.constant 0 : i32
    %c0_i32_0 = arith.constant 0 : i32
    %c0_i32_1 = arith.constant 0 : i32
    return %c0_i32, %c0_i32_0 : i32, i32
  }
  func.func @transform_6(%arg0: i32) -> (i32, i32) {
    %c0_i32 = arith.constant 0 : i32
    %c0_i32_0 = arith.constant 0 : i32
    return %arg0, %c0_i32 : i32, i32
  }
}

module attributes {stable_mosaic.version = 11 : i64} {
  func.func @kernel(%arg0: i32, %arg1: i32, %arg2: memref<1x4x8x12xf32, #tpu.memory_space<vmem>>, %arg3: memref<1x4x8x12xf32, #tpu.memory_space<vmem>>, %arg4: memref<1x4x8x12xf32, #tpu.memory_space<vmem>>, %arg5: memref<1x1x8xf32, #tpu.memory_space<vmem>>, %arg6: memref<1x8x48xf32, #tpu.memory_space<vmem>>) attributes {dimension_semantics = [#tpu.dimension_semantics<parallel>, #tpu.dimension_semantics<parallel>], iteration_bounds = array<i64: 2, 1>, scalar_prefetch = 0 : i64, scratch_operands = 0 : i64, tpu.core_type = #tpu.core_type<tc>, window_params = [{transform_indices = @transform_0, window_bounds = array<i64: 1, 4, 8, 12>}, {transform_indices = @transform_1, window_bounds = array<i64: 1, 4, 8, 12>}, {transform_indices = @transform_2, window_bounds = array<i64: 1, 4, 8, 12>}, {transform_indices = @transform_3, window_bounds = array<i64: 1, 1, 8>}, {transform_indices = @transform_4, window_bounds = array<i64: 1, 8, 48>}]} {
    %c0 = arith.constant 0 : index
    %c0_0 = arith.constant 0 : index
    %c0_1 = arith.constant 0 : index
    %c0_2 = arith.constant 0 : index
    %0 = vector.load %arg2[%c0, %c0_0, %c0_1, %c0_2] : memref<1x4x8x12xf32, #tpu.memory_space<vmem>>, vector<1x4x8x12xf32>
    %1 = vector.shape_cast %0 : vector<1x4x8x12xf32> to vector<4x8x12xf32>
    %c0_3 = arith.constant 0 : index
    %c0_4 = arith.constant 0 : index
    %c0_5 = arith.constant 0 : index
    %c0_6 = arith.constant 0 : index
    %2 = vector.load %arg3[%c0_3, %c0_4, %c0_5, %c0_6] : memref<1x4x8x12xf32, #tpu.memory_space<vmem>>, vector<1x4x8x12xf32>
    %3 = vector.shape_cast %2 : vector<1x4x8x12xf32> to vector<4x8x12xf32>
    "tpu.trace_start"() <{level = 10 : i32, message = "hqd,hkd->hqk"}> : () -> ()
    %cst = arith.constant dense<0.000000e+00> : vector<4x8x8xf32>
    %4 = tpu.matmul %1, %3, %cst {dimension_numbers = #tpu.dot_dimension_numbers<[2], [2], [1], [1], [0, 0, 0, 1, 1, 1], [0], [0]>} : vector<4x8x12xf32>, vector<4x8x12xf32>, vector<4x8x8xf32> -> vector<4x8x8xf32>
    "tpu.trace_stop"() : () -> ()
    %cst_7 = arith.constant 0.288675129 : f32
    %5 = vector.broadcast %cst_7 : f32 to vector<4x8x8xf32>
    %6 = arith.mulf %4, %5 : vector<4x8x8xf32>
    %c0_8 = arith.constant 0 : index
    %c0_9 = arith.constant 0 : index
    %c0_10 = arith.constant 0 : index
    %7 = vector.load %arg5[%c0_8, %c0_9, %c0_10] : memref<1x1x8xf32, #tpu.memory_space<vmem>>, vector<1x1x8xf32>
    %8 = vector.shape_cast %7 : vector<1x1x8xf32> to vector<1x8xf32>
    %9 = vector.shape_cast %8 : vector<1x8xf32> to vector<1x1x8xf32>
    %10 = vector.broadcast %9 : vector<1x1x8xf32> to vector<4x8x8xf32>
    %11 = arith.addf %6, %10 : vector<4x8x8xf32>
    %cst_11 = arith.constant dense<0xFF800000> : vector<4x8xf32>
    %12 = vector.multi_reduction <maximumf>, %11, %cst_11 [2] : vector<4x8x8xf32> to vector<4x8xf32>
    %13 = vector.shape_cast %12 : vector<4x8xf32> to vector<4x8x1xf32>
    %14 = vector.broadcast %13 : vector<4x8x1xf32> to vector<4x8x8xf32>
    %15 = arith.subf %11, %14 : vector<4x8x8xf32>
    %16 = math.exp %15 : vector<4x8x8xf32>
    %cst_12 = arith.constant dense<0.000000e+00> : vector<4x8xf32>
    %17 = vector.multi_reduction <add>, %16, %cst_12 [2] : vector<4x8x8xf32> to vector<4x8xf32>
    %18 = vector.shape_cast %17 : vector<4x8xf32> to vector<4x8x1xf32>
    %19 = tpu.reciprocal %18 {approx = true} : vector<4x8x1xf32> -> vector<4x8x1xf32>
    %20 = vector.broadcast %19 : vector<4x8x1xf32> to vector<4x8x8xf32>
    %21 = arith.mulf %16, %20 : vector<4x8x8xf32>
    %c0_13 = arith.constant 0 : index
    %c0_14 = arith.constant 0 : index
    %c0_15 = arith.constant 0 : index
    %c0_16 = arith.constant 0 : index
    %22 = vector.load %arg4[%c0_13, %c0_14, %c0_15, %c0_16] : memref<1x4x8x12xf32, #tpu.memory_space<vmem>>, vector<1x4x8x12xf32>
    %23 = vector.shape_cast %22 : vector<1x4x8x12xf32> to vector<4x8x12xf32>
    "tpu.trace_start"() <{level = 10 : i32, message = "hqk,hkd->hqd"}> : () -> ()
    %cst_17 = arith.constant dense<0.000000e+00> : vector<4x8x12xf32>
    %24 = tpu.matmul %21, %23, %cst_17 {dimension_numbers = #tpu.dot_dimension_numbers<[2], [1], [1], [2], [0, 0, 0, 1, 1, 2], [0], [0]>} : vector<4x8x8xf32>, vector<4x8x12xf32>, vector<4x8x12xf32> -> vector<4x8x12xf32>
    "tpu.trace_stop"() : () -> ()
    %25 = vector.extract_strided_slice %24 {offsets = [0, 0, 0], sizes = [1, 8, 12], strides = [1, 1, 1]} : vector<4x8x12xf32> to vector<1x8x12xf32>
    %26 = vector.shape_cast %25 : vector<1x8x12xf32> to vector<8x12xf32>
    %27 = vector.extract_strided_slice %24 {offsets = [1, 0, 0], sizes = [1, 8, 12], strides = [1, 1, 1]} : vector<4x8x12xf32> to vector<1x8x12xf32>
    %28 = vector.shape_cast %27 : vector<1x8x12xf32> to vector<8x12xf32>
    %29 = vector.extract_strided_slice %24 {offsets = [2, 0, 0], sizes = [1, 8, 12], strides = [1, 1, 1]} : vector<4x8x12xf32> to vector<1x8x12xf32>
    %30 = vector.shape_cast %29 : vector<1x8x12xf32> to vector<8x12xf32>
    %31 = vector.extract_strided_slice %24 {offsets = [3, 0, 0], sizes = [1, 8, 12], strides = [1, 1, 1]} : vector<4x8x12xf32> to vector<1x8x12xf32>
    %32 = vector.shape_cast %31 : vector<1x8x12xf32> to vector<8x12xf32>
    %33 = tpu.concatenate %26, %28, %30, %32 in 1 : vector<8x12xf32>, vector<8x12xf32>, vector<8x12xf32>, vector<8x12xf32> -> vector<8x48xf32>
    %c0_18 = arith.constant 0 : index
    %c0_19 = arith.constant 0 : index
    %c0_20 = arith.constant 0 : index
    %34 = vector.load %arg6[%c0_18, %c0_19, %c0_20] : memref<1x8x48xf32, #tpu.memory_space<vmem>>, vector<1x8x48xf32>
    %35 = vector.shape_cast %34 : vector<1x8x48xf32> to vector<8x48xf32>
    %36 = vector.shape_cast %33 : vector<8x48xf32> to vector<1x8x48xf32>
    tpu.vector_store %arg6[%c0_18, %c0_19, %c0_20], %36 {strides = array<i32>} : memref<1x8x48xf32, #tpu.memory_space<vmem>>, vector<1x8x48xf32>,
    return
  }
  func.func @transform_0(%arg0: i32, %arg1: i32) -> (i32, i32, i32, i32) {
    %c0_i32 = arith.constant 0 : i32
    %c0_i32_0 = arith.constant 0 : i32
    %c0_i32_1 = arith.constant 0 : i32
    return %arg0, %c0_i32, %arg1, %c0_i32_0 : i32, i32, i32, i32
  }
  func.func @transform_1(%arg0: i32, %arg1: i32) -> (i32, i32, i32, i32) {
    %c0_i32 = arith.constant 0 : i32
    %c0_i32_0 = arith.constant 0 : i32
    %c0_i32_1 = arith.constant 0 : i32
    %c0_i32_2 = arith.constant 0 : i32
    return %arg0, %c0_i32, %c0_i32_0, %c0_i32_1 : i32, i32, i32, i32
  }
  func.func @transform_2(%arg0: i32, %arg1: i32) -> (i32, i32, i32, i32) {
    %c0_i32 = arith.constant 0 : i32
    %c0_i32_0 = arith.constant 0 : i32
    %c0_i32_1 = arith.constant 0 : i32
    %c0_i32_2 = arith.constant 0 : i32
    return %arg0, %c0_i32, %c0_i32_0, %c0_i32_1 : i32, i32, i32, i32
  }
  func.func @transform_3(%arg0: i32, %arg1: i32) -> (i32, i32, i32) {
    %c0_i32 = arith.constant 0 : i32
    %c0_i32_0 = arith.constant 0 : i32
    %c0_i32_1 = arith.constant 0 : i32
    return %arg0, %c0_i32, %c0_i32_0 : i32, i32, i32
  }
  func.func @transform_4(%arg0: i32, %arg1: i32) -> (i32, i32, i32) {
    %c0_i32 = arith.constant 0 : i32
    %c0_i32_0 = arith.constant 0 : i32
    return %arg0, %arg1, %c0_i32 : i32, i32, i32
  }
}

module attributes {stable_mosaic.version = 11 : i64} {
  func.func @kernel(%arg0: i32, %arg1: memref<16x48xf32, #tpu.memory_space<vmem>>, %arg2: memref<48x32xf32, #tpu.memory_space<vmem>>, %arg3: memref<1x32xf32, #tpu.memory_space<vmem>>, %arg4: memref<16x32xf32, #tpu.memory_space<vmem>>, %arg5: memref<16x32xf32, #tpu.memory_space<vmem>>) attributes {dimension_semantics = [#tpu.dimension_semantics<parallel>], iteration_bounds = array<i64: 1>, scalar_prefetch = 0 : i64, scratch_operands = 0 : i64, tpu.core_type = #tpu.core_type<tc>, window_params = [{transform_indices = @transform_0, window_bounds = array<i64: 16, 48>}, {pipeline_mode = #tpu.pipeline_mode<synchronous>, transform_indices = @transform_1, window_bounds = array<i64: 48, 32>}, {pipeline_mode = #tpu.pipeline_mode<synchronous>, transform_indices = @transform_2, window_bounds = array<i64: 1, 32>}, {transform_indices = @transform_3, window_bounds = array<i64: 16, 32>}, {transform_indices = @transform_4, window_bounds = array<i64: 16, 32>}]} {
    %c0 = arith.constant 0 : index
    %c0_0 = arith.constant 0 : index
    %0 = vector.load %arg1[%c0, %c0_0] : memref<16x48xf32, #tpu.memory_space<vmem>>, vector<16x48xf32>
    %c0_1 = arith.constant 0 : index
    %c0_2 = arith.constant 0 : index
    %1 = vector.load %arg2[%c0_1, %c0_2] : memref<48x32xf32, #tpu.memory_space<vmem>>, vector<48x32xf32>
    %cst = arith.constant dense<0.000000e+00> : vector<16x32xf32>
    %2 = tpu.matmul %0, %1, %cst {dimension_numbers = #tpu.dot_dimension_numbers<[1], [0], [0], [1], [0, 0, 1, 1], [], []>} : vector<16x48xf32>, vector<48x32xf32>, vector<16x32xf32> -> vector<16x32xf32>
    %c0_3 = arith.constant 0 : index
    %c0_4 = arith.constant 0 : index
    %3 = vector.load %arg3[%c0_3, %c0_4] : memref<1x32xf32, #tpu.memory_space<vmem>>, vector<1x32xf32>
    %4 = vector.broadcast %3 : vector<1x32xf32> to vector<16x32xf32>
    %5 = arith.addf %2, %4 : vector<16x32xf32>
    %c0_5 = arith.constant 0 : index
    %c0_6 = arith.constant 0 : index
    %6 = vector.load %arg4[%c0_5, %c0_6] : memref<16x32xf32, #tpu.memory_space<vmem>>, vector<16x32xf32>
    %7 = arith.addf %5, %6 : vector<16x32xf32>
    %c0_7 = arith.constant 0 : index
    %c0_8 = arith.constant 0 : index
    %8 = vector.load %arg5[%c0_7, %c0_8] : memref<16x32xf32, #tpu.memory_space<vmem>>, vector<16x32xf32>
    tpu.vector_store %arg5[%c0_7, %c0_8], %7 {strides = array<i32>} : memref<16x32xf32, #tpu.memory_space<vmem>>, vector<16x32xf32>,
    return
  }
  func.func @transform_0(%arg0: i32) -> (i32, i32) {
    %c0_i32 = arith.constant 0 : i32
    %c0_i32_0 = arith.constant 0 : i32
    return %arg0, %c0_i32 : i32, i32
  }
  func.func @transform_1(%arg0: i32) -> (i32, i32) {
    %c0_i32 = arith.constant 0 : i32
    %c0_i32_0 = arith.constant 0 : i32
    %c0_i32_1 = arith.constant 0 : i32
    return %c0_i32, %c0_i32_0 : i32, i32
  }
  func.func @transform_2(%arg0: i32) -> (i32, i32) {
    %c0_i32 = arith.constant 0 : i32
    %c0_i32_0 = arith.constant 0 : i32
    %c0_i32_1 = arith.constant 0 : i32
    return %c0_i32, %c0_i32_0 : i32, i32
  }
  func.func @transform_3(%arg0: i32) -> (i32, i32) {
    %c0_i32 = arith.constant 0 : i32
    %c0_i32_0 = arith.constant 0 : i32
    return %arg0, %c0_i32 : i32, i32
  }
  func.func @transform_4(%arg0: i32) -> (i32, i32) {
    %c0_i32 = arith.constant 0 : i32
    %c0_i32_0 = arith.constant 0 : i32
    return %arg0, %c0_i32 : i32, i32
  }
}

module attributes {stable_mosaic.version = 11 : i64} {
  func.func @kernel(%arg0: i32, %arg1: memref<16x32xf32, #tpu.memory_space<vmem>>, %arg2: memref<32x32xf32, #tpu.memory_space<vmem>>, %arg3: memref<1x32xf32, #tpu.memory_space<vmem>>, %arg4: memref<16x32xf32, #tpu.memory_space<vmem>>) attributes {dimension_semantics = [#tpu.dimension_semantics<parallel>], iteration_bounds = array<i64: 1>, scalar_prefetch = 0 : i64, scratch_operands = 0 : i64, tpu.core_type = #tpu.core_type<tc>, window_params = [{transform_indices = @transform_0, window_bounds = array<i64: 16, 32>}, {pipeline_mode = #tpu.pipeline_mode<synchronous>, transform_indices = @transform_1, window_bounds = array<i64: 32, 32>}, {pipeline_mode = #tpu.pipeline_mode<synchronous>, transform_indices = @transform_2, window_bounds = array<i64: 1, 32>}, {transform_indices = @transform_3, window_bounds = array<i64: 16, 32>}]} {
    %c0 = arith.constant 0 : index
    %c0_0 = arith.constant 0 : index
    %0 = vector.load %arg1[%c0, %c0_0] : memref<16x32xf32, #tpu.memory_space<vmem>>, vector<16x32xf32>
    %c0_1 = arith.constant 0 : index
    %c0_2 = arith.constant 0 : index
    %1 = vector.load %arg2[%c0_1, %c0_2] : memref<32x32xf32, #tpu.memory_space<vmem>>, vector<32x32xf32>
    %cst = arith.constant dense<0.000000e+00> : vector<16x32xf32>
    %2 = tpu.matmul %0, %1, %cst {dimension_numbers = #tpu.dot_dimension_numbers<[1], [0], [0], [1], [0, 0, 1, 1], [], []>} : vector<16x32xf32>, vector<32x32xf32>, vector<16x32xf32> -> vector<16x32xf32>
    %c0_3 = arith.constant 0 : index
    %c0_4 = arith.constant 0 : index
    %3 = vector.load %arg3[%c0_3, %c0_4] : memref<1x32xf32, #tpu.memory_space<vmem>>, vector<1x32xf32>
    %4 = vector.broadcast %3 : vector<1x32xf32> to vector<16x32xf32>
    %5 = arith.addf %2, %4 : vector<16x32xf32>
    %cst_5 = arith.constant 0.000000e+00 : f32
    %6 = vector.broadcast %cst_5 : f32 to vector<16x32xf32>
    %7 = arith.maximumf %5, %6 : vector<16x32xf32>
    %c0_6 = arith.constant 0 : index
    %c0_7 = arith.constant 0 : index
    %8 = vector.load %arg4[%c0_6, %c0_7] : memref<16x32xf32, #tpu.memory_space<vmem>>, vector<16x32xf32>
    tpu.vector_store %arg4[%c0_6, %c0_7], %7 {strides = array<i32>} : memref<16x32xf32, #tpu.memory_space<vmem>>, vector<16x32xf32>,
    return
  }
  func.func @transform_0(%arg0: i32) -> (i32, i32) {
    %c0_i32 = arith.constant 0 : i32
    %c0_i32_0 = arith.constant 0 : i32
    return %arg0, %c0_i32 : i32, i32
  }
  func.func @transform_1(%arg0: i32) -> (i32, i32) {
    %c0_i32 = arith.constant 0 : i32
    %c0_i32_0 = arith.constant 0 : i32
    %c0_i32_1 = arith.constant 0 : i32
    return %c0_i32, %c0_i32_0 : i32, i32
  }
  func.func @transform_2(%arg0: i32) -> (i32, i32) {
    %c0_i32 = arith.constant 0 : i32
    %c0_i32_0 = arith.constant 0 : i32
    %c0_i32_1 = arith.constant 0 : i32
    return %c0_i32, %c0_i32_0 : i32, i32
  }
  func.func @transform_3(%arg0: i32) -> (i32, i32) {
    %c0_i32 = arith.constant 0 : i32
    %c0_i32_0 = arith.constant 0 : i32
    return %arg0, %c0_i32 : i32, i32
  }
}

module attributes {stable_mosaic.version = 11 : i64} {
  func.func @kernel(%arg0: i32, %arg1: memref<16x32xf32, #tpu.memory_space<vmem>>, %arg2: memref<32x32xf32, #tpu.memory_space<vmem>>, %arg3: memref<1x32xf32, #tpu.memory_space<vmem>>, %arg4: memref<16x32xf32, #tpu.memory_space<vmem>>, %arg5: memref<1x32xf32, #tpu.memory_space<vmem>>, %arg6: memref<1x32xf32, #tpu.memory_space<vmem>>, %arg7: memref<16x32xf32, #tpu.memory_space<vmem>>) attributes {dimension_semantics = [#tpu.dimension_semantics<parallel>], iteration_bounds = array<i64: 1>, scalar_prefetch = 0 : i64, scratch_operands = 0 : i64, tpu.core_type = #tpu.core_type<tc>, window_params = [{transform_indices = @transform_0, window_bounds = array<i64: 16, 32>}, {pipeline_mode = #tpu.pipeline_mode<synchronous>, transform_indices = @transform_1, window_bounds = array<i64: 32, 32>}, {pipeline_mode = #tpu.pipeline_mode<synchronous>, transform_indices = @transform_2, window_bounds = array<i64: 1, 32>}, {transform_indices = @transform_3, window_bounds = array<i64: 16, 32>}, {pipeline_mode = #tpu.pipeline_mode<synchronous>, transform_indices = @transform_4, window_bounds = array<i64: 1, 32>}, {pipeline_mode = #tpu.pipeline_mode<synchronous>, transform_indices = @transform_5, window_bounds = array<i64: 1, 32>}, {transform_indices = @transform_6, window_bounds = array<i64: 16, 32>}]} {
    %c0 = arith.constant 0 : index
    %c0_0 = arith.constant 0 : index
    %0 = vector.load %arg1[%c0, %c0_0] : memref<16x32xf32, #tpu.memory_space<vmem>>, vector<16x32xf32>
    %c0_1 = arith.constant 0 : index
    %c0_2 = arith.constant 0 : index
    %1 = vector.load %arg2[%c0_1, %c0_2] : memref<32x32xf32, #tpu.memory_space<vmem>>, vector<32x32xf32>
    %cst = arith.constant dense<0.000000e+00> : vector<16x32xf32>
    %2 = tpu.matmul %0, %1, %cst {dimension_numbers = #tpu.dot_dimension_numbers<[1], [0], [0], [1], [0, 0, 1, 1], [], []>} : vector<16x32xf32>, vector<32x32xf32>, vector<16x32xf32> -> vector<16x32xf32>
    %c0_3 = arith.constant 0 : index
    %c0_4 = arith.constant 0 : index
    %3 = vector.load %arg3[%c0_3, %c0_4] : memref<1x32xf32, #tpu.memory_space<vmem>>, vector<1x32xf32>
    %4 = vector.broadcast %3 : vector<1x32xf32> to vector<16x32xf32>
    %5 = arith.addf %2, %4 : vector<16x32xf32>
    %c0_5 = arith.constant 0 : index
    %c0_6 = arith.constant 0 : index
    %6 = vector.load %arg4[%c0_5, %c0_6] : memref<16x32xf32, #tpu.memory_space<vmem>>, vector<16x32xf32>
    %7 = arith.addf %5, %6 : vector<16x32xf32>
    %cst_7 = arith.constant dense<0.000000e+00> : vector<16xf32>
    %8 = vector.multi_reduction <add>, %7, %cst_7 [1] : vector<16x32xf32> to vector<16xf32>
    %9 = vector.shape_cast %8 : vector<16xf32> to vector<16x1xf32>
    %cst_8 = arith.constant 3.200000e+01 : f32
    %10 = vector.broadcast %cst_8 : f32 to vector<16x1xf32>
    %11 = arith.divf %9, %10 : vector<16x1xf32>
    %12 = vector.broadcast %11 : vector<16x1xf32> to vector<16x32xf32>
    %13 = arith.subf %7, %12 : vector<16x32xf32>
    %14 = arith.mulf %13, %13 : vector<16x32xf32>
    %cst_9 = arith.constant dense<0.000000e+00> : vector<16xf32>
    %15 = vector.multi_reduction <add>, %14, %cst_9 [1] : vector<16x32xf32> to vector<16xf32>
    %16 = vector.shape_cast %15 : vector<16xf32> to vector<16x1xf32>
    %cst_10 = arith.constant 3.200000e+01 : f32
    %17 = vector.broadcast %cst_10 : f32 to vector<16x1xf32>
    %18 = arith.divf %16, %17 : vector<16x1xf32>
    %19 = vector.broadcast %11 : vector<16x1xf32> to vector<16x32xf32>
    %20 = arith.subf %7, %19 : vector<16x32xf32>
    %cst_11 = arith.constant 9.99999974E-6 : f32
    %21 = vector.broadcast %cst_11 : f32 to vector<16x1xf32>
    %22 = arith.addf %18, %21 : vector<16x1xf32>
    %23 = math.rsqrt %22 : vector<16x1xf32>
    %24 = vector.broadcast %23 : vector<16x1xf32> to vector<16x32xf32>
    %25 = arith.mulf %20, %24 : vector<16x32xf32>
    %c0_12 = arith.constant 0 : index
    %c0_13 = arith.constant 0 : index
    %26 = vector.load %arg5[%c0_12, %c0_13] : memref<1x32xf32, #tpu.memory_space<vmem>>, vector<1x32xf32>
    %27 = vector.broadcast %26 : vector<1x32xf32> to vector<16x32xf32>
    %28 = arith.mulf %25, %27 : vector<16x32xf32>
    %c0_14 = arith.constant 0 : index
    %c0_15 = arith.constant 0 : index
    %29 = vector.load %arg6[%c0_14, %c0_15] : memref<1x32xf32, #tpu.memory_space<vmem>>, vector<1x32xf32>
    %30 = vector.broadcast %29 : vector<1x32xf32> to vector<16x32xf32>
    %31 = arith.addf %28, %30 : vector<16x32xf32>
    %c0_16 = arith.constant 0 : index
    %c0_17 = arith.constant 0 : index
    %32 = vector.load %arg7[%c0_16, %c0_17] : memref<16x32xf32, #tpu.memory_space<vmem>>, vector<16x32xf32>
    tpu.vector_store %arg7[%c0_16, %c0_17], %31 {strides = array<i32>} : memref<16x32xf32, #tpu.memory_space<vmem>>, vector<16x32xf32>,
    return
  }
  func.func @transform_0(%arg0: i32) -> (i32, i32) {
    %c0_i32 = arith.constant 0 : i32
    %c0_i32_0 = arith.constant 0 : i32
    return %arg0, %c0_i32 : i32, i32
  }
  func.func @transform_1(%arg0: i32) -> (i32, i32) {
    %c0_i32 = arith.constant 0 : i32
    %c0_i32_0 = arith.constant 0 : i32
    %c0_i32_1 = arith.constant 0 : i32
    return %c0_i32, %c0_i32_0 : i32, i32
  }
  func.func @transform_2(%arg0: i32) -> (i32, i32) {
    %c0_i32 = arith.constant 0 : i32
    %c0_i32_0 = arith.constant 0 : i32
    %c0_i32_1 = arith.constant 0 : i32
    return %c0_i32, %c0_i32_0 : i32, i32
  }
  func.func @transform_3(%arg0: i32) -> (i32, i32) {
    %c0_i32 = arith.constant 0 : i32
    %c0_i32_0 = arith.constant 0 : i32
    return %arg0, %c0_i32 : i32, i32
  }
  func.func @transform_4(%arg0: i32) -> (i32, i32) {
    %c0_i32 = arith.constant 0 : i32
    %c0_i32_0 = arith.constant 0 : i32
    %c0_i32_1 = arith.constant 0 : i32
    return %c0_i32, %c0_i32_0 : i32, i32
  }
  func.func @transform_5(%arg0: i32) -> (i32, i32) {
    %c0_i32 = arith.constant 0 : i32
    %c0_i32_0 = arith.constant 0 : i32
    %c0_i32_1 = arith.constant 0 : i32
    return %c0_i32, %c0_i32_0 : i32, i32
  }
  func.func @transform_6(%arg0: i32) -> (i32, i32) {
    %c0_i32 = arith.constant 0 : i32
    %c0_i32_0 = arith.constant 0 : i32
    return %arg0, %c0_i32 : i32, i32
  }
}

module attributes {stable_mosaic.version = 11 : i64} {
  func.func @kernel(%arg0: i32, %arg1: memref<16x32xf32, #tpu.memory_space<vmem>>, %arg2: memref<32x6xf32, #tpu.memory_space<vmem>>, %arg3: memref<1x6xf32, #tpu.memory_space<vmem>>, %arg4: memref<16x6xf32, #tpu.memory_space<vmem>>) attributes {dimension_semantics = [#tpu.dimension_semantics<parallel>], iteration_bounds = array<i64: 1>, scalar_prefetch = 0 : i64, scratch_operands = 0 : i64, tpu.core_type = #tpu.core_type<tc>, window_params = [{transform_indices = @transform_0, window_bounds = array<i64: 16, 32>}, {pipeline_mode = #tpu.pipeline_mode<synchronous>, transform_indices = @transform_1, window_bounds = array<i64: 32, 6>}, {pipeline_mode = #tpu.pipeline_mode<synchronous>, transform_indices = @transform_2, window_bounds = array<i64: 1, 6>}, {transform_indices = @transform_3, window_bounds = array<i64: 16, 6>}]} {
    %c0 = arith.constant 0 : index
    %c0_0 = arith.constant 0 : index
    %0 = vector.load %arg1[%c0, %c0_0] : memref<16x32xf32, #tpu.memory_space<vmem>>, vector<16x32xf32>
    %c0_1 = arith.constant 0 : index
    %c0_2 = arith.constant 0 : index
    %1 = vector.load %arg2[%c0_1, %c0_2] : memref<32x6xf32, #tpu.memory_space<vmem>>, vector<32x6xf32>
    %cst = arith.constant dense<0.000000e+00> : vector<16x6xf32>
    %2 = tpu.matmul %0, %1, %cst {dimension_numbers = #tpu.dot_dimension_numbers<[1], [0], [0], [1], [0, 0, 1, 1], [], []>} : vector<16x32xf32>, vector<32x6xf32>, vector<16x6xf32> -> vector<16x6xf32>
    %c0_3 = arith.constant 0 : index
    %c0_4 = arith.constant 0 : index
    %3 = vector.load %arg3[%c0_3, %c0_4] : memref<1x6xf32, #tpu.memory_space<vmem>>, vector<1x6xf32>
    %4 = vector.broadcast %3 : vector<1x6xf32> to vector<16x6xf32>
    %5 = arith.addf %2, %4 : vector<16x6xf32>
    %c0_5 = arith.constant 0 : index
    %c0_6 = arith.constant 0 : index
    %6 = vector.load %arg4[%c0_5, %c0_6] : memref<16x6xf32, #tpu.memory_space<vmem>>, vector<16x6xf32>
    tpu.vector_store %arg4[%c0_5, %c0_6], %5 {strides = array<i32>} : memref<16x6xf32, #tpu.memory_space<vmem>>, vector<16x6xf32>,
    return
  }
  func.func @transform_0(%arg0: i32) -> (i32, i32) {
    %c0_i32 = arith.constant 0 : i32
    %c0_i32_0 = arith.constant 0 : i32
    return %arg0, %c0_i32 : i32, i32
  }
  func.func @transform_1(%arg0: i32) -> (i32, i32) {
    %c0_i32 = arith.constant 0 : i32
    %c0_i32_0 = arith.constant 0 : i32
    %c0_i32_1 = arith.constant 0 : i32
    return %c0_i32, %c0_i32_0 : i32, i32
  }
  func.func @transform_2(%arg0: i32) -> (i32, i32) {
    %c0_i32 = arith.constant 0 : i32
    %c0_i32_0 = arith.constant 0 : i32
    %c0_i32_1 = arith.constant 0 : i32
    return %c0_i32, %c0_i32_0 : i32, i32
  }
  func.func @transform_3(%arg0: i32) -> (i32, i32) {
    %c0_i32 = arith.constant 0 : i32
    %c0_i32_0 = arith.constant 0 : i32
    return %arg0, %c0_i32 : i32, i32
  }
}

module attributes {stable_mosaic.version = 11 : i64} {
  func.func @kernel(%arg0: i32, %arg1: memref<128x48xf32, #tpu.memory_space<vmem>>, %arg2: memref<48x48xf32, #tpu.memory_space<vmem>>, %arg3: memref<1x48xf32, #tpu.memory_space<vmem>>, %arg4: memref<128x48xf32, #tpu.memory_space<vmem>>) attributes {dimension_semantics = [#tpu.dimension_semantics<parallel>], iteration_bounds = array<i64: 1>, scalar_prefetch = 0 : i64, scratch_operands = 0 : i64, tpu.core_type = #tpu.core_type<tc>, window_params = [{transform_indices = @transform_0, window_bounds = array<i64: 128, 48>}, {pipeline_mode = #tpu.pipeline_mode<synchronous>, transform_indices = @transform_1, window_bounds = array<i64: 48, 48>}, {pipeline_mode = #tpu.pipeline_mode<synchronous>, transform_indices = @transform_2, window_bounds = array<i64: 1, 48>}, {transform_indices = @transform_3, window_bounds = array<i64: 128, 48>}]} {
    %c0 = arith.constant 0 : index
    %c0_0 = arith.constant 0 : index
    %0 = vector.load %arg1[%c0, %c0_0] : memref<128x48xf32, #tpu.memory_space<vmem>>, vector<128x48xf32>
    %c0_1 = arith.constant 0 : index
    %c0_2 = arith.constant 0 : index
    %1 = vector.load %arg2[%c0_1, %c0_2] : memref<48x48xf32, #tpu.memory_space<vmem>>, vector<48x48xf32>
    %cst = arith.constant dense<0.000000e+00> : vector<128x48xf32>
    %2 = tpu.matmul %0, %1, %cst {dimension_numbers = #tpu.dot_dimension_numbers<[1], [0], [0], [1], [0, 0, 1, 1], [], []>} : vector<128x48xf32>, vector<48x48xf32>, vector<128x48xf32> -> vector<128x48xf32>
    %c0_3 = arith.constant 0 : index
    %c0_4 = arith.constant 0 : index
    %3 = vector.load %arg3[%c0_3, %c0_4] : memref<1x48xf32, #tpu.memory_space<vmem>>, vector<1x48xf32>
    %4 = vector.broadcast %3 : vector<1x48xf32> to vector<128x48xf32>
    %5 = arith.addf %2, %4 : vector<128x48xf32>
    %cst_5 = arith.constant 0.000000e+00 : f32
    %6 = vector.broadcast %cst_5 : f32 to vector<128x48xf32>
    %7 = arith.maximumf %5, %6 : vector<128x48xf32>
    %c0_6 = arith.constant 0 : index
    %c0_7 = arith.constant 0 : index
    %8 = vector.load %arg4[%c0_6, %c0_7] : memref<128x48xf32, #tpu.memory_space<vmem>>, vector<128x48xf32>
    tpu.vector_store %arg4[%c0_6, %c0_7], %7 {strides = array<i32>} : memref<128x48xf32, #tpu.memory_space<vmem>>, vector<128x48xf32>,
    return
  }
  func.func @transform_0(%arg0: i32) -> (i32, i32) {
    %c0_i32 = arith.constant 0 : i32
    %c0_i32_0 = arith.constant 0 : i32
    return %arg0, %c0_i32 : i32, i32
  }
  func.func @transform_1(%arg0: i32) -> (i32, i32) {
    %c0_i32 = arith.constant 0 : i32
    %c0_i32_0 = arith.constant 0 : i32
    %c0_i32_1 = arith.constant 0 : i32
    return %c0_i32, %c0_i32_0 : i32, i32
  }
  func.func @transform_2(%arg0: i32) -> (i32, i32) {
    %c0_i32 = arith.constant 0 : i32
    %c0_i32_0 = arith.constant 0 : i32
    %c0_i32_1 = arith.constant 0 : i32
    return %c0_i32, %c0_i32_0 : i32, i32
  }
  func.func @transform_3(%arg0: i32) -> (i32, i32) {
    %c0_i32 = arith.constant 0 : i32
    %c0_i32_0 = arith.constant 0 : i32
    return %arg0, %c0_i32 : i32, i32
  }
}

module attributes {stable_mosaic.version = 11 : i64} {
  func.func @kernel(%arg0: i32, %arg1: memref<128x48xf32, #tpu.memory_space<vmem>>, %arg2: memref<48x16xf32, #tpu.memory_space<vmem>>, %arg3: memref<1x16xf32, #tpu.memory_space<vmem>>, %arg4: memref<1x16xf32, #tpu.memory_space<vmem>>, %arg5: memref<1x16xf32, #tpu.memory_space<vmem>>, %arg6: memref<128x16xf32, #tpu.memory_space<vmem>>) attributes {dimension_semantics = [#tpu.dimension_semantics<parallel>], iteration_bounds = array<i64: 1>, scalar_prefetch = 0 : i64, scratch_operands = 0 : i64, tpu.core_type = #tpu.core_type<tc>, window_params = [{transform_indices = @transform_0, window_bounds = array<i64: 128, 48>}, {pipeline_mode = #tpu.pipeline_mode<synchronous>, transform_indices = @transform_1, window_bounds = array<i64: 48, 16>}, {pipeline_mode = #tpu.pipeline_mode<synchronous>, transform_indices = @transform_2, window_bounds = array<i64: 1, 16>}, {pipeline_mode = #tpu.pipeline_mode<synchronous>, transform_indices = @transform_3, window_bounds = array<i64: 1, 16>}, {pipeline_mode = #tpu.pipeline_mode<synchronous>, transform_indices = @transform_4, window_bounds = array<i64: 1, 16>}, {transform_indices = @transform_5, window_bounds = array<i64: 128, 16>}]} {
    %c0 = arith.constant 0 : index
    %c0_0 = arith.constant 0 : index
    %0 = vector.load %arg1[%c0, %c0_0] : memref<128x48xf32, #tpu.memory_space<vmem>>, vector<128x48xf32>
    %c0_1 = arith.constant 0 : index
    %c0_2 = arith.constant 0 : index
    %1 = vector.load %arg2[%c0_1, %c0_2] : memref<48x16xf32, #tpu.memory_space<vmem>>, vector<48x16xf32>
    %cst = arith.constant dense<0.000000e+00> : vector<128x16xf32>
    %2 = tpu.matmul %0, %1, %cst {dimension_numbers = #tpu.dot_dimension_numbers<[1], [0], [0], [1], [0, 0, 1, 1], [], []>} : vector<128x48xf32>, vector<48x16xf32>, vector<128x16xf32> -> vector<128x16xf32>
    %c0_3 = arith.constant 0 : index
    %c0_4 = arith.constant 0 : index
    %3 = vector.load %arg3[%c0_3, %c0_4] : memref<1x16xf32, #tpu.memory_space<vmem>>, vector<1x16xf32>
    %4 = vector.broadcast %3 : vector<1x16xf32> to vector<128x16xf32>
    %5 = arith.addf %2, %4 : vector<128x16xf32>
    %cst_5 = arith.constant dense<0.000000e+00> : vector<128xf32>
    %6 = vector.multi_reduction <add>, %5, %cst_5 [1] : vector<128x16xf32> to vector<128xf32>
    %7 = vector.shape_cast %6 : vector<128xf32> to vector<128x1xf32>
    %cst_6 = arith.constant 1.600000e+01 : f32
    %8 = vector.broadcast %cst_6 : f32 to vector<128x1xf32>
    %9 = arith.divf %7, %8 : vector<128x1xf32>
    %10 = vector.broadcast %9 : vector<128x1xf32> to vector<128x16xf32>
    %11 = arith.subf %5, %10 : vector<128x16xf32>
    %12 = arith.mulf %11, %11 : vector<128x16xf32>
    %cst_7 = arith.constant dense<0.000000e+00> : vector<128xf32>
    %13 = vector.multi_reduction <add>, %12, %cst_7 [1] : vector<128x16xf32> to vector<128xf32>
    %14 = vector.shape_cast %13 : vector<128xf32> to vector<128x1xf32>
    %cst_8 = arith.constant 1.600000e+01 : f32
    %15 = vector.broadcast %cst_8 : f32 to vector<128x1xf32>
    %16 = arith.divf %14, %15 : vector<128x1xf32>
    %17 = vector.broadcast %9 : vector<128x1xf32> to vector<128x16xf32>
    %18 = arith.subf %5, %17 : vector<128x16xf32>
    %cst_9 = arith.constant 9.99999974E-6 : f32
    %19 = vector.broadcast %cst_9 : f32 to vector<128x1xf32>
    %20 = arith.addf %16, %19 : vector<128x1xf32>
    %21 = math.rsqrt %20 : vector<128x1xf32>
    %22 = vector.broadcast %21 : vector<128x1xf32> to vector<128x16xf32>
    %23 = arith.mulf %18, %22 : vector<128x16xf32>
    %c0_10 = arith.constant 0 : index
    %c0_11 = arith.constant 0 : index
    %24 = vector.load %arg4[%c0_10, %c0_11] : memref<1x16xf32, #tpu.memory_space<vmem>>, vector<1x16xf32>
    %25 = vector.broadcast %24 : vector<1x16xf32> to vector<128x16xf32>
    %26 = arith.mulf %23, %25 : vector<128x16xf32>
    %c0_12 = arith.constant 0 : index
    %c0_13 = arith.constant 0 : index
    %27 = vector.load %arg5[%c0_12, %c0_13] : memref<1x16xf32, #tpu.memory_space<vmem>>, vector<1x16xf32>
    %28 = vector.broadcast %27 : vector<1x16xf32> to vector<128x16xf32>
    %29 = arith.addf %26, %28 : vector<128x16xf32>
    %c0_14 = arith.constant 0 : index
    %c0_15 = arith.constant 0 : index
    %30 = vector.load %arg6[%c0_14, %c0_15] : memref<128x16xf32, #tpu.memory_space<vmem>>, vector<128x16xf32>
    tpu.vector_store %arg6[%c0_14, %c0_15], %29 {strides = array<i32>} : memref<128x16xf32, #tpu.memory_space<vmem>>, vector<128x16xf32>,
    return
  }
  func.func @transform_0(%arg0: i32) -> (i32, i32) {
    %c0_i32 = arith.constant 0 : i32
    %c0_i32_0 = arith.constant 0 : i32
    return %arg0, %c0_i32 : i32, i32
  }
  func.func @transform_1(%arg0: i32) -> (i32, i32) {
    %c0_i32 = arith.constant 0 : i32
    %c0_i32_0 = arith.constant 0 : i32
    %c0_i32_1 = arith.constant 0 : i32
    return %c0_i32, %c0_i32_0 : i32, i32
  }
  func.func @transform_2(%arg0: i32) -> (i32, i32) {
    %c0_i32 = arith.constant 0 : i32
    %c0_i32_0 = arith.constant 0 : i32
    %c0_i32_1 = arith.constant 0 : i32
    return %c0_i32, %c0_i32_0 : i32, i32
  }
  func.func @transform_3(%arg0: i32) -> (i32, i32) {
    %c0_i32 = arith.constant 0 : i32
    %c0_i32_0 = arith.constant 0 : i32
    %c0_i32_1 = arith.constant 0 : i32
    return %c0_i32, %c0_i32_0 : i32, i32
  }
  func.func @transform_4(%arg0: i32) -> (i32, i32) {
    %c0_i32 = arith.constant 0 : i32
    %c0_i32_0 = arith.constant 0 : i32
    %c0_i32_1 = arith.constant 0 : i32
    return %c0_i32, %c0_i32_0 : i32, i32
  }
  func.func @transform_5(%arg0: i32) -> (i32, i32) {
    %c0_i32 = arith.constant 0 : i32
    %c0_i32_0 = arith.constant 0 : i32
    return %arg0, %c0_i32 : i32, i32
  }
}

module attributes {stable_mosaic.version = 11 : i64} {
  func.func @kernel(%arg0: i32, %arg1: memref<16x32xf32, #tpu.memory_space<vmem>>, %arg2: memref<32x32xf32, #tpu.memory_space<vmem>>, %arg3: memref<1x32xf32, #tpu.memory_space<vmem>>, %arg4: memref<16x32xf32, #tpu.memory_space<vmem>>, %arg5: memref<16x32xf32, #tpu.memory_space<vmem>>) attributes {dimension_semantics = [#tpu.dimension_semantics<parallel>], iteration_bounds = array<i64: 1>, scalar_prefetch = 0 : i64, scratch_operands = 0 : i64, tpu.core_type = #tpu.core_type<tc>, window_params = [{transform_indices = @transform_0, window_bounds = array<i64: 16, 32>}, {pipeline_mode = #tpu.pipeline_mode<synchronous>, transform_indices = @transform_1, window_bounds = array<i64: 32, 32>}, {pipeline_mode = #tpu.pipeline_mode<synchronous>, transform_indices = @transform_2, window_bounds = array<i64: 1, 32>}, {transform_indices = @transform_3, window_bounds = array<i64: 16, 32>}, {transform_indices = @transform_4, window_bounds = array<i64: 16, 32>}]} {
    %c0 = arith.constant 0 : index
    %c0_0 = arith.constant 0 : index
    %0 = vector.load %arg1[%c0, %c0_0] : memref<16x32xf32, #tpu.memory_space<vmem>>, vector<16x32xf32>
    %c0_1 = arith.constant 0 : index
    %c0_2 = arith.constant 0 : index
    %1 = vector.load %arg2[%c0_1, %c0_2] : memref<32x32xf32, #tpu.memory_space<vmem>>, vector<32x32xf32>
    %cst = arith.constant dense<0.000000e+00> : vector<16x32xf32>
    %2 = tpu.matmul %0, %1, %cst {dimension_numbers = #tpu.dot_dimension_numbers<[1], [0], [0], [1], [0, 0, 1, 1], [], []>} : vector<16x32xf32>, vector<32x32xf32>, vector<16x32xf32> -> vector<16x32xf32>
    %c0_3 = arith.constant 0 : index
    %c0_4 = arith.constant 0 : index
    %3 = vector.load %arg3[%c0_3, %c0_4] : memref<1x32xf32, #tpu.memory_space<vmem>>, vector<1x32xf32>
    %4 = vector.broadcast %3 : vector<1x32xf32> to vector<16x32xf32>
    %5 = arith.addf %2, %4 : vector<16x32xf32>
    %cst_5 = arith.constant 0.000000e+00 : f32
    %6 = vector.broadcast %cst_5 : f32 to vector<16x32xf32>
    %7 = arith.maximumf %5, %6 : vector<16x32xf32>
    %c0_6 = arith.constant 0 : index
    %c0_7 = arith.constant 0 : index
    %8 = vector.load %arg4[%c0_6, %c0_7] : memref<16x32xf32, #tpu.memory_space<vmem>>, vector<16x32xf32>
    %9 = arith.addf %7, %8 : vector<16x32xf32>
    %c0_8 = arith.constant 0 : index
    %c0_9 = arith.constant 0 : index
    %10 = vector.load %arg5[%c0_8, %c0_9] : memref<16x32xf32, #tpu.memory_space<vmem>>, vector<16x32xf32>
    tpu.vector_store %arg5[%c0_8, %c0_9], %9 {strides = array<i32>} : memref<16x32xf32, #tpu.memory_space<vmem>>, vector<16x32xf32>,
    return
  }
  func.func @transform_0(%arg0: i32) -> (i32, i32) {
    %c0_i32 = arith.constant 0 : i32
    %c0_i32_0 = arith.constant 0 : i32
    return %arg0, %c0_i32 : i32, i32
  }
  func.func @transform_1(%arg0: i32) -> (i32, i32) {
    %c0_i32 = arith.constant 0 : i32
    %c0_i32_0 = arith.constant 0 : i32
    %c0_i32_1 = arith.constant 0 : i32
    return %c0_i32, %c0_i32_0 : i32, i32
  }
  func.func @transform_2(%arg0: i32) -> (i32, i32) {
    %c0_i32 = arith.constant 0 : i32
    %c0_i32_0 = arith.constant 0 : i32
    %c0_i32_1 = arith.constant 0 : i32
    return %c0_i32, %c0_i32_0 : i32, i32
  }
  func.func @transform_3(%arg0: i32) -> (i32, i32) {
    %c0_i32 = arith.constant 0 : i32
    %c0_i32_0 = arith.constant 0 : i32
    return %arg0, %c0_i32 : i32, i32
  }
  func.func @transform_4(%arg0: i32) -> (i32, i32) {
    %c0_i32 = arith.constant 0 : i32
    %c0_i32_0 = arith.constant 0 : i32
    return %arg0, %c0_i32 : i32, i32
  }
}

module attributes {stable_mosaic.version = 11 : i64} {
  func.func @kernel(%arg0: i32, %arg1: memref<16x32xf32, #tpu.memory_space<vmem>>, %arg2: memref<32x2xf32, #tpu.memory_space<vmem>>, %arg3: memref<1x2xf32, #tpu.memory_space<vmem>>, %arg4: memref<16x2xf32, #tpu.memory_space<vmem>>) attributes {dimension_semantics = [#tpu.dimension_semantics<parallel>], iteration_bounds = array<i64: 1>, scalar_prefetch = 0 : i64, scratch_operands = 0 : i64, tpu.core_type = #tpu.core_type<tc>, window_params = [{transform_indices = @transform_0, window_bounds = array<i64: 16, 32>}, {pipeline_mode = #tpu.pipeline_mode<synchronous>, transform_indices = @transform_1, window_bounds = array<i64: 32, 2>}, {pipeline_mode = #tpu.pipeline_mode<synchronous>, transform_indices = @transform_2, window_bounds = array<i64: 1, 2>}, {transform_indices = @transform_3, window_bounds = array<i64: 16, 2>}]} {
    %c0 = arith.constant 0 : index
    %c0_0 = arith.constant 0 : index
    %0 = vector.load %arg1[%c0, %c0_0] : memref<16x32xf32, #tpu.memory_space<vmem>>, vector<16x32xf32>
    %c0_1 = arith.constant 0 : index
    %c0_2 = arith.constant 0 : index
    %1 = vector.load %arg2[%c0_1, %c0_2] : memref<32x2xf32, #tpu.memory_space<vmem>>, vector<32x2xf32>
    %cst = arith.constant dense<0.000000e+00> : vector<16x2xf32>
    %2 = tpu.matmul %0, %1, %cst {dimension_numbers = #tpu.dot_dimension_numbers<[1], [0], [0], [1], [0, 0, 1, 1], [], []>} : vector<16x32xf32>, vector<32x2xf32>, vector<16x2xf32> -> vector<16x2xf32>
    %c0_3 = arith.constant 0 : index
    %c0_4 = arith.constant 0 : index
    %3 = vector.load %arg3[%c0_3, %c0_4] : memref<1x2xf32, #tpu.memory_space<vmem>>, vector<1x2xf32>
    %4 = vector.broadcast %3 : vector<1x2xf32> to vector<16x2xf32>
    %5 = arith.addf %2, %4 : vector<16x2xf32>
    %c0_5 = arith.constant 0 : index
    %c0_6 = arith.constant 0 : index
    %6 = vector.load %arg4[%c0_5, %c0_6] : memref<16x2xf32, #tpu.memory_space<vmem>>, vector<16x2xf32>
    tpu.vector_store %arg4[%c0_5, %c0_6], %5 {strides = array<i32>} : memref<16x2xf32, #tpu.memory_space<vmem>>, vector<16x2xf32>,
    return
  }
  func.func @transform_0(%arg0: i32) -> (i32, i32) {
    %c0_i32 = arith.constant 0 : i32
    %c0_i32_0 = arith.constant 0 : i32
    return %arg0, %c0_i32 : i32, i32
  }
  func.func @transform_1(%arg0: i32) -> (i32, i32) {
    %c0_i32 = arith.constant 0 : i32
    %c0_i32_0 = arith.constant 0 : i32
    %c0_i32_1 = arith.constant 0 : i32
    return %c0_i32, %c0_i32_0 : i32, i32
  }
  func.func @transform_2(%arg0: i32) -> (i32, i32) {
    %c0_i32 = arith.constant 0 : i32
    %c0_i32_0 = arith.constant 0 : i32
    %c0_i32_1 = arith.constant 0 : i32
    return %c0_i32, %c0_i32_0 : i32, i32
  }
  func.func @transform_3(%arg0: i32) -> (i32, i32) {
    %c0_i32 = arith.constant 0 : i32
    %c0_i32_0 = arith.constant 0 : i32
    return %arg0, %c0_i32 : i32, i32
  }
}

</mosaic_0001>

<llo_original>
// kernel: _lambda_.53
$region0: #{_lambda_.53}
  #allocation0 [shape = 'u32[]', space=smem, size = 0x4, offset = 0x4, fixed_abs, tag = 'smem constant byte address 0x4 - core index']
  #allocation1 [shape = 'u32[72,128]{1,0:T(1,128)}', space=vmem, size = 0x9000, scoped, tag = 'internal scratch']
  %s0 = inlined_call_operand.vmem [shape: f32[16,32], index: 0, kind: input, shape index: {}]
  %s1 = inlined_call_operand.vmem [shape: f32[32,16], index: 1, kind: input, shape index: {}]
  %s2 = inlined_call_operand.vmem [shape: f32[1,16], index: 2, kind: input, shape index: {}]
  %s3 = inlined_call_operand.vmem [shape: f32[16,16], index: 3, kind: output, shape index: {}]
  %s4 = sld [smem:[#allocation0]]
  $region22: #{_lambda_.53} parent=0
    _
  %s6 = ssub.s32 1, %s4
  %s7 = scalar_select 0, %s6, %s4
  // Predicated region
  $region2: #{_lambda_.53} parent=0 // pred_check
    _
  $region3: #{_lambda_.53} parent=0 // pred_check_branch
    %9 = sbr.rel (0) target = $region5
  $region4: #{_lambda_.53} parent=0 // pred_region
    _
  $region5: #{_lambda_.53} parent=0 // pred_fallthru
    _
  // Predicated region
  $region6: #{_lambda_.53} parent=0 // pred_check
    _
  $region7: #{_lambda_.53} parent=0 // pred_check_branch
    %11 = sbr.rel (0) target = $region9
  $region8: #{_lambda_.53} parent=0 // pred_region
    _
  $region9: #{_lambda_.53} parent=0 // pred_fallthru
    _
  // Predicated region
  $region10: #{_lambda_.53} parent=0 // pred_check
    _
  $region11: #{_lambda_.53} parent=0 // pred_check_branch
    %13 = sbr.rel (0) target = $region13
  $region12: #{_lambda_.53} parent=0 // pred_region
    _
  $region13: #{_lambda_.53} parent=0 // pred_fallthru
    _
  %v14 = vld [vmem:[%s0] sm:$0xff]
  %v15 = vld [vmem:[%s0 + $0x8] sm:$0xff]
  %v16 = vld [vmem:[%s1] sm:$0xff]
  %v17 = vld [vmem:[%s1 + $0x8] sm:$0xff]
  %v18 = vld [vmem:[%s1 + $0x10] sm:$0xff]
  %v19 = vld [vmem:[%s1 + $0x18] sm:$0xff]
  %v20 = vld [vmem:[%s2] sm:$0x1]
  %v22 = vperm.slane %v20, 0
  %vm24 = vcmask 261120
  %v26 = vsel %vm24, %v14, 0
  %v29 = vsel %vm24, %v15, 0
  %31 = vmatpush.msra.mxu0 0.0
  %32 = vmatpush.msra.mxu0 0.0
  %33 = vmatpush.msra.mxu0 0.0
  %34 = vmatpush.msra.mxu0 0.0
  %35 = vmatpush.msra.mxu0 0.0
  %36 = vmatpush.msra.mxu0 0.0
  %37 = vmatpush.msra.mxu0 0.0
  %38 = vmatpush.msra.mxu0 0.0
  %39 = vmatpush.msra.mxu0 0.0
  %40 = vmatpush.msra.mxu0 0.0
  %41 = vmatpush.msra.mxu0 0.0
  %42 = vmatpush.msra.mxu0 0.0
  %43 = vmatpush.msra.mxu0 %v19
  %44 = vmatpush.msra.mxu0 %v18
  %45 = vmatpush.msra.mxu0 %v17
  %46 = vmatpush.msra.mxu0 %v16
  %47 = vmatmul.f32.gmra.mxu0 %v26
  %v48 = vpop.f32.mrf.mxu0
  %v49 = vadd.f32 %v22, %v48
  %50 = vmatmul.f32.gmra.mxu0 %v29
  %v51 = vpop.f32.mrf.mxu0
  %v52 = vadd.f32 %v22, %v51
  %53 = vdwg.mxu0
  %vm54 = vcmask 130048
  %55 = vst.msk [vmem:[%s3] sm:$0xff] %vm54, %v49
  %56 = vst.msk [vmem:[%s3 + $0x8] sm:$0xff] %vm54, %v52
  // Predicated region
  $region14: #{_lambda_.53} parent=0 // pred_check
    _
  $region15: #{_lambda_.53} parent=0 // pred_check_branch
    %58 = sbr.rel (0) target = $region17
  $region16: #{_lambda_.53} parent=0 // pred_region
    _
  $region17: #{_lambda_.53} parent=0 // pred_fallthru
    _
  // Predicated region
  $region18: #{_lambda_.53} parent=0 // pred_check
    _
  $region19: #{_lambda_.53} parent=0 // pred_check_branch
    %60 = sbr.rel (0) target = $region21
  $region20: #{_lambda_.53} parent=0 // pred_region
    _
  $region21: #{_lambda_.53} parent=0 // pred_fallthru
    _

// kernel: _lambda_.47
$region0: #{_lambda_.47}
  #allocation0 [shape = 'u32[]', space=smem, size = 0x4, offset = 0x4, fixed_abs, tag = 'smem constant byte address 0x4 - core index']
  #allocation1 [shape = 'u32[72,128]{1,0:T(1,128)}', space=vmem, size = 0x9000, scoped, tag = 'internal scratch']
  %s0 = inlined_call_operand.vmem [shape: f32[16,32], index: 0, kind: input, shape index: {}]
  %s1 = inlined_call_operand.vmem [shape: f32[32,384], index: 1, kind: input, shape index: {}]
  %s2 = inlined_call_operand.vmem [shape: f32[1,384], index: 2, kind: input, shape index: {}]
  %s3 = inlined_call_operand.vmem [shape: f32[16,384], index: 3, kind: output, shape index: {}]
  %s4 = sld [smem:[#allocation0]]
  $region22: #{_lambda_.47} parent=0
    _
  %s6 = ssub.s32 1, %s4
  %s7 = scalar_select 0, %s6, %s4
  // Predicated region
  $region2: #{_lambda_.47} parent=0 // pred_check
    _
  $region3: #{_lambda_.47} parent=0 // pred_check_branch
    %9 = sbr.rel (0) target = $region5
  $region4: #{_lambda_.47} parent=0 // pred_region
    _
  $region5: #{_lambda_.47} parent=0 // pred_fallthru
    _
  // Predicated region
  $region6: #{_lambda_.47} parent=0 // pred_check
    _
  $region7: #{_lambda_.47} parent=0 // pred_check_branch
    %11 = sbr.rel (0) target = $region9
  $region8: #{_lambda_.47} parent=0 // pred_region
    _
  $region9: #{_lambda_.47} parent=0 // pred_fallthru
    _
  // Predicated region
  $region10: #{_lambda_.47} parent=0 // pred_check
    _
  $region11: #{_lambda_.47} parent=0 // pred_check_branch
    %13 = sbr.rel (0) target = $region13
  $region12: #{_lambda_.47} parent=0 // pred_region
    _
  $region13: #{_lambda_.47} parent=0 // pred_fallthru
    _
  %v14 = vld [vmem:[%s0] sm:$0xff]
  %v15 = vld [vmem:[%s0 + $0x8] sm:$0xff]
  %v16 = vld [vmem:[%s1] sm:$0xff]
  %v17 = vld [vmem:[%s1 + $0x8] sm:$0xff]
  %v18 = vld [vmem:[%s1 + $0x10] sm:$0xff]
  %v19 = vld [vmem:[%s1 + $0x18] sm:$0xff]
  %v20 = vld [vmem:[%s1 + $0x20] sm:$0xff]
  %v21 = vld [vmem:[%s1 + $0x28] sm:$0xff]
  %v22 = vld [vmem:[%s1 + $0x30] sm:$0xff]
  %v23 = vld [vmem:[%s1 + $0x38] sm:$0xff]
  %v24 = vld [vmem:[%s1 + $0x40] sm:$0xff]
  %v25 = vld [vmem:[%s1 + $0x48] sm:$0xff]
  %v26 = vld [vmem:[%s1 + $0x50] sm:$0xff]
  %v27 = vld [vmem:[%s1 + $0x58] sm:$0xff]
  %v28 = vld [vmem:[%s2] sm:$0x7]
  %v30 = vperm.slane %v28, 0
  %v31 = vperm.slane %v28, 1
  %v32 = vperm.slane %v28, 2
  %vm36 = vcmask 261120
  %v38 = vsel %vm36, %v14, 0
  %v41 = vsel %vm36, %v15, 0
  %43 = vmatpush.msra.mxu0 0.0
  %44 = vmatpush.msra.mxu0 0.0
  %45 = vmatpush.msra.mxu0 0.0
  %46 = vmatpush.msra.mxu0 0.0
  %47 = vmatpush.msra.mxu0 0.0
  %48 = vmatpush.msra.mxu0 0.0
  %49 = vmatpush.msra.mxu0 0.0
  %50 = vmatpush.msra.mxu0 0.0
  %51 = vmatpush.msra.mxu0 0.0
  %52 = vmatpush.msra.mxu0 0.0
  %53 = vmatpush.msra.mxu0 0.0
  %54 = vmatpush.msra.mxu0 0.0
  %55 = vmatpush.msra.mxu0 %v25
  %56 = vmatpush.msra.mxu0 %v22
  %57 = vmatpush.msra.mxu0 %v19
  %58 = vmatpush.msra.mxu0 %v16
  %59 = vmatmul.f32.gmra.mxu0 %v38
  %v60 = vpop.f32.mrf.mxu0
  %v61 = vadd.f32 %v30, %v60
  %62 = vmatmul.f32.gmra.mxu0 %v41
  %v63 = vpop.f32.mrf.mxu0
  %v64 = vadd.f32 %v30, %v63
  %65 = vdwg.mxu0
  %66 = vmatpush.msra.mxu0 0.0
  %67 = vmatpush.msra.mxu0 0.0
  %68 = vmatpush.msra.mxu0 0.0
  %69 = vmatpush.msra.mxu0 0.0
  %70 = vmatpush.msra.mxu0 0.0
  %71 = vmatpush.msra.mxu0 0.0
  %72 = vmatpush.msra.mxu0 0.0
  %73 = vmatpush.msra.mxu0 0.0
  %74 = vmatpush.msra.mxu0 0.0
  %75 = vmatpush.msra.mxu0 0.0
  %76 = vmatpush.msra.mxu0 0.0
  %77 = vmatpush.msra.mxu0 0.0
  %78 = vmatpush.msra.mxu0 %v26
  %79 = vmatpush.msra.mxu0 %v23
  %80 = vmatpush.msra.mxu0 %v20
  %81 = vmatpush.msra.mxu0 %v17
  %82 = vmatmul.f32.gmra.mxu0 %v38
  %v83 = vpop.f32.mrf.mxu0
  %v84 = vadd.f32 %v31, %v83
  %85 = vmatmul.f32.gmra.mxu0 %v41
  %v86 = vpop.f32.mrf.mxu0
  %v87 = vadd.f32 %v31, %v86
  %88 = vdwg.mxu0
  %89 = vmatpush.msra.mxu0 0.0
  %90 = vmatpush.msra.mxu0 0.0
  %91 = vmatpush.msra.mxu0 0.0
  %92 = vmatpush.msra.mxu0 0.0
  %93 = vmatpush.msra.mxu0 0.0
  %94 = vmatpush.msra.mxu0 0.0
  %95 = vmatpush.msra.mxu0 0.0
  %96 = vmatpush.msra.mxu0 0.0
  %97 = vmatpush.msra.mxu0 0.0
  %98 = vmatpush.msra.mxu0 0.0
  %99 = vmatpush.msra.mxu0 0.0
  %100 = vmatpush.msra.mxu0 0.0
  %101 = vmatpush.msra.mxu0 %v27
  %102 = vmatpush.msra.mxu0 %v24
  %103 = vmatpush.msra.mxu0 %v21
  %104 = vmatpush.msra.mxu0 %v18
  %105 = vmatmul.f32.gmra.mxu0 %v38
  %v106 = vpop.f32.mrf.mxu0
  %v107 = vadd.f32 %v32, %v106
  %108 = vmatmul.f32.gmra.mxu0 %v41
  %v109 = vpop.f32.mrf.mxu0
  %v110 = vadd.f32 %v32, %v109
  %111 = vdwg.mxu0
  %112 = vst [vmem:[%s3] sm:$0xff] %v61
  %113 = vst [vmem:[%s3 + $0x8] sm:$0xff] %v84
  %114 = vst [vmem:[%s3 + $0x10] sm:$0xff] %v107
  %115 = vst [vmem:[%s3 + $0x18] sm:$0xff] %v64
  %116 = vst [vmem:[%s3 + $0x20] sm:$0xff] %v87
  %117 = vst [vmem:[%s3 + $0x28] sm:$0xff] %v110
  // Predicated region
  $region14: #{_lambda_.47} parent=0 // pred_check
    _
  $region15: #{_lambda_.47} parent=0 // pred_check_branch
    %119 = sbr.rel (0) target = $region17
  $region16: #{_lambda_.47} parent=0 // pred_region
    _
  $region17: #{_lambda_.47} parent=0 // pred_fallthru
    _
  // Predicated region
  $region18: #{_lambda_.47} parent=0 // pred_check
    _
  $region19: #{_lambda_.47} parent=0 // pred_check_branch
    %121 = sbr.rel (0) target = $region21
  $region20: #{_lambda_.47} parent=0 // pred_region
    _
  $region21: #{_lambda_.47} parent=0 // pred_fallthru
    _

// kernel: _lambda_.48
$region0: #{_lambda_.48}
  #allocation0 [shape = 'u32[]', space=smem, size = 0x4, offset = 0x4, fixed_abs, tag = 'smem constant byte address 0x4 - core index']
  #allocation1 [shape = 'u32[72,128]{1,0:T(1,128)}', space=vmem, size = 0x9000, scoped, tag = 'internal scratch']
  %s0 = inlined_call_operand.vmem [shape: f32[128,16], index: 0, kind: input, shape index: {}]
  %s1 = inlined_call_operand.vmem [shape: f32[16,4], index: 1, kind: input, shape index: {}]
  %s2 = inlined_call_operand.vmem [shape: f32[1,4], index: 2, kind: input, shape index: {}]
  %s3 = inlined_call_operand.vmem [shape: f32[128,4], index: 3, kind: output, shape index: {}]
  %s4 = sld [smem:[#allocation0]]
  $region22: #{_lambda_.48} parent=0
    _
  %s6 = ssub.s32 1, %s4
  %s7 = scalar_select 0, %s6, %s4
  // Predicated region
  $region2: #{_lambda_.48} parent=0 // pred_check
    _
  $region3: #{_lambda_.48} parent=0 // pred_check_branch
    %9 = sbr.rel (0) target = $region5
  $region4: #{_lambda_.48} parent=0 // pred_region
    _
  $region5: #{_lambda_.48} parent=0 // pred_fallthru
    _
  // Predicated region
  $region6: #{_lambda_.48} parent=0 // pred_check
    _
  $region7: #{_lambda_.48} parent=0 // pred_check_branch
    %11 = sbr.rel (0) target = $region9
  $region8: #{_lambda_.48} parent=0 // pred_region
    _
  $region9: #{_lambda_.48} parent=0 // pred_fallthru
    _
  // Predicated region
  $region10: #{_lambda_.48} parent=0 // pred_check
    _
  $region11: #{_lambda_.48} parent=0 // pred_check_branch
    %13 = sbr.rel (0) target = $region13
  $region12: #{_lambda_.48} parent=0 // pred_region
    _
  $region13: #{_lambda_.48} parent=0 // pred_fallthru
    _
  %v14 = vld [vmem:[%s0] sm:$0xff]
  %v15 = vld [vmem:[%s0 + $0x8] sm:$0xff]
  %v16 = vld [vmem:[%s0 + $0x10] sm:$0xff]
  %v17 = vld [vmem:[%s0 + $0x18] sm:$0xff]
  %v18 = vld [vmem:[%s0 + $0x20] sm:$0xff]
  %v19 = vld [vmem:[%s0 + $0x28] sm:$0xff]
  %v20 = vld [vmem:[%s0 + $0x30] sm:$0xff]
  %v21 = vld [vmem:[%s0 + $0x38] sm:$0xff]
  %v22 = vld [vmem:[%s0 + $0x40] sm:$0xff]
  %v23 = vld [vmem:[%s0 + $0x48] sm:$0xff]
  %v24 = vld [vmem:[%s0 + $0x50] sm:$0xff]
  %v25 = vld [vmem:[%s0 + $0x58] sm:$0xff]
  %v26 = vld [vmem:[%s0 + $0x60] sm:$0xff]
  %v27 = vld [vmem:[%s0 + $0x68] sm:$0xff]
  %v28 = vld [vmem:[%s0 + $0x70] sm:$0xff]
  %v29 = vld [vmem:[%s0 + $0x78] sm:$0xff]
  %v30 = vld [vmem:[%s1] sm:$0xff]
  %v31 = vld [vmem:[%s1 + $0x8] sm:$0xff]
  %v32 = vld [vmem:[%s2] sm:$0x1]
  %v34 = vperm.slane %v32, 0
  %vm36 = vcmask 130048
  %v38 = vsel %vm36, %v14, 0
  %v41 = vsel %vm36, %v15, 0
  %v44 = vsel %vm36, %v16, 0
  %v47 = vsel %vm36, %v17, 0
  %v50 = vsel %vm36, %v18, 0
  %v53 = vsel %vm36, %v19, 0
  %v56 = vsel %vm36, %v20, 0
  %v59 = vsel %vm36, %v21, 0
  %v62 = vsel %vm36, %v22, 0
  %v65 = vsel %vm36, %v23, 0
  %v68 = vsel %vm36, %v24, 0
  %v71 = vsel %vm36, %v25, 0
  %v74 = vsel %vm36, %v26, 0
  %v77 = vsel %vm36, %v27, 0
  %v80 = vsel %vm36, %v28, 0
  %v83 = vsel %vm36, %v29, 0
  %85 = vmatpush.msra.mxu0 0.0
  %86 = vmatpush.msra.mxu0 0.0
  %87 = vmatpush.msra.mxu0 0.0
  %88 = vmatpush.msra.mxu0 0.0
  %89 = vmatpush.msra.mxu0 0.0
  %90 = vmatpush.msra.mxu0 0.0
  %91 = vmatpush.msra.mxu0 0.0
  %92 = vmatpush.msra.mxu0 0.0
  %93 = vmatpush.msra.mxu0 0.0
  %94 = vmatpush.msra.mxu0 0.0
  %95 = vmatpush.msra.mxu0 0.0
  %96 = vmatpush.msra.mxu0 0.0
  %97 = vmatpush.msra.mxu0 0.0
  %98 = vmatpush.msra.mxu0 0.0
  %99 = vmatpush.msra.mxu0 %v31
  %100 = vmatpush.msra.mxu0 %v30
  %101 = vmatmul.f32.gmra.mxu0 %v38
  %v102 = vpop.f32.mrf.mxu0
  %v103 = vadd.f32 %v34, %v102
  %104 = vmatmul.f32.gmra.mxu0 %v41
  %v105 = vpop.f32.mrf.mxu0
  %v106 = vadd.f32 %v34, %v105
  %107 = vmatmul.f32.gmra.mxu0 %v44
  %v108 = vpop.f32.mrf.mxu0
  %v109 = vadd.f32 %v34, %v108
  %110 = vmatmul.f32.gmra.mxu0 %v47
  %v111 = vpop.f32.mrf.mxu0
  %v112 = vadd.f32 %v34, %v111
  %113 = vmatmul.f32.gmra.mxu0 %v50
  %v114 = vpop.f32.mrf.mxu0
  %v115 = vadd.f32 %v34, %v114
  %116 = vmatmul.f32.gmra.mxu0 %v53
  %v117 = vpop.f32.mrf.mxu0
  %v118 = vadd.f32 %v34, %v117
  %119 = vmatmul.f32.gmra.mxu0 %v56
  %v120 = vpop.f32.mrf.mxu0
  %v121 = vadd.f32 %v34, %v120
  %122 = vmatmul.f32.gmra.mxu0 %v59
  %v123 = vpop.f32.mrf.mxu0
  %v124 = vadd.f32 %v34, %v123
  %125 = vmatmul.f32.gmra.mxu0 %v62
  %v126 = vpop.f32.mrf.mxu0
  %v127 = vadd.f32 %v34, %v126
  %128 = vmatmul.f32.gmra.mxu0 %v65
  %v129 = vpop.f32.mrf.mxu0
  %v130 = vadd.f32 %v34, %v129
  %131 = vmatmul.f32.gmra.mxu0 %v68
  %v132 = vpop.f32.mrf.mxu0
  %v133 = vadd.f32 %v34, %v132
  %134 = vmatmul.f32.gmra.mxu0 %v71
  %v135 = vpop.f32.mrf.mxu0
  %v136 = vadd.f32 %v34, %v135
  %137 = vmatmul.f32.gmra.mxu0 %v74
  %v138 = vpop.f32.mrf.mxu0
  %v139 = vadd.f32 %v34, %v138
  %140 = vmatmul.f32.gmra.mxu0 %v77
  %v141 = vpop.f32.mrf.mxu0
  %v142 = vadd.f32 %v34, %v141
  %143 = vmatmul.f32.gmra.mxu0 %v80
  %v144 = vpop.f32.mrf.mxu0
  %v145 = vadd.f32 %v34, %v144
  %146 = vmatmul.f32.gmra.mxu0 %v83
  %v147 = vpop.f32.mrf.mxu0
  %v148 = vadd.f32 %v34, %v147
  %149 = vdwg.mxu0
  %vm150 = vcmask 31744
  %151 = vst.msk [vmem:[%s3] sm:$0xff] %vm150, %v103
  %152 = vst.msk [vmem:[%s3 + $0x8] sm:$0xff] %vm150, %v106
  %153 = vst.msk [vmem:[%s3 + $0x10] sm:$0xff] %vm150, %v109
  %154 = vst.msk [vmem:[%s3 + $0x18] sm:$0xff] %vm150, %v112
  %155 = vst.msk [vmem:[%s3 + $0x20] sm:$0xff] %vm150, %v115
  %156 = vst.msk [vmem:[%s3 + $0x28] sm:$0xff] %vm150, %v118
  %157 = vst.msk [vmem:[%s3 + $0x30] sm:$0xff] %vm150, %v121
  %158 = vst.msk [vmem:[%s3 + $0x38] sm:$0xff] %vm150, %v124
  %159 = vst.msk [vmem:[%s3 + $0x40] sm:$0xff] %vm150, %v127
  %160 = vst.msk [vmem:[%s3 + $0x48] sm:$0xff] %vm150, %v130
  %161 = vst.msk [vmem:[%s3 + $0x50] sm:$0xff] %vm150, %v133
  %162 = vst.msk [vmem:[%s3 + $0x58] sm:$0xff] %vm150, %v136
  %163 = vst.msk [vmem:[%s3 + $0x60] sm:$0xff] %vm150, %v139
  %164 = vst.msk [vmem:[%s3 + $0x68] sm:$0xff] %vm150, %v142
  %165 = vst.msk [vmem:[%s3 + $0x70] sm:$0xff] %vm150, %v145
  %166 = vst.msk [vmem:[%s3 + $0x78] sm:$0xff] %vm150, %v148
  // Predicated region
  $region14: #{_lambda_.48} parent=0 // pred_check
    _
  $region15: #{_lambda_.48} parent=0 // pred_check_branch
    %168 = sbr.rel (0) target = $region17
  $region16: #{_lambda_.48} parent=0 // pred_region
    _
  $region17: #{_lambda_.48} parent=0 // pred_fallthru
    _
  // Predicated region
  $region18: #{_lambda_.48} parent=0 // pred_check
    _
  $region19: #{_lambda_.48} parent=0 // pred_check_branch
    %170 = sbr.rel (0) target = $region21
  $region20: #{_lambda_.48} parent=0 // pred_region
    _
  $region21: #{_lambda_.48} parent=0 // pred_fallthru
    _

// kernel: _lambda_.50
$region0: #{_lambda_.50}
  #allocation0 [shape = 'u32[]', space=smem, size = 0x4, offset = 0x4, fixed_abs, tag = 'smem constant byte address 0x4 - core index']
  #allocation1 [shape = 'u32[72,128]{1,0:T(1,128)}', space=vmem, size = 0x9000, scoped, tag = 'internal scratch']
  %s0 = inlined_call_operand.vmem [shape: f32[2,4,8,30], index: 0, kind: input, shape index: {}]
  %s1 = inlined_call_operand.vmem [shape: f32[2,4,8,30], index: 1, kind: input, shape index: {}]
  %s2 = inlined_call_operand.vmem [shape: f32[2,4,8,16], index: 2, kind: input, shape index: {}]
  %s3 = inlined_call_operand.vmem [shape: f32[2,4,8,24], index: 3, kind: input, shape index: {}]
  %s4 = inlined_call_operand.vmem [shape: f32[2,4,8,8], index: 4, kind: input, shape index: {}]
  %s5 = inlined_call_operand.vmem [shape: f32[2,8,4,8], index: 5, kind: input, shape index: {}]
  %s6 = inlined_call_operand.vmem [shape: f32[2,8,8], index: 6, kind: input, shape index: {}]
  %s7 = inlined_call_operand.vmem [shape: f32[2,8,64], index: 7, kind: output, shape index: {0}]
  %s8 = inlined_call_operand.vmem [shape: f32[2,8,96], index: 8, kind: output, shape index: {1}]
  %s9 = inlined_call_operand.vmem [shape: f32[2,8,16], index: 9, kind: output, shape index: {2}]
  %10 = xla_tuple %s7, %s8, %s9
  %s11 = sld [smem:[#allocation0]]
  $region77: #{_lambda_.50} parent=0
    _
  %s13 = ssub.s32 1, %s11
  %s14 = scalar_select 0, %s13, %s11
  loop: start=0, step=1, limit=4
  $region2: #{_lambda_.50} parent=0 // loop_pre_header
    _
  $region3: #{_lambda_.50} parent=0 // loop_header
    %s16 = sphi 0, %s20
    %p17 = scmp.ge.s32.totalorder %s16, 4
    %s23 = sphi 0, %s35
    %s24 = sphi 0, %s31
    %s25 = sphi 0, %s23
    %s26 = sphi 0, %s24
    %s27 = sphi 0, %s25
    %s28 = sphi 0, %s26
    %s40 = sphi 0, %s42
    %s43 = sphi 0, %s40
    %s44 = sphi 0, %s43
    %s60 = sphi 0, %s44
    %s66 = sphi 0, %s68
    %s69 = sphi 0, %s66
    %s70 = sphi 0, %s69
    %s86 = sphi 0, %s70
    %s92 = sphi 0, %s94
    %s95 = sphi 0, %s92
    %s96 = sphi 0, %s95
    %s112 = sphi 0, %s96
    %s118 = sphi 0, %s120
    %s121 = sphi 0, %s118
    %s122 = sphi 0, %s121
    %s138 = sphi 0, %s122
    %s146 = sphi 0, %s148
    %s149 = sphi 0, %s146
    %s150 = sphi 0, %s149
    %s166 = sphi 0, %s150
    %s174 = sphi 0, %s176
    %s177 = sphi 0, %s174
    %s178 = sphi 0, %s177
    %s194 = sphi 0, %s178
    %s202 = sphi 0, %s204
    %s205 = sphi 0, %s202
    %s206 = sphi 0, %s205
    %s222 = sphi 0, %s206
    %s230 = sphi 0, %s232
    %s233 = sphi 0, %s230
    %s234 = sphi 0, %s233
    %s250 = sphi 0, %s234
    %s258 = sphi 0, %s260
    %s261 = sphi 0, %s258
    %s262 = sphi 0, %s261
    %s278 = sphi 0, %s262
    %s286 = sphi 0, %s288
    %s289 = sphi 0, %s286
    %s290 = sphi 0, %s289
    %s306 = sphi 0, %s290
  $region4: #{_lambda_.50} parent=0 // loop_header_branch
    %19 = sbr.rel (%p17) target = $region8
  $region5: #{_lambda_.50} parent=0 // loop_body
    %s21 = ssub.s32 %s16, 1
    %s22 = ssub.s32 %s16, 2
    %s29 = sadd.s32 1, %s24
    %p30 = scmp.ge.s32.totalorder %s29, 1
    %s31 = scalar_select %p30, 0, %s29
    %s32 = sadd.s32 1, %s23
    %s33 = scalar_select %p30, %s32, %s23
    %p34 = scmp.ge.s32.totalorder %s33, 2
    %s35 = scalar_select %p34, 0, %s33
    %s36 = ssub.s32 %s23, %s35
    %s37 = ssub.s32 %s24, %s31
    %s38 = sor.u32 %s36, %s37
    %p39 = scmp.eq.s32.totalorder %s38, 0
    %s41 = sadd.s32 %s40, 1
    %s42 = scalar_select %p39, %s40, %s41
    %p45 = pneg %p39
    %p46 = scmp.eq.s32.totalorder %s16, 1
    %p47 = por %p45, %p46
    %p48 = scmp.ne.s32.totalorder %s40, %s43
    %p49 = scmp.eq.s32.totalorder %s16, 0
    %p50 = por %p48, %p49
    %p51 = scmp.ne.s32.totalorder %s40, %s43
    %p52 = scmp.eq.s32.totalorder %s21, 1
    %p53 = por %p51, %p52
    %p54 = scmp.ne.s32.totalorder %s43, %s44
    %p55 = scmp.eq.s32.totalorder %s21, 0
    %p56 = por %p54, %p55
    %p57 = scmp.ne.s32.totalorder %s43, %s44
    %p58 = scmp.eq.s32.totalorder %s22, 1
    %p59 = por %p57, %p58
    %p61 = scmp.ne.s32.totalorder %s44, %s60
    %p62 = scmp.eq.s32.totalorder %s22, 0
    %p63 = por %p61, %p62
    %s64 = ssub.s32 %s23, %s35
    %p65 = scmp.eq.s32.totalorder %s64, 0
    %s67 = sadd.s32 %s66, 1
    %s68 = scalar_select %p65, %s66, %s67
    %p71 = pneg %p65
    %p72 = scmp.eq.s32.totalorder %s16, 1
    %p73 = por %p71, %p72
    %p74 = scmp.ne.s32.totalorder %s66, %s69
    %p75 = scmp.eq.s32.totalorder %s16, 0
    %p76 = por %p74, %p75
    %p77 = scmp.ne.s32.totalorder %s66, %s69
    %p78 = scmp.eq.s32.totalorder %s21, 1
    %p79 = por %p77, %p78
    %p80 = scmp.ne.s32.totalorder %s69, %s70
    %p81 = scmp.eq.s32.totalorder %s21, 0
    %p82 = por %p80, %p81
    %p83 = scmp.ne.s32.totalorder %s69, %s70
    %p84 = scmp.eq.s32.totalorder %s22, 1
    %p85 = por %p83, %p84
    %p87 = scmp.ne.s32.totalorder %s70, %s86
    %p88 = scmp.eq.s32.totalorder %s22, 0
    %p89 = por %p87, %p88
    %s90 = ssub.s32 %s23, %s35
    %p91 = scmp.eq.s32.totalorder %s90, 0
    %s93 = sadd.s32 %s92, 1
    %s94 = scalar_select %p91, %s92, %s93
    %p97 = pneg %p91
    %p98 = scmp.eq.s32.totalorder %s16, 1
    %p99 = por %p97, %p98
    %p100 = scmp.ne.s32.totalorder %s92, %s95
    %p101 = scmp.eq.s32.totalorder %s16, 0
    %p102 = por %p100, %p101
    %p103 = scmp.ne.s32.totalorder %s92, %s95
    %p104 = scmp.eq.s32.totalorder %s21, 1
    %p105 = por %p103, %p104
    %p106 = scmp.ne.s32.totalorder %s95, %s96
    %p107 = scmp.eq.s32.totalorder %s21, 0
    %p108 = por %p106, %p107
    %p109 = scmp.ne.s32.totalorder %s95, %s96
    %p110 = scmp.eq.s32.totalorder %s22, 1
    %p111 = por %p109, %p110
    %p113 = scmp.ne.s32.totalorder %s96, %s112
    %p114 = scmp.eq.s32.totalorder %s22, 0
    %p115 = por %p113, %p114
    %s116 = ssub.s32 %s23, %s35
    %p117 = scmp.eq.s32.totalorder %s116, 0
    %s119 = sadd.s32 %s118, 1
    %s120 = scalar_select %p117, %s118, %s119
    %p123 = pneg %p117
    %p124 = scmp.eq.s32.totalorder %s16, 1
    %p125 = por %p123, %p124
    %p126 = scmp.ne.s32.totalorder %s118, %s121
    %p127 = scmp.eq.s32.totalorder %s16, 0
    %p128 = por %p126, %p127
    %p129 = scmp.ne.s32.totalorder %s118, %s121
    %p130 = scmp.eq.s32.totalorder %s21, 1
    %p131 = por %p129, %p130
    %p132 = scmp.ne.s32.totalorder %s121, %s122
    %p133 = scmp.eq.s32.totalorder %s21, 0
    %p134 = por %p132, %p133
    %p135 = scmp.ne.s32.totalorder %s121, %s122
    %p136 = scmp.eq.s32.totalorder %s22, 1
    %p137 = por %p135, %p136
    %p139 = scmp.ne.s32.totalorder %s122, %s138
    %p140 = scmp.eq.s32.totalorder %s22, 0
    %p141 = por %p139, %p140
    %s142 = ssub.s32 %s23, %s35
    %s143 = ssub.s32 %s24, %s31
    %s144 = sor.u32 %s142, %s143
    %p145 = scmp.eq.s32.totalorder %s144, 0
    %s147 = sadd.s32 %s146, 1
    %s148 = scalar_select %p145, %s146, %s147
    %p151 = pneg %p145
    %p152 = scmp.eq.s32.totalorder %s16, 1
    %p153 = por %p151, %p152
    %p154 = scmp.ne.s32.totalorder %s146, %s149
    %p155 = scmp.eq.s32.totalorder %s16, 0
    %p156 = por %p154, %p155
    %p157 = scmp.ne.s32.totalorder %s146, %s149
    %p158 = scmp.eq.s32.totalorder %s21, 1
    %p159 = por %p157, %p158
    %p160 = scmp.ne.s32.totalorder %s149, %s150
    %p161 = scmp.eq.s32.totalorder %s21, 0
    %p162 = por %p160, %p161
    %p163 = scmp.ne.s32.totalorder %s149, %s150
    %p164 = scmp.eq.s32.totalorder %s22, 1
    %p165 = por %p163, %p164
    %p167 = scmp.ne.s32.totalorder %s150, %s166
    %p168 = scmp.eq.s32.totalorder %s22, 0
    %p169 = por %p167, %p168
    %s170 = ssub.s32 %s23, %s35
    %s171 = ssub.s32 %s24, %s31
    %s172 = sor.u32 %s170, %s171
    %p173 = scmp.eq.s32.totalorder %s172, 0
    %s175 = sadd.s32 %s174, 1
    %s176 = scalar_select %p173, %s174, %s175
    %p179 = pneg %p173
    %p180 = scmp.eq.s32.totalorder %s16, 1
    %p181 = por %p179, %p180
    %p182 = scmp.ne.s32.totalorder %s174, %s177
    %p183 = scmp.eq.s32.totalorder %s16, 0
    %p184 = por %p182, %p183
    %p185 = scmp.ne.s32.totalorder %s174, %s177
    %p186 = scmp.eq.s32.totalorder %s21, 1
    %p187 = por %p185, %p186
    %p188 = scmp.ne.s32.totalorder %s177, %s178
    %p189 = scmp.eq.s32.totalorder %s21, 0
    %p190 = por %p188, %p189
    %p191 = scmp.ne.s32.totalorder %s177, %s178
    %p192 = scmp.eq.s32.totalorder %s22, 1
    %p193 = por %p191, %p192
    %p195 = scmp.ne.s32.totalorder %s178, %s194
    %p196 = scmp.eq.s32.totalorder %s22, 0
    %p197 = por %p195, %p196
    %s198 = ssub.s32 %s23, %s35
    %s199 = ssub.s32 %s24, %s31
    %s200 = sor.u32 %s198, %s199
    %p201 = scmp.eq.s32.totalorder %s200, 0
    %s203 = sadd.s32 %s202, 1
    %s204 = scalar_select %p201, %s202, %s203
    %p207 = pneg %p201
    %p208 = scmp.eq.s32.totalorder %s16, 1
    %p209 = por %p207, %p208
    %p210 = scmp.ne.s32.totalorder %s202, %s205
    %p211 = scmp.eq.s32.totalorder %s16, 0
    %p212 = por %p210, %p211
    %p213 = scmp.ne.s32.totalorder %s202, %s205
    %p214 = scmp.eq.s32.totalorder %s21, 1
    %p215 = por %p213, %p214
    %p216 = scmp.ne.s32.totalorder %s205, %s206
    %p217 = scmp.eq.s32.totalorder %s21, 0
    %p218 = por %p216, %p217
    %p219 = scmp.ne.s32.totalorder %s205, %s206
    %p220 = scmp.eq.s32.totalorder %s22, 1
    %p221 = por %p219, %p220
    %p223 = scmp.ne.s32.totalorder %s206, %s222
    %p224 = scmp.eq.s32.totalorder %s22, 0
    %p225 = por %p223, %p224
    %s226 = ssub.s32 %s23, %s35
    %s227 = ssub.s32 %s24, %s31
    %s228 = sor.u32 %s226, %s227
    %p229 = scmp.eq.s32.totalorder %s228, 0
    %s231 = sadd.s32 %s230, 1
    %s232 = scalar_select %p229, %s230, %s231
    %p235 = pneg %p229
    %p236 = scmp.eq.s32.totalorder %s16, 1
    %p237 = por %p235, %p236
    %p238 = scmp.ne.s32.totalorder %s230, %s233
    %p239 = scmp.eq.s32.totalorder %s16, 0
    %p240 = por %p238, %p239
    %p241 = scmp.ne.s32.totalorder %s230, %s233
    %p242 = scmp.eq.s32.totalorder %s21, 1
    %p243 = por %p241, %p242
    %p244 = scmp.ne.s32.totalorder %s233, %s234
    %p245 = scmp.eq.s32.totalorder %s21, 0
    %p246 = por %p244, %p245
    %p247 = scmp.ne.s32.totalorder %s233, %s234
    %p248 = scmp.eq.s32.totalorder %s22, 1
    %p249 = por %p247, %p248
    %p251 = scmp.ne.s32.totalorder %s234, %s250
    %p252 = scmp.eq.s32.totalorder %s22, 0
    %p253 = por %p251, %p252
    %s254 = ssub.s32 %s23, %s35
    %s255 = ssub.s32 %s24, %s31
    %s256 = sor.u32 %s254, %s255
    %p257 = scmp.eq.s32.totalorder %s256, 0
    %s259 = sadd.s32 %s258, 1
    %s260 = scalar_select %p257, %s258, %s259
    %p263 = pneg %p257
    %p264 = scmp.eq.s32.totalorder %s16, 1
    %p265 = por %p263, %p264
    %p266 = scmp.ne.s32.totalorder %s258, %s261
    %p267 = scmp.eq.s32.totalorder %s16, 0
    %p268 = por %p266, %p267
    %p269 = scmp.ne.s32.totalorder %s258, %s261
    %p270 = scmp.eq.s32.totalorder %s21, 1
    %p271 = por %p269, %p270
    %p272 = scmp.ne.s32.totalorder %s261, %s262
    %p273 = scmp.eq.s32.totalorder %s21, 0
    %p274 = por %p272, %p273
    %p275 = scmp.ne.s32.totalorder %s261, %s262
    %p276 = scmp.eq.s32.totalorder %s22, 1
    %p277 = por %p275, %p276
    %p279 = scmp.ne.s32.totalorder %s262, %s278
    %p280 = scmp.eq.s32.totalorder %s22, 0
    %p281 = por %p279, %p280
    %s282 = ssub.s32 %s23, %s35
    %s283 = ssub.s32 %s24, %s31
    %s284 = sor.u32 %s282, %s283
    %p285 = scmp.eq.s32.totalorder %s284, 0
    %s287 = sadd.s32 %s286, 1
    %s288 = scalar_select %p285, %s286, %s287
    %p291 = pneg %p285
    %p292 = scmp.eq.s32.totalorder %s16, 1
    %p293 = por %p291, %p292
    %p294 = scmp.ne.s32.totalorder %s286, %s289
    %p295 = scmp.eq.s32.totalorder %s16, 0
    %p296 = por %p294, %p295
    %p297 = scmp.ne.s32.totalorder %s286, %s289
    %p298 = scmp.eq.s32.totalorder %s21, 1
    %p299 = por %p297, %p298
    %p300 = scmp.ne.s32.totalorder %s289, %s290
    %p301 = scmp.eq.s32.totalorder %s21, 0
    %p302 = por %p300, %p301
    %p303 = scmp.ne.s32.totalorder %s289, %s290
    %p304 = scmp.eq.s32.totalorder %s22, 1
    %p305 = por %p303, %p304
    %p307 = scmp.ne.s32.totalorder %s290, %s306
    %p308 = scmp.eq.s32.totalorder %s22, 0
    %p309 = por %p307, %p308
    %p310 = scmp.le.s32.totalorder 1, %s16
    %p311 = scmp.lt.s32.totalorder %s16, 3
    %p312 = pnand %p310, %p311
    %p313 = pneg %p312
    // Predicated region
    $region9: #{_lambda_.50} parent=5 // pred_check
      _
    $region10: #{_lambda_.50} parent=5 // pred_check_branch
      %315 = sbr.rel (%p312) target = $region12
    $region11: #{_lambda_.50} parent=5 // pred_region
      %s316 = ssub.s32 %s16, 1
    $region12: #{_lambda_.50} parent=5 // pred_fallthru
      _
    %p317 = scmp.lt.s32.totalorder %s16, 2
    // Predicated region
    $region13: #{_lambda_.50} parent=5 // pred_check
      %p318 = pneg %p317
    $region14: #{_lambda_.50} parent=5 // pred_check_branch
      %320 = sbr.rel (%p318) target = $region16
    $region15: #{_lambda_.50} parent=5 // pred_region
      // Predicated region
      $region17: #{_lambda_.50} parent=15 // pred_check
        %p321 = pneg %p50
      $region18: #{_lambda_.50} parent=15 // pred_check_branch
        %323 = sbr.rel (%p321) target = $region20
      $region19: #{_lambda_.50} parent=15 // pred_region
        %p324 = scmp.lt.s32.totalorder %s23, 1
        %s325 = scalar_select %p324, %s23, 1
        %p326 = scmp.lt.s32.totalorder %s24, 0
        %s327 = scalar_select %p326, %s24, 0
        %s328 = smul.addr %s325, 4
        %s329 = sadd.s32 %s327, %s328
        %s330 = smul.addr %s329, 8
        %s331 = scalar_lea.vmem %s0, %s330
      $region20: #{_lambda_.50} parent=15 // pred_fallthru
        _
      // Predicated region
      $region21: #{_lambda_.50} parent=15 // pred_check
        %p332 = pneg %p76
      $region22: #{_lambda_.50} parent=15 // pred_check_branch
        %334 = sbr.rel (%p332) target = $region24
      $region23: #{_lambda_.50} parent=15 // pred_region
        %p335 = scmp.lt.s32.totalorder %s23, 1
        %s336 = scalar_select %p335, %s23, 1
        %s337 = smul.addr %s336, 4
        %s338 = smul.addr %s337, 8
        %s339 = scalar_lea.vmem %s1, %s338
      $region24: #{_lambda_.50} parent=15 // pred_fallthru
        _
      // Predicated region
      $region25: #{_lambda_.50} parent=15 // pred_check
        %p340 = pneg %p102
      $region26: #{_lambda_.50} parent=15 // pred_check_branch
        %342 = sbr.rel (%p340) target = $region28
      $region27: #{_lambda_.50} parent=15 // pred_region
        %p343 = scmp.lt.s32.totalorder %s23, 1
        %s344 = scalar_select %p343, %s23, 1
        %s345 = smul.addr %s344, 4
        %s346 = smul.addr %s345, 8
        %s347 = scalar_lea.vmem %s2, %s346
      $region28: #{_lambda_.50} parent=15 // pred_fallthru
        _
      // Predicated region
      $region29: #{_lambda_.50} parent=15 // pred_check
        %p348 = pneg %p128
      $region30: #{_lambda_.50} parent=15 // pred_check_branch
        %350 = sbr.rel (%p348) target = $region32
      $region31: #{_lambda_.50} parent=15 // pred_region
        %p351 = scmp.lt.s32.totalorder %s23, 1
        %s352 = scalar_select %p351, %s23, 1
        %s353 = smul.addr %s352, 4
        %s354 = smul.addr %s353, 8
        %s355 = scalar_lea.vmem %s3, %s354
      $region32: #{_lambda_.50} parent=15 // pred_fallthru
        _
      // Predicated region
      $region33: #{_lambda_.50} parent=15 // pred_check
        %p356 = pneg %p156
      $region34: #{_lambda_.50} parent=15 // pred_check_branch
        %358 = sbr.rel (%p356) target = $region36
      $region35: #{_lambda_.50} parent=15 // pred_region
        %p359 = scmp.lt.s32.totalorder %s23, 1
        %s360 = scalar_select %p359, %s23, 1
        %p361 = scmp.lt.s32.totalorder %s24, 0
        %s362 = scalar_select %p361, %s24, 0
        %s363 = smul.addr %s360, 4
        %s364 = sadd.s32 %s362, %s363
        %s365 = smul.addr %s364, 8
        %s366 = scalar_lea.vmem %s4, %s365
      $region36: #{_lambda_.50} parent=15 // pred_fallthru
        _
      // Predicated region
      $region37: #{_lambda_.50} parent=15 // pred_check
        %p367 = pneg %p184
      $region38: #{_lambda_.50} parent=15 // pred_check_branch
        %369 = sbr.rel (%p367) target = $region40
      $region39: #{_lambda_.50} parent=15 // pred_region
        %s370 = smul.u32 8, %s24
        %p371 = scmp.lt.s32.totalorder %s23, 1
        %s372 = scalar_select %p371, %s23, 1
        %p373 = scmp.lt.s32.totalorder %s370, 7
        %s374 = scalar_select %p373, %s370, 7
        %s375 = smul.addr %s372, 8
        %s376 = sadd.s32 %s374, %s375
        %s377 = smul.addr %s376, 4
        %s378 = scalar_lea.vmem %s5, %s377
        %s379 = smul.u32 8, %s24
      $region40: #{_lambda_.50} parent=15 // pred_fallthru
        _
      // Predicated region
      $region41: #{_lambda_.50} parent=15 // pred_check
        %p380 = pneg %p212
      $region42: #{_lambda_.50} parent=15 // pred_check_branch
        %382 = sbr.rel (%p380) target = $region44
      $region43: #{_lambda_.50} parent=15 // pred_region
        %p383 = scmp.lt.s32.totalorder %s23, 1
        %s384 = scalar_select %p383, %s23, 1
        %p385 = scmp.lt.s32.totalorder %s24, 0
        %s386 = scalar_select %p385, %s24, 0
        %s387 = sadd.s32 %s386, %s384
        %s388 = smul.addr %s387, 8
        %s389 = scalar_lea.vmem %s6, %s388
      $region44: #{_lambda_.50} parent=15 // pred_fallthru
        _
    $region16: #{_lambda_.50} parent=5 // pred_fallthru
      _
    %p390 = scmp.le.s32.totalorder 1, %s16
    %p391 = scmp.lt.s32.totalorder %s16, 3
    %p392 = pnand %p390, %p391
    %p393 = pneg %p392
    // Predicated region
    $region45: #{_lambda_.50} parent=5 // pred_check
      _
    $region46: #{_lambda_.50} parent=5 // pred_check_branch
      %395 = sbr.rel (%p392) target = $region48
    $region47: #{_lambda_.50} parent=5 // pred_region
      %s396 = ssub.s32 %s16, 1
      %p397 = scmp.lt.s32.totalorder %s25, 1
      %s398 = scalar_select %p397, %s25, 1
      %p399 = scmp.lt.s32.totalorder %s26, 0
      %s400 = scalar_select %p399, %s26, 0
      %s401 = smul.addr %s398, 4
      %s402 = sadd.s32 %s400, %s401
      %s403 = smul.addr %s402, 8
      %s404 = scalar_lea.vmem %s0, %s403
      %p405 = pneg %p56
      %p406 = pneg %p53
      %p407 = scmp.lt.s32.totalorder %s25, 1
      %s408 = scalar_select %p407, %s25, 1
      %s409 = smul.addr %s408, 4
      %s410 = smul.addr %s409, 8
      %s411 = scalar_lea.vmem %s1, %s410
      %p412 = pneg %p82
      %p413 = pneg %p79
      %p414 = scmp.lt.s32.totalorder %s25, 1
      %s415 = scalar_select %p414, %s25, 1
      %s416 = smul.addr %s415, 4
      %s417 = smul.addr %s416, 8
      %s418 = scalar_lea.vmem %s2, %s417
      %p419 = pneg %p108
      %p420 = pneg %p105
      %p421 = scmp.lt.s32.totalorder %s25, 1
      %s422 = scalar_select %p421, %s25, 1
      %s423 = smul.addr %s422, 4
      %s424 = smul.addr %s423, 8
      %s425 = scalar_lea.vmem %s3, %s424
      %p426 = pneg %p134
      %p427 = pneg %p131
      %p428 = scmp.lt.s32.totalorder %s25, 1
      %s429 = scalar_select %p428, %s25, 1
      %p430 = scmp.lt.s32.totalorder %s26, 0
      %s431 = scalar_select %p430, %s26, 0
      %s432 = smul.addr %s429, 4
      %s433 = sadd.s32 %s431, %s432
      %s434 = smul.addr %s433, 8
      %s435 = scalar_lea.vmem %s4, %s434
      %p436 = pneg %p162
      %p437 = pneg %p159
      %s438 = smul.u32 8, %s26
      %p439 = scmp.lt.s32.totalorder %s25, 1
      %s440 = scalar_select %p439, %s25, 1
      %p441 = scmp.lt.s32.totalorder %s438, 7
      %s442 = scalar_select %p441, %s438, 7
      %s443 = smul.addr %s440, 8
      %s444 = sadd.s32 %s442, %s443
      %s445 = smul.addr %s444, 4
      %s446 = scalar_lea.vmem %s5, %s445
      %p447 = pneg %p190
      %p448 = pneg %p187
      %p449 = scmp.lt.s32.totalorder %s25, 1
      %s450 = scalar_select %p449, %s25, 1
      %p451 = scmp.lt.s32.totalorder %s26, 0
      %s452 = scalar_select %p451, %s26, 0
      %s453 = sadd.s32 %s452, %s450
      %s454 = smul.addr %s453, 8
      %s455 = scalar_lea.vmem %s6, %s454
      %p456 = pneg %p218
      %p457 = pneg %p215
      %p458 = pneg %p246
      %p459 = pneg %p243
      %p460 = scmp.lt.s32.totalorder %s25, 1
      %s461 = scalar_select %p460, %s25, 1
      %p462 = scmp.lt.s32.totalorder %s26, 0
      %s463 = scalar_select %p462, %s26, 0
      %s464 = sadd.s32 %s463, %s461
      %s465 = smul.addr %s464, 8
      %s466 = scalar_lea.vmem %s7, %s465
      %p467 = pneg %p274
      %p468 = pneg %p271
      %p469 = scmp.lt.s32.totalorder %s25, 1
      %s470 = scalar_select %p469, %s25, 1
      %p471 = scmp.lt.s32.totalorder %s26, 0
      %s472 = scalar_select %p471, %s26, 0
      %s473 = sadd.s32 %s472, %s470
      %s474 = smul.addr %s473, 8
      %s475 = scalar_lea.vmem %s8, %s474
      %p476 = pneg %p302
      %p477 = pneg %p299
      %p478 = scmp.lt.s32.totalorder %s25, 1
      %s479 = scalar_select %p478, %s25, 1
      %p480 = scmp.lt.s32.totalorder %s26, 0
      %s481 = scalar_select %p480, %s26, 0
      %s482 = sadd.s32 %s481, %s479
      %s483 = smul.addr %s482, 8
      %s484 = scalar_lea.vmem %s9, %s483
      %p485 = scmp.lt.s32.totalorder %s25, 1
      %s486 = scalar_select %p485, %s25, 1
      %p487 = scmp.lt.s32.totalorder %s26, 0
      %s488 = scalar_select %p487, %s26, 0
      %s489 = smul.addr %s486, 4
      %s490 = sadd.s32 %s488, %s489
      %s491 = smul.addr %s490, 8
      %s492 = scalar_lea.vmem %s0, %s491
      %p493 = scmp.lt.s32.totalorder %s25, 1
      %s494 = scalar_select %p493, %s25, 1
      %s495 = smul.addr %s494, 4
      %s496 = smul.addr %s495, 8
      %s497 = scalar_lea.vmem %s1, %s496
      %p498 = scmp.lt.s32.totalorder %s25, 1
      %s499 = scalar_select %p498, %s25, 1
      %s500 = smul.addr %s499, 4
      %s501 = smul.addr %s500, 8
      %s502 = scalar_lea.vmem %s2, %s501
      %p503 = scmp.lt.s32.totalorder %s25, 1
      %s504 = scalar_select %p503, %s25, 1
      %s505 = smul.addr %s504, 4
      %s506 = smul.addr %s505, 8
      %s507 = scalar_lea.vmem %s3, %s506
      %p508 = scmp.lt.s32.totalorder %s25, 1
      %s509 = scalar_select %p508, %s25, 1
      %p510 = scmp.lt.s32.totalorder %s26, 0
      %s511 = scalar_select %p510, %s26, 0
      %s512 = smul.addr %s509, 4
      %s513 = sadd.s32 %s511, %s512
      %s514 = smul.addr %s513, 8
      %s515 = scalar_lea.vmem %s4, %s514
      %s516 = smul.u32 8, %s26
      %p517 = scmp.lt.s32.totalorder %s25, 1
      %s518 = scalar_select %p517, %s25, 1
      %p519 = scmp.lt.s32.totalorder %s516, 7
      %s520 = scalar_select %p519, %s516, 7
      %s521 = smul.addr %s518, 8
      %s522 = sadd.s32 %s520, %s521
      %s523 = smul.addr %s522, 4
      %s524 = scalar_lea.vmem %s5, %s523
      %s525 = smul.u32 8, %s26
      %p526 = scmp.lt.s32.totalorder %s25, 1
      %s527 = scalar_select %p526, %s25, 1
      %p528 = scmp.lt.s32.totalorder %s26, 0
      %s529 = scalar_select %p528, %s26, 0
      %s530 = sadd.s32 %s529, %s527
      %s531 = smul.addr %s530, 8
      %s532 = scalar_lea.vmem %s6, %s531
      %p533 = scmp.lt.s32.totalorder %s25, 1
      %s534 = scalar_select %p533, %s25, 1
      %p535 = scmp.lt.s32.totalorder %s26, 0
      %s536 = scalar_select %p535, %s26, 0
      %s537 = sadd.s32 %s536, %s534
      %s538 = smul.addr %s537, 8
      %s539 = scalar_lea.vmem %s7, %s538
      %p540 = scmp.lt.s32.totalorder %s25, 1
      %s541 = scalar_select %p540, %s25, 1
      %p542 = scmp.lt.s32.totalorder %s26, 0
      %s543 = scalar_select %p542, %s26, 0
      %s544 = sadd.s32 %s543, %s541
      %s545 = smul.addr %s544, 8
      %s546 = scalar_lea.vmem %s8, %s545
      %p547 = scmp.lt.s32.totalorder %s25, 1
      %s548 = scalar_select %p547, %s25, 1
      %p549 = scmp.lt.s32.totalorder %s26, 0
      %s550 = scalar_select %p549, %s26, 0
      %s551 = sadd.s32 %s550, %s548
      %s552 = smul.addr %s551, 8
      %s553 = scalar_lea.vmem %s9, %s552
      %v554 = vld [vmem:[%s492] sm:$0xff]
      %v555 = vld [vmem:[%s492 + $0x8] sm:$0xff]
      %v556 = vld [vmem:[%s492 + $0x10] sm:$0xff]
      %v557 = vld [vmem:[%s492 + $0x18] sm:$0xff]
      %v558 = vld [vmem:[%s497] sm:$0xff]
      %v559 = vld [vmem:[%s497 + $0x8] sm:$0xff]
      %v560 = vld [vmem:[%s497 + $0x10] sm:$0xff]
      %v561 = vld [vmem:[%s497 + $0x18] sm:$0xff]
      %v562 = vld [vmem:[%s515] sm:$0xff]
      %v563 = vld [vmem:[%s515 + $0x8] sm:$0xff]
      %v564 = vld [vmem:[%s515 + $0x10] sm:$0xff]
      %v565 = vld [vmem:[%s515 + $0x18] sm:$0xff]
      %v566 = vmul.f32 %v562, 0.57735026
      %v567 = vmul.f32 %v563, 0.57735026
      %v568 = vmul.f32 %v564, 0.57735026
      %v569 = vmul.f32 %v565, 0.57735026
      %vm570 = vcmask 244736
      %v572 = vsel %vm570, %v554, 0
      %v575 = vsel %vm570, %v558, 0
      %577 = vmatpush.xpose.msra.mxu0 0.0
      %578 = vmatpush.xpose.msra.mxu0 0.0
      %579 = vmatpush.xpose.msra.mxu0 0.0
      %580 = vmatpush.xpose.msra.mxu0 0.0
      %581 = vmatpush.xpose.msra.mxu0 0.0
      %582 = vmatpush.xpose.msra.mxu0 0.0
      %583 = vmatpush.xpose.msra.mxu0 0.0
      %584 = vmatpush.xpose.msra.mxu0 0.0
      %585 = vmatpush.xpose.msra.mxu0 0.0
      %586 = vmatpush.xpose.msra.mxu0 0.0
      %587 = vmatpush.xpose.msra.mxu0 0.0
      %588 = vmatpush.xpose.msra.mxu0 0.0
      %589 = vmatpush.xpose.msra.mxu0 0.0
      %590 = vmatpush.xpose.msra.mxu0 0.0
      %591 = vmatpush.xpose.msra.mxu0 0.0
      %592 = vmatpush.xpose.msra.mxu0 %v575
      %593 = vmatmul.f32.gmra.mxu0 %v572
      %v594 = vpop.f32.mrf.mxu0
      %v595 = vadd.f32 %v566, %v594
      %596 = vdwg.mxu0
      %v598 = vsel %vm570, %v555, 0
      %v601 = vsel %vm570, %v559, 0
      %603 = vmatpush.xpose.msra.mxu0 0.0
      %604 = vmatpush.xpose.msra.mxu0 0.0
      %605 = vmatpush.xpose.msra.mxu0 0.0
      %606 = vmatpush.xpose.msra.mxu0 0.0
      %607 = vmatpush.xpose.msra.mxu0 0.0
      %608 = vmatpush.xpose.msra.mxu0 0.0
      %609 = vmatpush.xpose.msra.mxu0 0.0
      %610 = vmatpush.xpose.msra.mxu0 0.0
      %611 = vmatpush.xpose.msra.mxu0 0.0
      %612 = vmatpush.xpose.msra.mxu0 0.0
      %613 = vmatpush.xpose.msra.mxu0 0.0
      %614 = vmatpush.xpose.msra.mxu0 0.0
      %615 = vmatpush.xpose.msra.mxu0 0.0
      %616 = vmatpush.xpose.msra.mxu0 0.0
      %617 = vmatpush.xpose.msra.mxu0 0.0
      %618 = vmatpush.xpose.msra.mxu0 %v601
      %619 = vmatmul.f32.gmra.mxu0 %v598
      %v620 = vpop.f32.mrf.mxu0
      %v621 = vadd.f32 %v567, %v620
      %622 = vdwg.mxu0
      %v624 = vsel %vm570, %v556, 0
      %v627 = vsel %vm570, %v560, 0
      %629 = vmatpush.xpose.msra.mxu0 0.0
      %630 = vmatpush.xpose.msra.mxu0 0.0
      %631 = vmatpush.xpose.msra.mxu0 0.0
      %632 = vmatpush.xpose.msra.mxu0 0.0
      %633 = vmatpush.xpose.msra.mxu0 0.0
      %634 = vmatpush.xpose.msra.mxu0 0.0
      %635 = vmatpush.xpose.msra.mxu0 0.0
      %636 = vmatpush.xpose.msra.mxu0 0.0
      %637 = vmatpush.xpose.msra.mxu0 0.0
      %638 = vmatpush.xpose.msra.mxu0 0.0
      %639 = vmatpush.xpose.msra.mxu0 0.0
      %640 = vmatpush.xpose.msra.mxu0 0.0
      %641 = vmatpush.xpose.msra.mxu0 0.0
      %642 = vmatpush.xpose.msra.mxu0 0.0
      %643 = vmatpush.xpose.msra.mxu0 0.0
      %644 = vmatpush.xpose.msra.mxu0 %v627
      %645 = vmatmul.f32.gmra.mxu0 %v624
      %v646 = vpop.f32.mrf.mxu0
      %v647 = vadd.f32 %v568, %v646
      %648 = vdwg.mxu0
      %v650 = vsel %vm570, %v557, 0
      %v653 = vsel %vm570, %v561, 0
      %655 = vmatpush.xpose.msra.mxu0 0.0
      %656 = vmatpush.xpose.msra.mxu0 0.0
      %657 = vmatpush.xpose.msra.mxu0 0.0
      %658 = vmatpush.xpose.msra.mxu0 0.0
      %659 = vmatpush.xpose.msra.mxu0 0.0
      %660 = vmatpush.xpose.msra.mxu0 0.0
      %661 = vmatpush.xpose.msra.mxu0 0.0
      %662 = vmatpush.xpose.msra.mxu0 0.0
      %663 = vmatpush.xpose.msra.mxu0 0.0
      %664 = vmatpush.xpose.msra.mxu0 0.0
      %665 = vmatpush.xpose.msra.mxu0 0.0
      %666 = vmatpush.xpose.msra.mxu0 0.0
      %667 = vmatpush.xpose.msra.mxu0 0.0
      %668 = vmatpush.xpose.msra.mxu0 0.0
      %669 = vmatpush.xpose.msra.mxu0 0.0
      %670 = vmatpush.xpose.msra.mxu0 %v653
      %671 = vmatmul.f32.gmra.mxu0 %v650
      %v672 = vpop.f32.mrf.mxu0
      %v673 = vadd.f32 %v569, %v672
      %674 = vdwg.mxu0
      %v675 = vld [vmem:[%s532] sm:$0xff]
      %v676 = vadd.f32 %v595, %v675
      %v677 = vadd.f32 %v621, %v675
      %v678 = vadd.f32 %v647, %v675
      %v679 = vadd.f32 %v673, %v675
      %vm680 = vcmask 64512
      %v681 = vsel %vm680, %v676, -inf
      %682 = vmax.xlane.f32.xlu0 %v681
      %v683 = vpop.xlane.xlu0 %682
      %v684 = vsel %vm680, %v677, -inf
      %685 = vmax.xlane.f32.xlu0 %v684
      %v686 = vpop.xlane.xlu0 %685
      %v687 = vsel %vm680, %v678, -inf
      %688 = vmax.xlane.f32.xlu0 %v687
      %v689 = vpop.xlane.xlu0 %688
      %v690 = vsel %vm680, %v679, -inf
      %691 = vmax.xlane.f32.xlu0 %v690
      %v692 = vpop.xlane.xlu0 %691
      %v693 = vsub.f32 %v676, %v683
      %v694 = vsub.f32 %v677, %v686
      %v695 = vsub.f32 %v678, %v689
      %v696 = vsub.f32 %v679, %v692
      %v697 = vmul.f32 %v693, 1.442695
      %v698 = vpow.pop %v697
      %v699 = vmul.f32 %v694, 1.442695
      %v700 = vpow.pop %v699
      %v701 = vmul.f32 %v695, 1.442695
      %v702 = vpow.pop %v701
      %v703 = vmul.f32 %v696, 1.442695
      %v704 = vpow.pop %v703
      %v705 = vsel %vm680, %v698, 0.0
      %706 = vadd.xlane.f32.xlu0 %v705
      %v707 = vpop.xlane.xlu0 %706
      %v708 = vsel %vm680, %v700, 0.0
      %709 = vadd.xlane.f32.xlu0 %v708
      %v710 = vpop.xlane.xlu0 %709
      %v711 = vsel %vm680, %v702, 0.0
      %712 = vadd.xlane.f32.xlu0 %v711
      %v713 = vpop.xlane.xlu0 %712
      %v714 = vsel %vm680, %v704, 0.0
      %715 = vadd.xlane.f32.xlu0 %v714
      %v716 = vpop.xlane.xlu0 %715
      %v717 = vrcp.pop %v707
      %v718 = vrcp.pop %v710
      %v719 = vrcp.pop %v713
      %v720 = vrcp.pop %v716
      %v721 = vmul.f32 %v698, %v717
      %v722 = vmul.f32 %v700, %v718
      %v723 = vmul.f32 %v702, %v719
      %v724 = vmul.f32 %v704, %v720
      %v725 = vld [vmem:[%s502] sm:$0xff]
      %v726 = vld [vmem:[%s502 + $0x8] sm:$0xff]
      %v727 = vld [vmem:[%s502 + $0x10] sm:$0xff]
      %v728 = vld [vmem:[%s502 + $0x18] sm:$0xff]
      %v730 = vsel %vm680, %v721, 0
      %732 = vmatpush.msra.mxu0 0.0
      %733 = vmatpush.msra.mxu0 0.0
      %734 = vmatpush.msra.mxu0 0.0
      %735 = vmatpush.msra.mxu0 0.0
      %736 = vmatpush.msra.mxu0 0.0
      %737 = vmatpush.msra.mxu0 0.0
      %738 = vmatpush.msra.mxu0 0.0
      %739 = vmatpush.msra.mxu0 0.0
      %740 = vmatpush.msra.mxu0 0.0
      %741 = vmatpush.msra.mxu0 0.0
      %742 = vmatpush.msra.mxu0 0.0
      %743 = vmatpush.msra.mxu0 0.0
      %744 = vmatpush.msra.mxu0 0.0
      %745 = vmatpush.msra.mxu0 0.0
      %746 = vmatpush.msra.mxu0 0.0
      %747 = vmatpush.msra.mxu0 %v725
      %748 = vmatmul.f32.gmra.mxu0 %v730
      %v749 = vpop.f32.mrf.mxu0
      %v750 = vadd.f32 0.0, %v749
      %751 = vdwg.mxu0
      %v753 = vsel %vm680, %v722, 0
      %755 = vmatpush.msra.mxu0 0.0
      %756 = vmatpush.msra.mxu0 0.0
      %757 = vmatpush.msra.mxu0 0.0
      %758 = vmatpush.msra.mxu0 0.0
      %759 = vmatpush.msra.mxu0 0.0
      %760 = vmatpush.msra.mxu0 0.0
      %761 = vmatpush.msra.mxu0 0.0
      %762 = vmatpush.msra.mxu0 0.0
      %763 = vmatpush.msra.mxu0 0.0
      %764 = vmatpush.msra.mxu0 0.0
      %765 = vmatpush.msra.mxu0 0.0
      %766 = vmatpush.msra.mxu0 0.0
      %767 = vmatpush.msra.mxu0 0.0
      %768 = vmatpush.msra.mxu0 0.0
      %769 = vmatpush.msra.mxu0 0.0
      %770 = vmatpush.msra.mxu0 %v726
      %771 = vmatmul.f32.gmra.mxu0 %v753
      %v772 = vpop.f32.mrf.mxu0
      %v773 = vadd.f32 0.0, %v772
      %774 = vdwg.mxu0
      %v776 = vsel %vm680, %v723, 0
      %778 = vmatpush.msra.mxu0 0.0
      %779 = vmatpush.msra.mxu0 0.0
      %780 = vmatpush.msra.mxu0 0.0
      %781 = vmatpush.msra.mxu0 0.0
      %782 = vmatpush.msra.mxu0 0.0
      %783 = vmatpush.msra.mxu0 0.0
      %784 = vmatpush.msra.mxu0 0.0
      %785 = vmatpush.msra.mxu0 0.0
      %786 = vmatpush.msra.mxu0 0.0
      %787 = vmatpush.msra.mxu0 0.0
      %788 = vmatpush.msra.mxu0 0.0
      %789 = vmatpush.msra.mxu0 0.0
      %790 = vmatpush.msra.mxu0 0.0
      %791 = vmatpush.msra.mxu0 0.0
      %792 = vmatpush.msra.mxu0 0.0
      %793 = vmatpush.msra.mxu0 %v727
      %794 = vmatmul.f32.gmra.mxu0 %v776
      %v795 = vpop.f32.mrf.mxu0
      %v796 = vadd.f32 0.0, %v795
      %797 = vdwg.mxu0
      %v799 = vsel %vm680, %v724, 0
      %801 = vmatpush.msra.mxu0 0.0
      %802 = vmatpush.msra.mxu0 0.0
      %803 = vmatpush.msra.mxu0 0.0
      %804 = vmatpush.msra.mxu0 0.0
      %805 = vmatpush.msra.mxu0 0.0
      %806 = vmatpush.msra.mxu0 0.0
      %807 = vmatpush.msra.mxu0 0.0
      %808 = vmatpush.msra.mxu0 0.0
      %809 = vmatpush.msra.mxu0 0.0
      %810 = vmatpush.msra.mxu0 0.0
      %811 = vmatpush.msra.mxu0 0.0
      %812 = vmatpush.msra.mxu0 0.0
      %813 = vmatpush.msra.mxu0 0.0
      %814 = vmatpush.msra.mxu0 0.0
      %815 = vmatpush.msra.mxu0 0.0
      %816 = vmatpush.msra.mxu0 %v728
      %817 = vmatmul.f32.gmra.mxu0 %v799
      %v818 = vpop.f32.mrf.mxu0
      %v819 = vadd.f32 0.0, %v818
      %820 = vdwg.mxu0
      %v821 = vld [vmem:[%s507] sm:$0xff]
      %v822 = vld [vmem:[%s507 + $0x8] sm:$0xff]
      %v823 = vld [vmem:[%s507 + $0x10] sm:$0xff]
      %v824 = vld [vmem:[%s507 + $0x18] sm:$0xff]
      %825 = vmatpush.msra.mxu0 0.0
      %826 = vmatpush.msra.mxu0 0.0
      %827 = vmatpush.msra.mxu0 0.0
      %828 = vmatpush.msra.mxu0 0.0
      %829 = vmatpush.msra.mxu0 0.0
      %830 = vmatpush.msra.mxu0 0.0
      %831 = vmatpush.msra.mxu0 0.0
      %832 = vmatpush.msra.mxu0 0.0
      %833 = vmatpush.msra.mxu0 0.0
      %834 = vmatpush.msra.mxu0 0.0
      %835 = vmatpush.msra.mxu0 0.0
      %836 = vmatpush.msra.mxu0 0.0
      %837 = vmatpush.msra.mxu0 0.0
      %838 = vmatpush.msra.mxu0 0.0
      %839 = vmatpush.msra.mxu0 0.0
      %840 = vmatpush.msra.mxu0 %v821
      %841 = vmatmul.f32.gmra.mxu0 %v730
      %v842 = vpop.f32.mrf.mxu0
      %v843 = vadd.f32 0.0, %v842
      %844 = vdwg.mxu0
      %845 = vmatpush.msra.mxu0 0.0
      %846 = vmatpush.msra.mxu0 0.0
      %847 = vmatpush.msra.mxu0 0.0
      %848 = vmatpush.msra.mxu0 0.0
      %849 = vmatpush.msra.mxu0 0.0
      %850 = vmatpush.msra.mxu0 0.0
      %851 = vmatpush.msra.mxu0 0.0
      %852 = vmatpush.msra.mxu0 0.0
      %853 = vmatpush.msra.mxu0 0.0
      %854 = vmatpush.msra.mxu0 0.0
      %855 = vmatpush.msra.mxu0 0.0
      %856 = vmatpush.msra.mxu0 0.0
      %857 = vmatpush.msra.mxu0 0.0
      %858 = vmatpush.msra.mxu0 0.0
      %859 = vmatpush.msra.mxu0 0.0
      %860 = vmatpush.msra.mxu0 %v822
      %861 = vmatmul.f32.gmra.mxu0 %v753
      %v862 = vpop.f32.mrf.mxu0
      %v863 = vadd.f32 0.0, %v862
      %864 = vdwg.mxu0
      %865 = vmatpush.msra.mxu0 0.0
      %866 = vmatpush.msra.mxu0 0.0
      %867 = vmatpush.msra.mxu0 0.0
      %868 = vmatpush.msra.mxu0 0.0
      %869 = vmatpush.msra.mxu0 0.0
      %870 = vmatpush.msra.mxu0 0.0
      %871 = vmatpush.msra.mxu0 0.0
      %872 = vmatpush.msra.mxu0 0.0
      %873 = vmatpush.msra.mxu0 0.0
      %874 = vmatpush.msra.mxu0 0.0
      %875 = vmatpush.msra.mxu0 0.0
      %876 = vmatpush.msra.mxu0 0.0
      %877 = vmatpush.msra.mxu0 0.0
      %878 = vmatpush.msra.mxu0 0.0
      %879 = vmatpush.msra.mxu0 0.0
      %880 = vmatpush.msra.mxu0 %v823
      %881 = vmatmul.f32.gmra.mxu0 %v776
      %v882 = vpop.f32.mrf.mxu0
      %v883 = vadd.f32 0.0, %v882
      %884 = vdwg.mxu0
      %885 = vmatpush.msra.mxu0 0.0
      %886 = vmatpush.msra.mxu0 0.0
      %887 = vmatpush.msra.mxu0 0.0
      %888 = vmatpush.msra.mxu0 0.0
      %889 = vmatpush.msra.mxu0 0.0
      %890 = vmatpush.msra.mxu0 0.0
      %891 = vmatpush.msra.mxu0 0.0
      %892 = vmatpush.msra.mxu0 0.0
      %893 = vmatpush.msra.mxu0 0.0
      %894 = vmatpush.msra.mxu0 0.0
      %895 = vmatpush.msra.mxu0 0.0
      %896 = vmatpush.msra.mxu0 0.0
      %897 = vmatpush.msra.mxu0 0.0
      %898 = vmatpush.msra.mxu0 0.0
      %899 = vmatpush.msra.mxu0 0.0
      %900 = vmatpush.msra.mxu0 %v824
      %901 = vmatmul.f32.gmra.mxu0 %v799
      %v902 = vpop.f32.mrf.mxu0
      %v903 = vadd.f32 0.0, %v902
      %904 = vdwg.mxu0
      %v905 = vld [vmem:[%s524] sm:$0xf]
      %v906 = vld [vmem:[%s524 + $0x4] sm:$0xf]
      %v907 = vld [vmem:[%s524 + $0x8] sm:$0xf]
      %v908 = vld [vmem:[%s524 + $0xc] sm:$0xf]
      %v909 = vld [vmem:[%s524 + $0x10] sm:$0xf]
      %v910 = vld [vmem:[%s524 + $0x14] sm:$0xf]
      %v911 = vld [vmem:[%s524 + $0x18] sm:$0xf]
      %v912 = vld [vmem:[%s524 + $0x1c] sm:$0xf]
      %v913 = vrot.slane %v721, 1
      %v914 = vrot.slane %v721, 2
      %v915 = vrot.slane %v721, 3
      %v916 = vrot.slane %v721, 4
      %v917 = vrot.slane %v721, 5
      %v918 = vrot.slane %v721, 6
      %v919 = vrot.slane %v721, 7
      %v920 = vperm.slane %v721, 0
      %v921 = vperm.slane %v913, 0
      %v922 = vperm.slane %v914, 0
      %v923 = vperm.slane %v915, 0
      %v924 = vperm.slane %v916, 0
      %v925 = vperm.slane %v917, 0
      %v926 = vperm.slane %v918, 0
      %v927 = vperm.slane %v919, 0
      %v936 = vmul.f32 %v920, %v905
      %v937 = vmul.f32 %v921, %v906
      %v938 = vmul.f32 %v922, %v907
      %v939 = vmul.f32 %v923, %v908
      %v940 = vmul.f32 %v924, %v909
      %v941 = vmul.f32 %v925, %v910
      %v942 = vmul.f32 %v926, %v911
      %v943 = vmul.f32 %v927, %v912
      %vm944 = vcmask 60416
      %v945 = vsel %vm944, %v936, 0.0
      %946 = vadd.xlane.f32.xlu0 %v945
      %v947 = vpop.xlane.xlu0 %946
      %v948 = vsel %vm944, %v937, 0.0
      %949 = vadd.xlane.f32.xlu0 %v948
      %v950 = vpop.xlane.xlu0 %949
      %v951 = vsel %vm944, %v938, 0.0
      %952 = vadd.xlane.f32.xlu0 %v951
      %v953 = vpop.xlane.xlu0 %952
      %v954 = vsel %vm944, %v939, 0.0
      %955 = vadd.xlane.f32.xlu0 %v954
      %v956 = vpop.xlane.xlu0 %955
      %v957 = vsel %vm944, %v940, 0.0
      %958 = vadd.xlane.f32.xlu0 %v957
      %v959 = vpop.xlane.xlu0 %958
      %v960 = vsel %vm944, %v941, 0.0
      %961 = vadd.xlane.f32.xlu0 %v960
      %v962 = vpop.xlane.xlu0 %961
      %v963 = vsel %vm944, %v942, 0.0
      %964 = vadd.xlane.f32.xlu0 %v963
      %v965 = vpop.xlane.xlu0 %964
      %v966 = vsel %vm944, %v943, 0.0
      %967 = vadd.xlane.f32.xlu0 %v966
      %v968 = vpop.xlane.xlu0 %967
      %v969 = vrot.slane %v722, 1
      %v970 = vrot.slane %v722, 2
      %v971 = vrot.slane %v722, 3
      %v972 = vrot.slane %v722, 4
      %v973 = vrot.slane %v722, 5
      %v974 = vrot.slane %v722, 6
      %v975 = vrot.slane %v722, 7
      %v976 = vperm.slane %v722, 0
      %v977 = vperm.slane %v969, 0
      %v978 = vperm.slane %v970, 0
      %v979 = vperm.slane %v971, 0
      %v980 = vperm.slane %v972, 0
      %v981 = vperm.slane %v973, 0
      %v982 = vperm.slane %v974, 0
      %v983 = vperm.slane %v975, 0
      %v992 = vmul.f32 %v976, %v905
      %v993 = vmul.f32 %v977, %v906
      %v994 = vmul.f32 %v978, %v907
      %v995 = vmul.f32 %v979, %v908
      %v996 = vmul.f32 %v980, %v909
      %v997 = vmul.f32 %v981, %v910
      %v998 = vmul.f32 %v982, %v911
      %v999 = vmul.f32 %v983, %v912
      %v1000 = vsel %vm944, %v992, 0.0
      %1001 = vadd.xlane.f32.xlu0 %v1000
      %v1002 = vpop.xlane.xlu0 %1001
      %v1003 = vsel %vm944, %v993, 0.0
      %1004 = vadd.xlane.f32.xlu0 %v1003
      %v1005 = vpop.xlane.xlu0 %1004
      %v1006 = vsel %vm944, %v994, 0.0
      %1007 = vadd.xlane.f32.xlu0 %v1006
      %v1008 = vpop.xlane.xlu0 %1007
      %v1009 = vsel %vm944, %v995, 0.0
      %1010 = vadd.xlane.f32.xlu0 %v1009
      %v1011 = vpop.xlane.xlu0 %1010
      %v1012 = vsel %vm944, %v996, 0.0
      %1013 = vadd.xlane.f32.xlu0 %v1012
      %v1014 = vpop.xlane.xlu0 %1013
      %v1015 = vsel %vm944, %v997, 0.0
      %1016 = vadd.xlane.f32.xlu0 %v1015
      %v1017 = vpop.xlane.xlu0 %1016
      %v1018 = vsel %vm944, %v998, 0.0
      %1019 = vadd.xlane.f32.xlu0 %v1018
      %v1020 = vpop.xlane.xlu0 %1019
      %v1021 = vsel %vm944, %v999, 0.0
      %1022 = vadd.xlane.f32.xlu0 %v1021
      %v1023 = vpop.xlane.xlu0 %1022
      %v1024 = vrot.slane %v723, 1
      %v1025 = vrot.slane %v723, 2
      %v1026 = vrot.slane %v723, 3
      %v1027 = vrot.slane %v723, 4
      %v1028 = vrot.slane %v723, 5
      %v1029 = vrot.slane %v723, 6
      %v1030 = vrot.slane %v723, 7
      %v1031 = vperm.slane %v723, 0
      %v1032 = vperm.slane %v1024, 0
      %v1033 = vperm.slane %v1025, 0
      %v1034 = vperm.slane %v1026, 0
      %v1035 = vperm.slane %v1027, 0
      %v1036 = vperm.slane %v1028, 0
      %v1037 = vperm.slane %v1029, 0
      %v1038 = vperm.slane %v1030, 0
      %v1047 = vmul.f32 %v1031, %v905
      %v1048 = vmul.f32 %v1032, %v906
      %v1049 = vmul.f32 %v1033, %v907
      %v1050 = vmul.f32 %v1034, %v908
      %v1051 = vmul.f32 %v1035, %v909
      %v1052 = vmul.f32 %v1036, %v910
      %v1053 = vmul.f32 %v1037, %v911
      %v1054 = vmul.f32 %v1038, %v912
      %v1055 = vsel %vm944, %v1047, 0.0
      %1056 = vadd.xlane.f32.xlu0 %v1055
      %v1057 = vpop.xlane.xlu0 %1056
      %v1058 = vsel %vm944, %v1048, 0.0
      %1059 = vadd.xlane.f32.xlu0 %v1058
      %v1060 = vpop.xlane.xlu0 %1059
      %v1061 = vsel %vm944, %v1049, 0.0
      %1062 = vadd.xlane.f32.xlu0 %v1061
      %v1063 = vpop.xlane.xlu0 %1062
      %v1064 = vsel %vm944, %v1050, 0.0
      %1065 = vadd.xlane.f32.xlu0 %v1064
      %v1066 = vpop.xlane.xlu0 %1065
      %v1067 = vsel %vm944, %v1051, 0.0
      %1068 = vadd.xlane.f32.xlu0 %v1067
      %v1069 = vpop.xlane.xlu0 %1068
      %v1070 = vsel %vm944, %v1052, 0.0
      %1071 = vadd.xlane.f32.xlu0 %v1070
      %v1072 = vpop.xlane.xlu0 %1071
      %v1073 = vsel %vm944, %v1053, 0.0
      %1074 = vadd.xlane.f32.xlu0 %v1073
      %v1075 = vpop.xlane.xlu0 %1074
      %v1076 = vsel %vm944, %v1054, 0.0
      %1077 = vadd.xlane.f32.xlu0 %v1076
      %v1078 = vpop.xlane.xlu0 %1077
      %v1079 = vrot.slane %v724, 1
      %v1080 = vrot.slane %v724, 2
      %v1081 = vrot.slane %v724, 3
      %v1082 = vrot.slane %v724, 4
      %v1083 = vrot.slane %v724, 5
      %v1084 = vrot.slane %v724, 6
      %v1085 = vrot.slane %v724, 7
      %v1086 = vperm.slane %v724, 0
      %v1087 = vperm.slane %v1079, 0
      %v1088 = vperm.slane %v1080, 0
      %v1089 = vperm.slane %v1081, 0
      %v1090 = vperm.slane %v1082, 0
      %v1091 = vperm.slane %v1083, 0
      %v1092 = vperm.slane %v1084, 0
      %v1093 = vperm.slane %v1085, 0
      %v1102 = vmul.f32 %v1086, %v905
      %v1103 = vmul.f32 %v1087, %v906
      %v1104 = vmul.f32 %v1088, %v907
      %v1105 = vmul.f32 %v1089, %v908
      %v1106 = vmul.f32 %v1090, %v909
      %v1107 = vmul.f32 %v1091, %v910
      %v1108 = vmul.f32 %v1092, %v911
      %v1109 = vmul.f32 %v1093, %v912
      %v1110 = vsel %vm944, %v1102, 0.0
      %1111 = vadd.xlane.f32.xlu0 %v1110
      %v1112 = vpop.xlane.xlu0 %1111
      %v1113 = vsel %vm944, %v1103, 0.0
      %1114 = vadd.xlane.f32.xlu0 %v1113
      %v1115 = vpop.xlane.xlu0 %1114
      %v1116 = vsel %vm944, %v1104, 0.0
      %1117 = vadd.xlane.f32.xlu0 %v1116
      %v1118 = vpop.xlane.xlu0 %1117
      %v1119 = vsel %vm944, %v1105, 0.0
      %1120 = vadd.xlane.f32.xlu0 %v1119
      %v1121 = vpop.xlane.xlu0 %1120
      %v1122 = vsel %vm944, %v1106, 0.0
      %1123 = vadd.xlane.f32.xlu0 %v1122
      %v1124 = vpop.xlane.xlu0 %1123
      %v1125 = vsel %vm944, %v1107, 0.0
      %1126 = vadd.xlane.f32.xlu0 %v1125
      %v1127 = vpop.xlane.xlu0 %1126
      %v1128 = vsel %vm944, %v1108, 0.0
      %1129 = vadd.xlane.f32.xlu0 %v1128
      %v1130 = vpop.xlane.xlu0 %1129
      %v1131 = vsel %vm944, %v1109, 0.0
      %1132 = vadd.xlane.f32.xlu0 %v1131
      %v1133 = vpop.xlane.xlu0 %1132
      %1135 = vrot.lane.b32.xlu0 %v773, 16
      %v1136 = vpop.permute.xlu0 %1135
      %1139 = vrot.lane.b32.xlu0 %v796, 32
      %v1140 = vpop.permute.xlu0 %1139
      %1143 = vrot.lane.b32.xlu0 %v819, 48
      %v1144 = vpop.permute.xlu0 %1143
      %vm1146 = vcmask 130048
      %v1147 = vsel %vm1146, %v750, %v1136
      %vm1148 = vcmask 261120
      %v1149 = vsel %vm1148, %v1147, %v1140
      %vm1150 = vcmask 392192
      %v1151 = vsel %vm1150, %v1149, %v1144
      %vm1152 = vcmask 523264
      %1153 = vst.msk [vmem:[%s539] sm:$0xff] %vm1152, %v1151
      %1155 = vrot.lane.b32.xlu0 %v863, 24
      %v1156 = vpop.permute.xlu0 %1155
      %1159 = vrot.lane.b32.xlu0 %v883, 48
      %v1160 = vpop.permute.xlu0 %1159
      %1163 = vrot.lane.b32.xlu0 %v903, 72
      %v1164 = vpop.permute.xlu0 %1163
      %vm1166 = vcmask 195584
      %v1167 = vsel %vm1166, %v843, %v1156
      %v1168 = vsel %vm1150, %v1167, %v1160
      %vm1169 = vcmask 588800
      %v1170 = vsel %vm1169, %v1168, %v1164
      %vm1171 = vcmask 785408
      %1172 = vst.msk [vmem:[%s546] sm:$0xff] %vm1171, %v1170
      %v1181 = vlaneseq
      %v1182 = vand.u32 %v1181, 127
      %v1183 = vperm.slane %v947, %v1182
      %v1184 = vperm.slane %v950, %v1182
      %v1185 = vperm.slane %v953, %v1182
      %v1186 = vperm.slane %v956, %v1182
      %v1187 = vperm.slane %v959, %v1182
      %v1188 = vperm.slane %v962, %v1182
      %v1189 = vperm.slane %v965, %v1182
      %v1190 = vperm.slane %v968, %v1182
      %vm1191 = vcmask 1041409
      %v1192 = vsel %vm1191, %v1184, %v1183
      %vm1193 = vcmask 1042434
      %v1194 = vsel %vm1193, %v1185, %v1192
      %vm1195 = vcmask 1043459
      %v1196 = vsel %vm1195, %v1186, %v1194
      %vm1197 = vcmask 1044484
      %v1198 = vsel %vm1197, %v1187, %v1196
      %vm1199 = vcmask 1045509
      %v1200 = vsel %vm1199, %v1188, %v1198
      %vm1201 = vcmask 1046534
      %v1202 = vsel %vm1201, %v1189, %v1200
      %vm1203 = vcmask 1047559
      %v1204 = vsel %vm1203, %v1190, %v1202
      %v1214 = vadd.s32 %v1182, 4294967292
      %v1215 = vperm.slane %v1002, %v1214
      %v1216 = vperm.slane %v1005, %v1214
      %v1217 = vperm.slane %v1008, %v1214
      %v1218 = vperm.slane %v1011, %v1214
      %v1219 = vperm.slane %v1014, %v1214
      %v1220 = vperm.slane %v1017, %v1214
      %v1221 = vperm.slane %v1020, %v1214
      %v1222 = vperm.slane %v1023, %v1214
      %v1223 = vsel %vm1191, %v1216, %v1215
      %v1224 = vsel %vm1193, %v1217, %v1223
      %v1225 = vsel %vm1195, %v1218, %v1224
      %v1226 = vsel %vm1197, %v1219, %v1225
      %v1227 = vsel %vm1199, %v1220, %v1226
      %v1228 = vsel %vm1201, %v1221, %v1227
      %v1229 = vsel %vm1203, %v1222, %v1228
      %v1239 = vadd.s32 %v1182, 4294967288
      %v1240 = vperm.slane %v1057, %v1239
      %v1241 = vperm.slane %v1060, %v1239
      %v1242 = vperm.slane %v1063, %v1239
      %v1243 = vperm.slane %v1066, %v1239
      %v1244 = vperm.slane %v1069, %v1239
      %v1245 = vperm.slane %v1072, %v1239
      %v1246 = vperm.slane %v1075, %v1239
      %v1247 = vperm.slane %v1078, %v1239
      %v1248 = vsel %vm1191, %v1241, %v1240
      %v1249 = vsel %vm1193, %v1242, %v1248
      %v1250 = vsel %vm1195, %v1243, %v1249
      %v1251 = vsel %vm1197, %v1244, %v1250
      %v1252 = vsel %vm1199, %v1245, %v1251
      %v1253 = vsel %vm1201, %v1246, %v1252
      %v1254 = vsel %vm1203, %v1247, %v1253
      %v1264 = vadd.s32 %v1182, 4294967284
      %v1265 = vperm.slane %v1112, %v1264
      %v1266 = vperm.slane %v1115, %v1264
      %v1267 = vperm.slane %v1118, %v1264
      %v1268 = vperm.slane %v1121, %v1264
      %v1269 = vperm.slane %v1124, %v1264
      %v1270 = vperm.slane %v1127, %v1264
      %v1271 = vperm.slane %v1130, %v1264
      %v1272 = vperm.slane %v1133, %v1264
      %v1273 = vsel %vm1191, %v1266, %v1265
      %v1274 = vsel %vm1193, %v1267, %v1273
      %v1275 = vsel %vm1195, %v1268, %v1274
      %v1276 = vsel %vm1197, %v1269, %v1275
      %v1277 = vsel %vm1199, %v1270, %v1276
      %v1278 = vsel %vm1201, %v1271, %v1277
      %v1279 = vsel %vm1203, %v1272, %v1278
      %vm1281 = vcmask 31744
      %v1282 = vsel %vm1281, %v1204, %v1229
      %v1283 = vsel %vm680, %v1282, %v1254
      %vm1284 = vcmask 97280
      %v1285 = vsel %vm1284, %v1283, %v1279
      %1286 = vst.msk [vmem:[%s553] sm:$0xff] %vm1146, %v1285
      %p1287 = scmp.lt.s32.totalorder %s25, 1
      %s1288 = scalar_select %p1287, %s25, 1
      %p1289 = scmp.lt.s32.totalorder %s26, 0
      %s1290 = scalar_select %p1289, %s26, 0
      %s1291 = sadd.s32 %s1290, %s1288
      %s1292 = smul.addr %s1291, 8
      %s1293 = scalar_lea.vmem %s7, %s1292
      %p1294 = scmp.lt.s32.totalorder %s25, 1
      %s1295 = scalar_select %p1294, %s25, 1
      %p1296 = scmp.lt.s32.totalorder %s26, 0
      %s1297 = scalar_select %p1296, %s26, 0
      %s1298 = sadd.s32 %s1297, %s1295
      %s1299 = smul.addr %s1298, 8
      %s1300 = scalar_lea.vmem %s8, %s1299
      %p1301 = scmp.lt.s32.totalorder %s25, 1
      %s1302 = scalar_select %p1301, %s25, 1
      %p1303 = scmp.lt.s32.totalorder %s26, 0
      %s1304 = scalar_select %p1303, %s26, 0
      %s1305 = sadd.s32 %s1304, %s1302
      %s1306 = smul.addr %s1305, 8
      %s1307 = scalar_lea.vmem %s9, %s1306
      // Predicated region
      $region49: #{_lambda_.50} parent=47 // pred_check
        %p1308 = pneg %p243
      $region50: #{_lambda_.50} parent=47 // pred_check_branch
        %1310 = sbr.rel (%p1308) target = $region52
      $region51: #{_lambda_.50} parent=47 // pred_region
        _
      $region52: #{_lambda_.50} parent=47 // pred_fallthru
        _
      // Predicated region
      $region53: #{_lambda_.50} parent=47 // pred_check
        %p1311 = pneg %p271
      $region54: #{_lambda_.50} parent=47 // pred_check_branch
        %1313 = sbr.rel (%p1311) target = $region56
      $region55: #{_lambda_.50} parent=47 // pred_region
        _
      $region56: #{_lambda_.50} parent=47 // pred_fallthru
        _
      // Predicated region
      $region57: #{_lambda_.50} parent=47 // pred_check
        %p1314 = pneg %p299
      $region58: #{_lambda_.50} parent=47 // pred_check_branch
        %1316 = sbr.rel (%p1314) target = $region60
      $region59: #{_lambda_.50} parent=47 // pred_region
        _
      $region60: #{_lambda_.50} parent=47 // pred_fallthru
        _
    $region48: #{_lambda_.50} parent=5 // pred_fallthru
      _
    %p1317 = scmp.le.s32.totalorder 2, %s16
    // Predicated region
    $region61: #{_lambda_.50} parent=5 // pred_check
      %p1318 = pneg %p1317
    $region62: #{_lambda_.50} parent=5 // pred_check_branch
      %1320 = sbr.rel (%p1318) target = $region64
    $region63: #{_lambda_.50} parent=5 // pred_region
      %s1321 = ssub.s32 %s16, 2
      // Predicated region
      $region65: #{_lambda_.50} parent=63 // pred_check
        %p1322 = pneg %p249
      $region66: #{_lambda_.50} parent=63 // pred_check_branch
        %1324 = sbr.rel (%p1322) target = $region68
      $region67: #{_lambda_.50} parent=63 // pred_region
        %p1325 = scmp.lt.s32.totalorder %s27, 1
        %s1326 = scalar_select %p1325, %s27, 1
        %p1327 = scmp.lt.s32.totalorder %s28, 0
        %s1328 = scalar_select %p1327, %s28, 0
        %s1329 = sadd.s32 %s1328, %s1326
        %s1330 = smul.addr %s1329, 8
        %s1331 = scalar_lea.vmem %s7, %s1330
      $region68: #{_lambda_.50} parent=63 // pred_fallthru
        _
      // Predicated region
      $region69: #{_lambda_.50} parent=63 // pred_check
        %p1332 = pneg %p277
      $region70: #{_lambda_.50} parent=63 // pred_check_branch
        %1334 = sbr.rel (%p1332) target = $region72
      $region71: #{_lambda_.50} parent=63 // pred_region
        %p1335 = scmp.lt.s32.totalorder %s27, 1
        %s1336 = scalar_select %p1335, %s27, 1
        %p1337 = scmp.lt.s32.totalorder %s28, 0
        %s1338 = scalar_select %p1337, %s28, 0
        %s1339 = sadd.s32 %s1338, %s1336
        %s1340 = smul.addr %s1339, 8
        %s1341 = scalar_lea.vmem %s8, %s1340
      $region72: #{_lambda_.50} parent=63 // pred_fallthru
        _
      // Predicated region
      $region73: #{_lambda_.50} parent=63 // pred_check
        %p1342 = pneg %p305
      $region74: #{_lambda_.50} parent=63 // pred_check_branch
        %1344 = sbr.rel (%p1342) target = $region76
      $region75: #{_lambda_.50} parent=63 // pred_region
        %p1345 = scmp.lt.s32.totalorder %s27, 1
        %s1346 = scalar_select %p1345, %s27, 1
        %p1347 = scmp.lt.s32.totalorder %s28, 0
        %s1348 = scalar_select %p1347, %s28, 0
        %s1349 = sadd.s32 %s1348, %s1346
        %s1350 = smul.addr %s1349, 8
        %s1351 = scalar_lea.vmem %s9, %s1350
      $region76: #{_lambda_.50} parent=63 // pred_fallthru
        _
    $region64: #{_lambda_.50} parent=5 // pred_fallthru
      _
  $region6: #{_lambda_.50} parent=0 // loop_footer
    %s20 = sadd.s32 1, %s16
  $region7: #{_lambda_.50} parent=0 // loop_footer_branch
    %15 = sbr.rel target = $region3
  $region8: #{_lambda_.50} parent=0 // loop_exit
    _

// kernel: _lambda_.54
$region0: #{_lambda_.54}
  #allocation0 [shape = 'u32[]', space=smem, size = 0x4, offset = 0x4, fixed_abs, tag = 'smem constant byte address 0x4 - core index']
  #allocation1 [shape = 'u32[72,128]{1,0:T(1,128)}', space=vmem, size = 0x9000, scoped, tag = 'internal scratch']
  %s0 = inlined_call_operand.vmem [shape: f32[16,48], index: 0, kind: input, shape index: {}]
  %s1 = inlined_call_operand.vmem [shape: f32[48,144], index: 1, kind: input, shape index: {}]
  %s2 = inlined_call_operand.vmem [shape: f32[1,144], index: 2, kind: input, shape index: {}]
  %s3 = inlined_call_operand.vmem [shape: f32[16,144], index: 3, kind: output, shape index: {}]
  %s4 = sld [smem:[#allocation0]]
  $region22: #{_lambda_.54} parent=0
    _
  %s6 = ssub.s32 1, %s4
  %s7 = scalar_select 0, %s6, %s4
  // Predicated region
  $region2: #{_lambda_.54} parent=0 // pred_check
    _
  $region3: #{_lambda_.54} parent=0 // pred_check_branch
    %9 = sbr.rel (0) target = $region5
  $region4: #{_lambda_.54} parent=0 // pred_region
    _
  $region5: #{_lambda_.54} parent=0 // pred_fallthru
    _
  // Predicated region
  $region6: #{_lambda_.54} parent=0 // pred_check
    _
  $region7: #{_lambda_.54} parent=0 // pred_check_branch
    %11 = sbr.rel (0) target = $region9
  $region8: #{_lambda_.54} parent=0 // pred_region
    _
  $region9: #{_lambda_.54} parent=0 // pred_fallthru
    _
  // Predicated region
  $region10: #{_lambda_.54} parent=0 // pred_check
    _
  $region11: #{_lambda_.54} parent=0 // pred_check_branch
    %13 = sbr.rel (0) target = $region13
  $region12: #{_lambda_.54} parent=0 // pred_region
    _
  $region13: #{_lambda_.54} parent=0 // pred_fallthru
    _
  %v14 = vld [vmem:[%s0] sm:$0xff]
  %v15 = vld [vmem:[%s0 + $0x8] sm:$0xff]
  %v16 = vld [vmem:[%s1] sm:$0xff]
  %v17 = vld [vmem:[%s1 + $0x8] sm:$0xff]
  %v18 = vld [vmem:[%s1 + $0x10] sm:$0xff]
  %v19 = vld [vmem:[%s1 + $0x18] sm:$0xff]
  %v20 = vld [vmem:[%s1 + $0x20] sm:$0xff]
  %v21 = vld [vmem:[%s1 + $0x28] sm:$0xff]
  %v22 = vld [vmem:[%s1 + $0x30] sm:$0xff]
  %v23 = vld [vmem:[%s1 + $0x38] sm:$0xff]
  %v24 = vld [vmem:[%s1 + $0x40] sm:$0xff]
  %v25 = vld [vmem:[%s1 + $0x48] sm:$0xff]
  %v26 = vld [vmem:[%s1 + $0x50] sm:$0xff]
  %v27 = vld [vmem:[%s1 + $0x58] sm:$0xff]
  %v28 = vld [vmem:[%s2] sm:$0x3]
  %v30 = vperm.slane %v28, 0
  %v31 = vperm.slane %v28, 1
  %vm34 = vcmask 392192
  %v36 = vsel %vm34, %v14, 0
  %v39 = vsel %vm34, %v15, 0
  %41 = vmatpush.msra.mxu0 0.0
  %42 = vmatpush.msra.mxu0 0.0
  %43 = vmatpush.msra.mxu0 0.0
  %44 = vmatpush.msra.mxu0 0.0
  %45 = vmatpush.msra.mxu0 0.0
  %46 = vmatpush.msra.mxu0 0.0
  %47 = vmatpush.msra.mxu0 0.0
  %48 = vmatpush.msra.mxu0 0.0
  %49 = vmatpush.msra.mxu0 0.0
  %50 = vmatpush.msra.mxu0 0.0
  %51 = vmatpush.msra.mxu0 %v26
  %52 = vmatpush.msra.mxu0 %v24
  %53 = vmatpush.msra.mxu0 %v22
  %54 = vmatpush.msra.mxu0 %v20
  %55 = vmatpush.msra.mxu0 %v18
  %56 = vmatpush.msra.mxu0 %v16
  %57 = vmatmul.f32.gmra.mxu0 %v36
  %v58 = vpop.f32.mrf.mxu0
  %v59 = vadd.f32 %v30, %v58
  %60 = vmatmul.f32.gmra.mxu0 %v39
  %v61 = vpop.f32.mrf.mxu0
  %v62 = vadd.f32 %v30, %v61
  %63 = vdwg.mxu0
  %64 = vmatpush.msra.mxu0 0.0
  %65 = vmatpush.msra.mxu0 0.0
  %66 = vmatpush.msra.mxu0 0.0
  %67 = vmatpush.msra.mxu0 0.0
  %68 = vmatpush.msra.mxu0 0.0
  %69 = vmatpush.msra.mxu0 0.0
  %70 = vmatpush.msra.mxu0 0.0
  %71 = vmatpush.msra.mxu0 0.0
  %72 = vmatpush.msra.mxu0 0.0
  %73 = vmatpush.msra.mxu0 0.0
  %74 = vmatpush.msra.mxu0 %v27
  %75 = vmatpush.msra.mxu0 %v25
  %76 = vmatpush.msra.mxu0 %v23
  %77 = vmatpush.msra.mxu0 %v21
  %78 = vmatpush.msra.mxu0 %v19
  %79 = vmatpush.msra.mxu0 %v17
  %80 = vmatmul.f32.gmra.mxu0 %v36
  %v81 = vpop.f32.mrf.mxu0
  %v82 = vadd.f32 %v31, %v81
  %83 = vmatmul.f32.gmra.mxu0 %v39
  %v84 = vpop.f32.mrf.mxu0
  %v85 = vadd.f32 %v31, %v84
  %86 = vdwg.mxu0
  %87 = vst [vmem:[%s3] sm:$0xff] %v59
  %vm88 = vcmask 130048
  %89 = vst.msk [vmem:[%s3 + $0x8] sm:$0xff] %vm88, %v82
  %90 = vst [vmem:[%s3 + $0x10] sm:$0xff] %v62
  %91 = vst.msk [vmem:[%s3 + $0x18] sm:$0xff] %vm88, %v85
  // Predicated region
  $region14: #{_lambda_.54} parent=0 // pred_check
    _
  $region15: #{_lambda_.54} parent=0 // pred_check_branch
    %93 = sbr.rel (0) target = $region17
  $region16: #{_lambda_.54} parent=0 // pred_region
    _
  $region17: #{_lambda_.54} parent=0 // pred_fallthru
    _
  // Predicated region
  $region18: #{_lambda_.54} parent=0 // pred_check
    _
  $region19: #{_lambda_.54} parent=0 // pred_check_branch
    %95 = sbr.rel (0) target = $region21
  $region20: #{_lambda_.54} parent=0 // pred_region
    _
  $region21: #{_lambda_.54} parent=0 // pred_fallthru
    _

// kernel: _lambda_.52
$region0: #{_lambda_.52}
  #allocation0 [shape = 'u32[]', space=smem, size = 0x4, offset = 0x4, fixed_abs, tag = 'smem constant byte address 0x4 - core index']
  #allocation1 [shape = 'u32[72,128]{1,0:T(1,128)}', space=vmem, size = 0x9000, scoped, tag = 'internal scratch']
  %s0 = inlined_call_operand.vmem [shape: f32[16,32], index: 0, kind: input, shape index: {}]
  %s1 = inlined_call_operand.vmem [shape: f32[16,32], index: 1, kind: input, shape index: {}]
  %s2 = inlined_call_operand.vmem [shape: f32[1,32], index: 2, kind: input, shape index: {}]
  %s3 = inlined_call_operand.vmem [shape: f32[1,32], index: 3, kind: input, shape index: {}]
  %s4 = inlined_call_operand.vmem [shape: f32[16,32], index: 4, kind: output, shape index: {}]
  %s5 = sld [smem:[#allocation0]]
  $region26: #{_lambda_.52} parent=0
    _
  %s7 = ssub.s32 1, %s5
  %s8 = scalar_select 0, %s7, %s5
  // Predicated region
  $region2: #{_lambda_.52} parent=0 // pred_check
    _
  $region3: #{_lambda_.52} parent=0 // pred_check_branch
    %10 = sbr.rel (0) target = $region5
  $region4: #{_lambda_.52} parent=0 // pred_region
    _
  $region5: #{_lambda_.52} parent=0 // pred_fallthru
    _
  // Predicated region
  $region6: #{_lambda_.52} parent=0 // pred_check
    _
  $region7: #{_lambda_.52} parent=0 // pred_check_branch
    %12 = sbr.rel (0) target = $region9
  $region8: #{_lambda_.52} parent=0 // pred_region
    _
  $region9: #{_lambda_.52} parent=0 // pred_fallthru
    _
  // Predicated region
  $region10: #{_lambda_.52} parent=0 // pred_check
    _
  $region11: #{_lambda_.52} parent=0 // pred_check_branch
    %14 = sbr.rel (0) target = $region13
  $region12: #{_lambda_.52} parent=0 // pred_region
    _
  $region13: #{_lambda_.52} parent=0 // pred_fallthru
    _
  // Predicated region
  $region14: #{_lambda_.52} parent=0 // pred_check
    _
  $region15: #{_lambda_.52} parent=0 // pred_check_branch
    %16 = sbr.rel (0) target = $region17
  $region16: #{_lambda_.52} parent=0 // pred_region
    _
  $region17: #{_lambda_.52} parent=0 // pred_fallthru
    _
  %v17 = vld [vmem:[%s0] sm:$0xff]
  %v18 = vld [vmem:[%s0 + $0x8] sm:$0xff]
  %v19 = vld [vmem:[%s1] sm:$0xff]
  %v20 = vld [vmem:[%s1 + $0x8] sm:$0xff]
  %v21 = vadd.f32 %v17, %v19
  %v22 = vadd.f32 %v18, %v20
  %vm23 = vcmask 261120
  %v24 = vsel %vm23, %v21, 0.0
  %25 = vadd.xlane.f32.xlu0 %v24
  %v26 = vpop.xlane.xlu0 %25
  %v27 = vsel %vm23, %v22, 0.0
  %28 = vadd.xlane.f32.xlu0 %v27
  %v29 = vpop.xlane.xlu0 %28
  %v30 = vrcp.pop 32.0
  %v31 = vmul.f32 32.0, %v30
  %v32 = vsub.f32 1.0, %v31
  %v33 = vmul.f32 %v30, %v32
  %v34 = vadd.f32 %v30, %v33
  %vm35 = vweird.f32 %v30
  %v36 = vsel %vm35, %v30, %v34
  %v37 = vmul.f32 %v26, %v36
  %v38 = vmul.f32 %v29, %v36
  %v39 = vsub.f32 %v21, %v37
  %v40 = vsub.f32 %v22, %v38
  %v41 = vmul.f32 %v39, %v39
  %v42 = vmul.f32 %v40, %v40
  %v43 = vsel %vm23, %v41, 0.0
  %44 = vadd.xlane.f32.xlu0 %v43
  %v45 = vpop.xlane.xlu0 %44
  %v46 = vsel %vm23, %v42, 0.0
  %47 = vadd.xlane.f32.xlu0 %v46
  %v48 = vpop.xlane.xlu0 %47
  %v49 = vmul.f32 %v45, %v36
  %v50 = vmul.f32 %v48, %v36
  %v51 = vadd.f32 %v49, 1e-05
  %v52 = vadd.f32 %v50, 1e-05
  %v53 = vrsqrt.pop %v51
  %v54 = vmul.f32 %v53, %v51
  %v55 = vmul.f32 %v54, %v53
  %v56 = vmul.f32 0.5, %v55
  %v57 = vsub.f32 1.5, %v56
  %v58 = vmul.f32 %v53, %v57
  %vm59 = vweird.f32 %v51
  %vm60 = vweird.f32 %v53
  %vm61 = vmor %vm59, %vm60
  %v62 = vsel %vm61, %v53, %v58
  %v63 = vrsqrt.pop %v52
  %v64 = vmul.f32 %v63, %v52
  %v65 = vmul.f32 %v64, %v63
  %v66 = vmul.f32 0.5, %v65
  %v67 = vsub.f32 1.5, %v66
  %v68 = vmul.f32 %v63, %v67
  %vm69 = vweird.f32 %v52
  %vm70 = vweird.f32 %v63
  %vm71 = vmor %vm69, %vm70
  %v72 = vsel %vm71, %v63, %v68
  %v73 = vmul.f32 %v39, %v62
  %v74 = vmul.f32 %v40, %v72
  %v75 = vld [vmem:[%s2] sm:$0x1]
  %v77 = vperm.slane %v75, 0
  %v79 = vmul.f32 %v73, %v77
  %v80 = vmul.f32 %v74, %v77
  %v81 = vld [vmem:[%s3] sm:$0x1]
  %v83 = vperm.slane %v81, 0
  %v85 = vadd.f32 %v79, %v83
  %v86 = vadd.f32 %v80, %v83
  %87 = vst.msk [vmem:[%s4] sm:$0xff] %vm23, %v85
  %88 = vst.msk [vmem:[%s4 + $0x8] sm:$0xff] %vm23, %v86
  // Predicated region
  $region18: #{_lambda_.52} parent=0 // pred_check
    _
  $region19: #{_lambda_.52} parent=0 // pred_check_branch
    %90 = sbr.rel (0) target = $region21
  $region20: #{_lambda_.52} parent=0 // pred_region
    _
  $region21: #{_lambda_.52} parent=0 // pred_fallthru
    _
  // Predicated region
  $region22: #{_lambda_.52} parent=0 // pred_check
    _
  $region23: #{_lambda_.52} parent=0 // pred_check_branch
    %92 = sbr.rel (0) target = $region25
  $region24: #{_lambda_.52} parent=0 // pred_region
    _
  $region25: #{_lambda_.52} parent=0 // pred_fallthru
    _

// kernel: _lambda_.51
$region0: #{_lambda_.51}
  #allocation0 [shape = 'u32[]', space=smem, size = 0x4, offset = 0x4, fixed_abs, tag = 'smem constant byte address 0x4 - core index']
  #allocation1 [shape = 'u32[72,128]{1,0:T(1,128)}', space=vmem, size = 0x9000, scoped, tag = 'internal scratch']
  %s0 = inlined_call_operand.vmem [shape: f32[16,208], index: 0, kind: input, shape index: {}]
  %s1 = inlined_call_operand.vmem [shape: f32[208,32], index: 1, kind: input, shape index: {}]
  %s2 = inlined_call_operand.vmem [shape: f32[1,32], index: 2, kind: input, shape index: {}]
  %s3 = inlined_call_operand.vmem [shape: f32[16,32], index: 3, kind: output, shape index: {}]
  %s4 = sld [smem:[#allocation0]]
  $region22: #{_lambda_.51} parent=0
    _
  %s6 = ssub.s32 1, %s4
  %s7 = scalar_select 0, %s6, %s4
  // Predicated region
  $region2: #{_lambda_.51} parent=0 // pred_check
    _
  $region3: #{_lambda_.51} parent=0 // pred_check_branch
    %9 = sbr.rel (0) target = $region5
  $region4: #{_lambda_.51} parent=0 // pred_region
    _
  $region5: #{_lambda_.51} parent=0 // pred_fallthru
    _
  // Predicated region
  $region6: #{_lambda_.51} parent=0 // pred_check
    _
  $region7: #{_lambda_.51} parent=0 // pred_check_branch
    %11 = sbr.rel (0) target = $region9
  $region8: #{_lambda_.51} parent=0 // pred_region
    _
  $region9: #{_lambda_.51} parent=0 // pred_fallthru
    _
  // Predicated region
  $region10: #{_lambda_.51} parent=0 // pred_check
    _
  $region11: #{_lambda_.51} parent=0 // pred_check_branch
    %13 = sbr.rel (0) target = $region13
  $region12: #{_lambda_.51} parent=0 // pred_region
    _
  $region13: #{_lambda_.51} parent=0 // pred_fallthru
    _
  %v14 = vld [vmem:[%s0] sm:$0xff]
  %v15 = vld [vmem:[%s0 + $0x8] sm:$0xff]
  %v16 = vld [vmem:[%s0 + $0x10] sm:$0xff]
  %v17 = vld [vmem:[%s0 + $0x18] sm:$0xff]
  %v18 = vld [vmem:[%s1] sm:$0xff]
  %v19 = vld [vmem:[%s1 + $0x8] sm:$0xff]
  %v20 = vld [vmem:[%s1 + $0x10] sm:$0xff]
  %v21 = vld [vmem:[%s1 + $0x18] sm:$0xff]
  %v22 = vld [vmem:[%s1 + $0x20] sm:$0xff]
  %v23 = vld [vmem:[%s1 + $0x28] sm:$0xff]
  %v24 = vld [vmem:[%s1 + $0x30] sm:$0xff]
  %v25 = vld [vmem:[%s1 + $0x38] sm:$0xff]
  %v26 = vld [vmem:[%s1 + $0x40] sm:$0xff]
  %v27 = vld [vmem:[%s1 + $0x48] sm:$0xff]
  %v28 = vld [vmem:[%s1 + $0x50] sm:$0xff]
  %v29 = vld [vmem:[%s1 + $0x58] sm:$0xff]
  %v30 = vld [vmem:[%s1 + $0x60] sm:$0xff]
  %v31 = vld [vmem:[%s1 + $0x68] sm:$0xff]
  %v32 = vld [vmem:[%s1 + $0x70] sm:$0xff]
  %v33 = vld [vmem:[%s1 + $0x78] sm:$0xff]
  %v34 = vld [vmem:[%s1 + $0x80] sm:$0xff]
  %v35 = vld [vmem:[%s1 + $0x88] sm:$0xff]
  %v36 = vld [vmem:[%s1 + $0x90] sm:$0xff]
  %v37 = vld [vmem:[%s1 + $0x98] sm:$0xff]
  %v38 = vld [vmem:[%s1 + $0xa0] sm:$0xff]
  %v39 = vld [vmem:[%s1 + $0xa8] sm:$0xff]
  %v40 = vld [vmem:[%s1 + $0xb0] sm:$0xff]
  %v41 = vld [vmem:[%s1 + $0xb8] sm:$0xff]
  %v42 = vld [vmem:[%s1 + $0xc0] sm:$0xff]
  %v43 = vld [vmem:[%s1 + $0xc8] sm:$0xff]
  %v44 = vld [vmem:[%s2] sm:$0x1]
  %v46 = vperm.slane %v44, 0
  %vm48 = vcmask 654336
  %v50 = vsel %vm48, %v15, 0
  %v53 = vsel %vm48, %v17, 0
  %55 = vmatpush.msra.mxu0 %v33
  %56 = vmatpush.msra.mxu0 %v32
  %57 = vmatpush.msra.mxu0 %v31
  %58 = vmatpush.msra.mxu0 %v30
  %59 = vmatpush.msra.mxu0 %v29
  %60 = vmatpush.msra.mxu0 %v28
  %61 = vmatpush.msra.mxu0 %v27
  %62 = vmatpush.msra.mxu0 %v26
  %63 = vmatpush.msra.mxu0 %v25
  %64 = vmatpush.msra.mxu0 %v24
  %65 = vmatpush.msra.mxu0 %v23
  %66 = vmatpush.msra.mxu0 %v22
  %67 = vmatpush.msra.mxu0 %v21
  %68 = vmatpush.msra.mxu0 %v20
  %69 = vmatpush.msra.mxu0 %v19
  %70 = vmatpush.msra.mxu0 %v18
  %71 = vmatmul.f32.gmra.mxu0 %v14
  %v72 = vpop.f32.mrf.mxu0
  %v73 = vadd.f32 %v46, %v72
  %74 = vmatmul.f32.gmra.mxu0 %v16
  %v75 = vpop.f32.mrf.mxu0
  %v76 = vadd.f32 %v46, %v75
  %77 = vdwg.mxu0
  %78 = vmatpush.msra.mxu0 0.0
  %79 = vmatpush.msra.mxu0 0.0
  %80 = vmatpush.msra.mxu0 0.0
  %81 = vmatpush.msra.mxu0 0.0
  %82 = vmatpush.msra.mxu0 0.0
  %83 = vmatpush.msra.mxu0 0.0
  %84 = vmatpush.msra.mxu0 %v43
  %85 = vmatpush.msra.mxu0 %v42
  %86 = vmatpush.msra.mxu0 %v41
  %87 = vmatpush.msra.mxu0 %v40
  %88 = vmatpush.msra.mxu0 %v39
  %89 = vmatpush.msra.mxu0 %v38
  %90 = vmatpush.msra.mxu0 %v37
  %91 = vmatpush.msra.mxu0 %v36
  %92 = vmatpush.msra.mxu0 %v35
  %93 = vmatpush.msra.mxu0 %v34
  %94 = vmatmul.f32.gmra.mxu0 %v50
  %v95 = vpop.f32.mrf.mxu0
  %v96 = vadd.f32 %v73, %v95
  %97 = vmatmul.f32.gmra.mxu0 %v53
  %v98 = vpop.f32.mrf.mxu0
  %v99 = vadd.f32 %v76, %v98
  %100 = vdwg.mxu0
  %vm101 = vcmask 261120
  %102 = vst.msk [vmem:[%s3] sm:$0xff] %vm101, %v96
  %103 = vst.msk [vmem:[%s3 + $0x8] sm:$0xff] %vm101, %v99
  // Predicated region
  $region14: #{_lambda_.51} parent=0 // pred_check
    _
  $region15: #{_lambda_.51} parent=0 // pred_check_branch
    %105 = sbr.rel (0) target = $region17
  $region16: #{_lambda_.51} parent=0 // pred_region
    _
  $region17: #{_lambda_.51} parent=0 // pred_fallthru
    _
  // Predicated region
  $region18: #{_lambda_.51} parent=0 // pred_check
    _
  $region19: #{_lambda_.51} parent=0 // pred_check_branch
    %107 = sbr.rel (0) target = $region21
  $region20: #{_lambda_.51} parent=0 // pred_region
    _
  $region21: #{_lambda_.51} parent=0 // pred_fallthru
    _

// kernel: _lambda_.56
$region0: #{_lambda_.56}
  #allocation0 [shape = 'u32[]', space=smem, size = 0x4, offset = 0x4, fixed_abs, tag = 'smem constant byte address 0x4 - core index']
  #allocation1 [shape = 'u32[72,128]{1,0:T(1,128)}', space=vmem, size = 0x9000, scoped, tag = 'internal scratch']
  %s0 = inlined_call_operand.vmem [shape: f32[16,48], index: 0, kind: input, shape index: {}]
  %s1 = inlined_call_operand.vmem [shape: f32[48,48], index: 1, kind: input, shape index: {}]
  %s2 = inlined_call_operand.vmem [shape: f32[1,48], index: 2, kind: input, shape index: {}]
  %s3 = inlined_call_operand.vmem [shape: f32[16,48], index: 3, kind: input, shape index: {}]
  %s4 = inlined_call_operand.vmem [shape: f32[1,48], index: 4, kind: input, shape index: {}]
  %s5 = inlined_call_operand.vmem [shape: f32[1,48], index: 5, kind: input, shape index: {}]
  %s6 = inlined_call_operand.vmem [shape: f32[16,48], index: 6, kind: output, shape index: {}]
  %s7 = sld [smem:[#allocation0]]
  $region34: #{_lambda_.56} parent=0
    _
  %s9 = ssub.s32 1, %s7
  %s10 = scalar_select 0, %s9, %s7
  // Predicated region
  $region2: #{_lambda_.56} parent=0 // pred_check
    _
  $region3: #{_lambda_.56} parent=0 // pred_check_branch
    %12 = sbr.rel (0) target = $region5
  $region4: #{_lambda_.56} parent=0 // pred_region
    _
  $region5: #{_lambda_.56} parent=0 // pred_fallthru
    _
  // Predicated region
  $region6: #{_lambda_.56} parent=0 // pred_check
    _
  $region7: #{_lambda_.56} parent=0 // pred_check_branch
    %14 = sbr.rel (0) target = $region9
  $region8: #{_lambda_.56} parent=0 // pred_region
    _
  $region9: #{_lambda_.56} parent=0 // pred_fallthru
    _
  // Predicated region
  $region10: #{_lambda_.56} parent=0 // pred_check
    _
  $region11: #{_lambda_.56} parent=0 // pred_check_branch
    %16 = sbr.rel (0) target = $region13
  $region12: #{_lambda_.56} parent=0 // pred_region
    _
  $region13: #{_lambda_.56} parent=0 // pred_fallthru
    _
  // Predicated region
  $region14: #{_lambda_.56} parent=0 // pred_check
    _
  $region15: #{_lambda_.56} parent=0 // pred_check_branch
    %18 = sbr.rel (0) target = $region17
  $region16: #{_lambda_.56} parent=0 // pred_region
    _
  $region17: #{_lambda_.56} parent=0 // pred_fallthru
    _
  // Predicated region
  $region18: #{_lambda_.56} parent=0 // pred_check
    _
  $region19: #{_lambda_.56} parent=0 // pred_check_branch
    %20 = sbr.rel (0) target = $region21
  $region20: #{_lambda_.56} parent=0 // pred_region
    _
  $region21: #{_lambda_.56} parent=0 // pred_fallthru
    _
  // Predicated region
  $region22: #{_lambda_.56} parent=0 // pred_check
    _
  $region23: #{_lambda_.56} parent=0 // pred_check_branch
    %22 = sbr.rel (0) target = $region25
  $region24: #{_lambda_.56} parent=0 // pred_region
    _
  $region25: #{_lambda_.56} parent=0 // pred_fallthru
    _
  %v23 = vld [vmem:[%s0] sm:$0xff]
  %v24 = vld [vmem:[%s0 + $0x8] sm:$0xff]
  %v25 = vld [vmem:[%s1] sm:$0xff]
  %v26 = vld [vmem:[%s1 + $0x8] sm:$0xff]
  %v27 = vld [vmem:[%s1 + $0x10] sm:$0xff]
  %v28 = vld [vmem:[%s1 + $0x18] sm:$0xff]
  %v29 = vld [vmem:[%s1 + $0x20] sm:$0xff]
  %v30 = vld [vmem:[%s1 + $0x28] sm:$0xff]
  %v31 = vld [vmem:[%s2] sm:$0x1]
  %v33 = vperm.slane %v31, 0
  %vm35 = vcmask 392192
  %v37 = vsel %vm35, %v23, 0
  %v40 = vsel %vm35, %v24, 0
  %42 = vmatpush.msra.mxu0 0.0
  %43 = vmatpush.msra.mxu0 0.0
  %44 = vmatpush.msra.mxu0 0.0
  %45 = vmatpush.msra.mxu0 0.0
  %46 = vmatpush.msra.mxu0 0.0
  %47 = vmatpush.msra.mxu0 0.0
  %48 = vmatpush.msra.mxu0 0.0
  %49 = vmatpush.msra.mxu0 0.0
  %50 = vmatpush.msra.mxu0 0.0
  %51 = vmatpush.msra.mxu0 0.0
  %52 = vmatpush.msra.mxu0 %v30
  %53 = vmatpush.msra.mxu0 %v29
  %54 = vmatpush.msra.mxu0 %v28
  %55 = vmatpush.msra.mxu0 %v27
  %56 = vmatpush.msra.mxu0 %v26
  %57 = vmatpush.msra.mxu0 %v25
  %58 = vmatmul.f32.gmra.mxu0 %v37
  %v59 = vpop.f32.mrf.mxu0
  %v60 = vadd.f32 %v33, %v59
  %61 = vmatmul.f32.gmra.mxu0 %v40
  %v62 = vpop.f32.mrf.mxu0
  %v63 = vadd.f32 %v33, %v62
  %64 = vdwg.mxu0
  %v65 = vld [vmem:[%s3] sm:$0xff]
  %v66 = vld [vmem:[%s3 + $0x8] sm:$0xff]
  %v67 = vadd.f32 %v60, %v65
  %v68 = vadd.f32 %v63, %v66
  %v69 = vsel %vm35, %v67, 0.0
  %70 = vadd.xlane.f32.xlu0 %v69
  %v71 = vpop.xlane.xlu0 %70
  %v72 = vsel %vm35, %v68, 0.0
  %73 = vadd.xlane.f32.xlu0 %v72
  %v74 = vpop.xlane.xlu0 %73
  %v75 = vrcp.pop 48.0
  %v76 = vmul.f32 48.0, %v75
  %v77 = vsub.f32 1.0, %v76
  %v78 = vmul.f32 %v75, %v77
  %v79 = vadd.f32 %v75, %v78
  %vm80 = vweird.f32 %v75
  %v81 = vsel %vm80, %v75, %v79
  %v82 = vmul.f32 %v71, %v81
  %v83 = vmul.f32 %v74, %v81
  %v84 = vsub.f32 %v67, %v82
  %v85 = vsub.f32 %v68, %v83
  %v86 = vmul.f32 %v84, %v84
  %v87 = vmul.f32 %v85, %v85
  %v88 = vsel %vm35, %v86, 0.0
  %89 = vadd.xlane.f32.xlu0 %v88
  %v90 = vpop.xlane.xlu0 %89
  %v91 = vsel %vm35, %v87, 0.0
  %92 = vadd.xlane.f32.xlu0 %v91
  %v93 = vpop.xlane.xlu0 %92
  %v94 = vmul.f32 %v90, %v81
  %v95 = vmul.f32 %v93, %v81
  %v96 = vadd.f32 %v94, 1e-05
  %v97 = vadd.f32 %v95, 1e-05
  %v98 = vrsqrt.pop %v96
  %v99 = vmul.f32 %v98, %v96
  %v100 = vmul.f32 %v99, %v98
  %v101 = vmul.f32 0.5, %v100
  %v102 = vsub.f32 1.5, %v101
  %v103 = vmul.f32 %v98, %v102
  %vm104 = vweird.f32 %v96
  %vm105 = vweird.f32 %v98
  %vm106 = vmor %vm104, %vm105
  %v107 = vsel %vm106, %v98, %v103
  %v108 = vrsqrt.pop %v97
  %v109 = vmul.f32 %v108, %v97
  %v110 = vmul.f32 %v109, %v108
  %v111 = vmul.f32 0.5, %v110
  %v112 = vsub.f32 1.5, %v111
  %v113 = vmul.f32 %v108, %v112
  %vm114 = vweird.f32 %v97
  %vm115 = vweird.f32 %v108
  %vm116 = vmor %vm114, %vm115
  %v117 = vsel %vm116, %v108, %v113
  %v118 = vmul.f32 %v84, %v107
  %v119 = vmul.f32 %v85, %v117
  %v120 = vld [vmem:[%s4] sm:$0x1]
  %v122 = vperm.slane %v120, 0
  %v124 = vmul.f32 %v118, %v122
  %v125 = vmul.f32 %v119, %v122
  %v126 = vld [vmem:[%s5] sm:$0x1]
  %v128 = vperm.slane %v126, 0
  %v130 = vadd.f32 %v124, %v128
  %v131 = vadd.f32 %v125, %v128
  %132 = vst.msk [vmem:[%s6] sm:$0xff] %vm35, %v130
  %133 = vst.msk [vmem:[%s6 + $0x8] sm:$0xff] %vm35, %v131
  // Predicated region
  $region26: #{_lambda_.56} parent=0 // pred_check
    _
  $region27: #{_lambda_.56} parent=0 // pred_check_branch
    %135 = sbr.rel (0) target = $region29
  $region28: #{_lambda_.56} parent=0 // pred_region
    _
  $region29: #{_lambda_.56} parent=0 // pred_fallthru
    _
  // Predicated region
  $region30: #{_lambda_.56} parent=0 // pred_check
    _
  $region31: #{_lambda_.56} parent=0 // pred_check_branch
    %137 = sbr.rel (0) target = $region33
  $region32: #{_lambda_.56} parent=0 // pred_region
    _
  $region33: #{_lambda_.56} parent=0 // pred_fallthru
    _

// kernel: _lambda_.55
$region0: #{_lambda_.55}
  #allocation0 [shape = 'u32[]', space=smem, size = 0x4, offset = 0x4, fixed_abs, tag = 'smem constant byte address 0x4 - core index']
  #allocation1 [shape = 'u32[72,128]{1,0:T(1,128)}', space=vmem, size = 0x9000, scoped, tag = 'internal scratch']
  %s0 = inlined_call_operand.vmem [shape: f32[2,4,8,12], index: 0, kind: input, shape index: {}]
  %s1 = inlined_call_operand.vmem [shape: f32[2,4,8,12], index: 1, kind: input, shape index: {}]
  %s2 = inlined_call_operand.vmem [shape: f32[2,4,8,12], index: 2, kind: input, shape index: {}]
  %s3 = inlined_call_operand.vmem [shape: f32[2,1,8], index: 3, kind: input, shape index: {}]
  %s4 = inlined_call_operand.vmem [shape: f32[2,8,48], index: 4, kind: output, shape index: {}]
  %s5 = sld [smem:[#allocation0]]
  $region49: #{_lambda_.55} parent=0
    _
  %s7 = ssub.s32 1, %s5
  %s8 = scalar_select 0, %s7, %s5
  loop: start=0, step=1, limit=4
  $region2: #{_lambda_.55} parent=0 // loop_pre_header
    _
  $region3: #{_lambda_.55} parent=0 // loop_header
    %s10 = sphi 0, %s14
    %p11 = scmp.ge.s32.totalorder %s10, 4
    %s17 = sphi 0, %s29
    %s18 = sphi 0, %s25
    %s19 = sphi 0, %s17
    %s20 = sphi 0, %s18
    %s21 = sphi 0, %s19
    %s22 = sphi 0, %s20
    %s34 = sphi 0, %s36
    %s37 = sphi 0, %s34
    %s38 = sphi 0, %s37
    %s54 = sphi 0, %s38
    %s60 = sphi 0, %s62
    %s63 = sphi 0, %s60
    %s64 = sphi 0, %s63
    %s80 = sphi 0, %s64
    %s86 = sphi 0, %s88
    %s89 = sphi 0, %s86
    %s90 = sphi 0, %s89
    %s106 = sphi 0, %s90
    %s112 = sphi 0, %s114
    %s115 = sphi 0, %s112
    %s116 = sphi 0, %s115
    %s132 = sphi 0, %s116
    %s140 = sphi 0, %s142
    %s143 = sphi 0, %s140
    %s144 = sphi 0, %s143
    %s160 = sphi 0, %s144
  $region4: #{_lambda_.55} parent=0 // loop_header_branch
    %13 = sbr.rel (%p11) target = $region8
  $region5: #{_lambda_.55} parent=0 // loop_body
    %s15 = ssub.s32 %s10, 1
    %s16 = ssub.s32 %s10, 2
    %s23 = sadd.s32 1, %s18
    %p24 = scmp.ge.s32.totalorder %s23, 1
    %s25 = scalar_select %p24, 0, %s23
    %s26 = sadd.s32 1, %s17
    %s27 = scalar_select %p24, %s26, %s17
    %p28 = scmp.ge.s32.totalorder %s27, 2
    %s29 = scalar_select %p28, 0, %s27
    %s30 = ssub.s32 %s17, %s29
    %s31 = ssub.s32 %s18, %s25
    %s32 = sor.u32 %s30, %s31
    %p33 = scmp.eq.s32.totalorder %s32, 0
    %s35 = sadd.s32 %s34, 1
    %s36 = scalar_select %p33, %s34, %s35
    %p39 = pneg %p33
    %p40 = scmp.eq.s32.totalorder %s10, 1
    %p41 = por %p39, %p40
    %p42 = scmp.ne.s32.totalorder %s34, %s37
    %p43 = scmp.eq.s32.totalorder %s10, 0
    %p44 = por %p42, %p43
    %p45 = scmp.ne.s32.totalorder %s34, %s37
    %p46 = scmp.eq.s32.totalorder %s15, 1
    %p47 = por %p45, %p46
    %p48 = scmp.ne.s32.totalorder %s37, %s38
    %p49 = scmp.eq.s32.totalorder %s15, 0
    %p50 = por %p48, %p49
    %p51 = scmp.ne.s32.totalorder %s37, %s38
    %p52 = scmp.eq.s32.totalorder %s16, 1
    %p53 = por %p51, %p52
    %p55 = scmp.ne.s32.totalorder %s38, %s54
    %p56 = scmp.eq.s32.totalorder %s16, 0
    %p57 = por %p55, %p56
    %s58 = ssub.s32 %s17, %s29
    %p59 = scmp.eq.s32.totalorder %s58, 0
    %s61 = sadd.s32 %s60, 1
    %s62 = scalar_select %p59, %s60, %s61
    %p65 = pneg %p59
    %p66 = scmp.eq.s32.totalorder %s10, 1
    %p67 = por %p65, %p66
    %p68 = scmp.ne.s32.totalorder %s60, %s63
    %p69 = scmp.eq.s32.totalorder %s10, 0
    %p70 = por %p68, %p69
    %p71 = scmp.ne.s32.totalorder %s60, %s63
    %p72 = scmp.eq.s32.totalorder %s15, 1
    %p73 = por %p71, %p72
    %p74 = scmp.ne.s32.totalorder %s63, %s64
    %p75 = scmp.eq.s32.totalorder %s15, 0
    %p76 = por %p74, %p75
    %p77 = scmp.ne.s32.totalorder %s63, %s64
    %p78 = scmp.eq.s32.totalorder %s16, 1
    %p79 = por %p77, %p78
    %p81 = scmp.ne.s32.totalorder %s64, %s80
    %p82 = scmp.eq.s32.totalorder %s16, 0
    %p83 = por %p81, %p82
    %s84 = ssub.s32 %s17, %s29
    %p85 = scmp.eq.s32.totalorder %s84, 0
    %s87 = sadd.s32 %s86, 1
    %s88 = scalar_select %p85, %s86, %s87
    %p91 = pneg %p85
    %p92 = scmp.eq.s32.totalorder %s10, 1
    %p93 = por %p91, %p92
    %p94 = scmp.ne.s32.totalorder %s86, %s89
    %p95 = scmp.eq.s32.totalorder %s10, 0
    %p96 = por %p94, %p95
    %p97 = scmp.ne.s32.totalorder %s86, %s89
    %p98 = scmp.eq.s32.totalorder %s15, 1
    %p99 = por %p97, %p98
    %p100 = scmp.ne.s32.totalorder %s89, %s90
    %p101 = scmp.eq.s32.totalorder %s15, 0
    %p102 = por %p100, %p101
    %p103 = scmp.ne.s32.totalorder %s89, %s90
    %p104 = scmp.eq.s32.totalorder %s16, 1
    %p105 = por %p103, %p104
    %p107 = scmp.ne.s32.totalorder %s90, %s106
    %p108 = scmp.eq.s32.totalorder %s16, 0
    %p109 = por %p107, %p108
    %s110 = ssub.s32 %s17, %s29
    %p111 = scmp.eq.s32.totalorder %s110, 0
    %s113 = sadd.s32 %s112, 1
    %s114 = scalar_select %p111, %s112, %s113
    %p117 = pneg %p111
    %p118 = scmp.eq.s32.totalorder %s10, 1
    %p119 = por %p117, %p118
    %p120 = scmp.ne.s32.totalorder %s112, %s115
    %p121 = scmp.eq.s32.totalorder %s10, 0
    %p122 = por %p120, %p121
    %p123 = scmp.ne.s32.totalorder %s112, %s115
    %p124 = scmp.eq.s32.totalorder %s15, 1
    %p125 = por %p123, %p124
    %p126 = scmp.ne.s32.totalorder %s115, %s116
    %p127 = scmp.eq.s32.totalorder %s15, 0
    %p128 = por %p126, %p127
    %p129 = scmp.ne.s32.totalorder %s115, %s116
    %p130 = scmp.eq.s32.totalorder %s16, 1
    %p131 = por %p129, %p130
    %p133 = scmp.ne.s32.totalorder %s116, %s132
    %p134 = scmp.eq.s32.totalorder %s16, 0
    %p135 = por %p133, %p134
    %s136 = ssub.s32 %s17, %s29
    %s137 = ssub.s32 %s18, %s25
    %s138 = sor.u32 %s136, %s137
    %p139 = scmp.eq.s32.totalorder %s138, 0
    %s141 = sadd.s32 %s140, 1
    %s142 = scalar_select %p139, %s140, %s141
    %p145 = pneg %p139
    %p146 = scmp.eq.s32.totalorder %s10, 1
    %p147 = por %p145, %p146
    %p148 = scmp.ne.s32.totalorder %s140, %s143
    %p149 = scmp.eq.s32.totalorder %s10, 0
    %p150 = por %p148, %p149
    %p151 = scmp.ne.s32.totalorder %s140, %s143
    %p152 = scmp.eq.s32.totalorder %s15, 1
    %p153 = por %p151, %p152
    %p154 = scmp.ne.s32.totalorder %s143, %s144
    %p155 = scmp.eq.s32.totalorder %s15, 0
    %p156 = por %p154, %p155
    %p157 = scmp.ne.s32.totalorder %s143, %s144
    %p158 = scmp.eq.s32.totalorder %s16, 1
    %p159 = por %p157, %p158
    %p161 = scmp.ne.s32.totalorder %s144, %s160
    %p162 = scmp.eq.s32.totalorder %s16, 0
    %p163 = por %p161, %p162
    %p164 = scmp.le.s32.totalorder 1, %s10
    %p165 = scmp.lt.s32.totalorder %s10, 3
    %p166 = pnand %p164, %p165
    %p167 = pneg %p166
    // Predicated region
    $region9: #{_lambda_.55} parent=5 // pred_check
      _
    $region10: #{_lambda_.55} parent=5 // pred_check_branch
      %169 = sbr.rel (%p166) target = $region12
    $region11: #{_lambda_.55} parent=5 // pred_region
      %s170 = ssub.s32 %s10, 1
    $region12: #{_lambda_.55} parent=5 // pred_fallthru
      _
    %p171 = scmp.lt.s32.totalorder %s10, 2
    // Predicated region
    $region13: #{_lambda_.55} parent=5 // pred_check
      %p172 = pneg %p171
    $region14: #{_lambda_.55} parent=5 // pred_check_branch
      %174 = sbr.rel (%p172) target = $region16
    $region15: #{_lambda_.55} parent=5 // pred_region
      // Predicated region
      $region17: #{_lambda_.55} parent=15 // pred_check
        %p175 = pneg %p44
      $region18: #{_lambda_.55} parent=15 // pred_check_branch
        %177 = sbr.rel (%p175) target = $region20
      $region19: #{_lambda_.55} parent=15 // pred_region
        %p178 = scmp.lt.s32.totalorder %s17, 1
        %s179 = scalar_select %p178, %s17, 1
        %p180 = scmp.lt.s32.totalorder %s18, 0
        %s181 = scalar_select %p180, %s18, 0
        %s182 = smul.addr %s179, 4
        %s183 = sadd.s32 %s181, %s182
        %s184 = smul.addr %s183, 8
        %s185 = scalar_lea.vmem %s0, %s184
      $region20: #{_lambda_.55} parent=15 // pred_fallthru
        _
      // Predicated region
      $region21: #{_lambda_.55} parent=15 // pred_check
        %p186 = pneg %p70
      $region22: #{_lambda_.55} parent=15 // pred_check_branch
        %188 = sbr.rel (%p186) target = $region24
      $region23: #{_lambda_.55} parent=15 // pred_region
        %p189 = scmp.lt.s32.totalorder %s17, 1
        %s190 = scalar_select %p189, %s17, 1
        %s191 = smul.addr %s190, 4
        %s192 = smul.addr %s191, 8
        %s193 = scalar_lea.vmem %s1, %s192
      $region24: #{_lambda_.55} parent=15 // pred_fallthru
        _
      // Predicated region
      $region25: #{_lambda_.55} parent=15 // pred_check
        %p194 = pneg %p96
      $region26: #{_lambda_.55} parent=15 // pred_check_branch
        %196 = sbr.rel (%p194) target = $region28
      $region27: #{_lambda_.55} parent=15 // pred_region
        %p197 = scmp.lt.s32.totalorder %s17, 1
        %s198 = scalar_select %p197, %s17, 1
        %s199 = smul.addr %s198, 4
        %s200 = smul.addr %s199, 8
        %s201 = scalar_lea.vmem %s2, %s200
      $region28: #{_lambda_.55} parent=15 // pred_fallthru
        _
      // Predicated region
      $region29: #{_lambda_.55} parent=15 // pred_check
        %p202 = pneg %p122
      $region30: #{_lambda_.55} parent=15 // pred_check_branch
        %204 = sbr.rel (%p202) target = $region32
      $region31: #{_lambda_.55} parent=15 // pred_region
        %p205 = scmp.lt.s32.totalorder %s17, 1
        %s206 = scalar_select %p205, %s17, 1
        %s207 = scalar_lea.vmem %s3, %s206
      $region32: #{_lambda_.55} parent=15 // pred_fallthru
        _
    $region16: #{_lambda_.55} parent=5 // pred_fallthru
      _
    %p208 = scmp.le.s32.totalorder 1, %s10
    %p209 = scmp.lt.s32.totalorder %s10, 3
    %p210 = pnand %p208, %p209
    %p211 = pneg %p210
    // Predicated region
    $region33: #{_lambda_.55} parent=5 // pred_check
      _
    $region34: #{_lambda_.55} parent=5 // pred_check_branch
      %213 = sbr.rel (%p210) target = $region36
    $region35: #{_lambda_.55} parent=5 // pred_region
      %s214 = ssub.s32 %s10, 1
      %p215 = scmp.lt.s32.totalorder %s19, 1
      %s216 = scalar_select %p215, %s19, 1
      %p217 = scmp.lt.s32.totalorder %s20, 0
      %s218 = scalar_select %p217, %s20, 0
      %s219 = smul.addr %s216, 4
      %s220 = sadd.s32 %s218, %s219
      %s221 = smul.addr %s220, 8
      %s222 = scalar_lea.vmem %s0, %s221
      %p223 = pneg %p50
      %p224 = pneg %p47
      %p225 = scmp.lt.s32.totalorder %s19, 1
      %s226 = scalar_select %p225, %s19, 1
      %s227 = smul.addr %s226, 4
      %s228 = smul.addr %s227, 8
      %s229 = scalar_lea.vmem %s1, %s228
      %p230 = pneg %p76
      %p231 = pneg %p73
      %p232 = scmp.lt.s32.totalorder %s19, 1
      %s233 = scalar_select %p232, %s19, 1
      %s234 = smul.addr %s233, 4
      %s235 = smul.addr %s234, 8
      %s236 = scalar_lea.vmem %s2, %s235
      %p237 = pneg %p102
      %p238 = pneg %p99
      %p239 = scmp.lt.s32.totalorder %s19, 1
      %s240 = scalar_select %p239, %s19, 1
      %s241 = scalar_lea.vmem %s3, %s240
      %p242 = pneg %p128
      %p243 = pneg %p125
      %p244 = pneg %p156
      %p245 = pneg %p153
      %p246 = scmp.lt.s32.totalorder %s19, 1
      %s247 = scalar_select %p246, %s19, 1
      %p248 = scmp.lt.s32.totalorder %s20, 0
      %s249 = scalar_select %p248, %s20, 0
      %s250 = sadd.s32 %s249, %s247
      %s251 = smul.addr %s250, 8
      %s252 = scalar_lea.vmem %s4, %s251
      %p253 = scmp.lt.s32.totalorder %s19, 1
      %s254 = scalar_select %p253, %s19, 1
      %p255 = scmp.lt.s32.totalorder %s20, 0
      %s256 = scalar_select %p255, %s20, 0
      %s257 = smul.addr %s254, 4
      %s258 = sadd.s32 %s256, %s257
      %s259 = smul.addr %s258, 8
      %s260 = scalar_lea.vmem %s0, %s259
      %p261 = scmp.lt.s32.totalorder %s19, 1
      %s262 = scalar_select %p261, %s19, 1
      %s263 = smul.addr %s262, 4
      %s264 = smul.addr %s263, 8
      %s265 = scalar_lea.vmem %s1, %s264
      %p266 = scmp.lt.s32.totalorder %s19, 1
      %s267 = scalar_select %p266, %s19, 1
      %s268 = smul.addr %s267, 4
      %s269 = smul.addr %s268, 8
      %s270 = scalar_lea.vmem %s2, %s269
      %p271 = scmp.lt.s32.totalorder %s19, 1
      %s272 = scalar_select %p271, %s19, 1
      %s273 = scalar_lea.vmem %s3, %s272
      %p274 = scmp.lt.s32.totalorder %s19, 1
      %s275 = scalar_select %p274, %s19, 1
      %p276 = scmp.lt.s32.totalorder %s20, 0
      %s277 = scalar_select %p276, %s20, 0
      %s278 = sadd.s32 %s277, %s275
      %s279 = smul.addr %s278, 8
      %s280 = scalar_lea.vmem %s4, %s279
      %v281 = vld [vmem:[%s260] sm:$0xff]
      %v282 = vld [vmem:[%s260 + $0x8] sm:$0xff]
      %v283 = vld [vmem:[%s260 + $0x10] sm:$0xff]
      %v284 = vld [vmem:[%s260 + $0x18] sm:$0xff]
      %v285 = vld [vmem:[%s265] sm:$0xff]
      %v286 = vld [vmem:[%s265 + $0x8] sm:$0xff]
      %v287 = vld [vmem:[%s265 + $0x10] sm:$0xff]
      %v288 = vld [vmem:[%s265 + $0x18] sm:$0xff]
      %vm289 = vcmask 97280
      %v291 = vsel %vm289, %v281, 0
      %v294 = vsel %vm289, %v285, 0
      %296 = vmatpush.xpose.msra.mxu0 0.0
      %297 = vmatpush.xpose.msra.mxu0 0.0
      %298 = vmatpush.xpose.msra.mxu0 0.0
      %299 = vmatpush.xpose.msra.mxu0 0.0
      %300 = vmatpush.xpose.msra.mxu0 0.0
      %301 = vmatpush.xpose.msra.mxu0 0.0
      %302 = vmatpush.xpose.msra.mxu0 0.0
      %303 = vmatpush.xpose.msra.mxu0 0.0
      %304 = vmatpush.xpose.msra.mxu0 0.0
      %305 = vmatpush.xpose.msra.mxu0 0.0
      %306 = vmatpush.xpose.msra.mxu0 0.0
      %307 = vmatpush.xpose.msra.mxu0 0.0
      %308 = vmatpush.xpose.msra.mxu0 0.0
      %309 = vmatpush.xpose.msra.mxu0 0.0
      %310 = vmatpush.xpose.msra.mxu0 0.0
      %311 = vmatpush.xpose.msra.mxu0 %v294
      %312 = vmatmul.f32.gmra.mxu0 %v291
      %v313 = vpop.f32.mrf.mxu0
      %v314 = vadd.f32 0.0, %v313
      %315 = vdwg.mxu0
      %v317 = vsel %vm289, %v282, 0
      %v320 = vsel %vm289, %v286, 0
      %322 = vmatpush.xpose.msra.mxu0 0.0
      %323 = vmatpush.xpose.msra.mxu0 0.0
      %324 = vmatpush.xpose.msra.mxu0 0.0
      %325 = vmatpush.xpose.msra.mxu0 0.0
      %326 = vmatpush.xpose.msra.mxu0 0.0
      %327 = vmatpush.xpose.msra.mxu0 0.0
      %328 = vmatpush.xpose.msra.mxu0 0.0
      %329 = vmatpush.xpose.msra.mxu0 0.0
      %330 = vmatpush.xpose.msra.mxu0 0.0
      %331 = vmatpush.xpose.msra.mxu0 0.0
      %332 = vmatpush.xpose.msra.mxu0 0.0
      %333 = vmatpush.xpose.msra.mxu0 0.0
      %334 = vmatpush.xpose.msra.mxu0 0.0
      %335 = vmatpush.xpose.msra.mxu0 0.0
      %336 = vmatpush.xpose.msra.mxu0 0.0
      %337 = vmatpush.xpose.msra.mxu0 %v320
      %338 = vmatmul.f32.gmra.mxu0 %v317
      %v339 = vpop.f32.mrf.mxu0
      %v340 = vadd.f32 0.0, %v339
      %341 = vdwg.mxu0
      %v343 = vsel %vm289, %v283, 0
      %v346 = vsel %vm289, %v287, 0
      %348 = vmatpush.xpose.msra.mxu0 0.0
      %349 = vmatpush.xpose.msra.mxu0 0.0
      %350 = vmatpush.xpose.msra.mxu0 0.0
      %351 = vmatpush.xpose.msra.mxu0 0.0
      %352 = vmatpush.xpose.msra.mxu0 0.0
      %353 = vmatpush.xpose.msra.mxu0 0.0
      %354 = vmatpush.xpose.msra.mxu0 0.0
      %355 = vmatpush.xpose.msra.mxu0 0.0
      %356 = vmatpush.xpose.msra.mxu0 0.0
      %357 = vmatpush.xpose.msra.mxu0 0.0
      %358 = vmatpush.xpose.msra.mxu0 0.0
      %359 = vmatpush.xpose.msra.mxu0 0.0
      %360 = vmatpush.xpose.msra.mxu0 0.0
      %361 = vmatpush.xpose.msra.mxu0 0.0
      %362 = vmatpush.xpose.msra.mxu0 0.0
      %363 = vmatpush.xpose.msra.mxu0 %v346
      %364 = vmatmul.f32.gmra.mxu0 %v343
      %v365 = vpop.f32.mrf.mxu0
      %v366 = vadd.f32 0.0, %v365
      %367 = vdwg.mxu0
      %v369 = vsel %vm289, %v284, 0
      %v372 = vsel %vm289, %v288, 0
      %374 = vmatpush.xpose.msra.mxu0 0.0
      %375 = vmatpush.xpose.msra.mxu0 0.0
      %376 = vmatpush.xpose.msra.mxu0 0.0
      %377 = vmatpush.xpose.msra.mxu0 0.0
      %378 = vmatpush.xpose.msra.mxu0 0.0
      %379 = vmatpush.xpose.msra.mxu0 0.0
      %380 = vmatpush.xpose.msra.mxu0 0.0
      %381 = vmatpush.xpose.msra.mxu0 0.0
      %382 = vmatpush.xpose.msra.mxu0 0.0
      %383 = vmatpush.xpose.msra.mxu0 0.0
      %384 = vmatpush.xpose.msra.mxu0 0.0
      %385 = vmatpush.xpose.msra.mxu0 0.0
      %386 = vmatpush.xpose.msra.mxu0 0.0
      %387 = vmatpush.xpose.msra.mxu0 0.0
      %388 = vmatpush.xpose.msra.mxu0 0.0
      %389 = vmatpush.xpose.msra.mxu0 %v372
      %390 = vmatmul.f32.gmra.mxu0 %v369
      %v391 = vpop.f32.mrf.mxu0
      %v392 = vadd.f32 0.0, %v391
      %393 = vdwg.mxu0
      %v394 = vmul.f32 %v314, 0.28867513
      %v395 = vmul.f32 %v340, 0.28867513
      %v396 = vmul.f32 %v366, 0.28867513
      %v397 = vmul.f32 %v392, 0.28867513
      %v398 = vld [vmem:[%s273] sm:$0x1]
      %v400 = vperm.slane %v398, 0
      %v402 = vadd.f32 %v394, %v400
      %v403 = vadd.f32 %v395, %v400
      %v404 = vadd.f32 %v396, %v400
      %v405 = vadd.f32 %v397, %v400
      %vm406 = vcmask 64512
      %v407 = vsel %vm406, %v402, -inf
      %408 = vmax.xlane.f32.xlu0 %v407
      %v409 = vpop.xlane.xlu0 %408
      %v410 = vsel %vm406, %v403, -inf
      %411 = vmax.xlane.f32.xlu0 %v410
      %v412 = vpop.xlane.xlu0 %411
      %v413 = vsel %vm406, %v404, -inf
      %414 = vmax.xlane.f32.xlu0 %v413
      %v415 = vpop.xlane.xlu0 %414
      %v416 = vsel %vm406, %v405, -inf
      %417 = vmax.xlane.f32.xlu0 %v416
      %v418 = vpop.xlane.xlu0 %417
      %v419 = vsub.f32 %v402, %v409
      %v420 = vsub.f32 %v403, %v412
      %v421 = vsub.f32 %v404, %v415
      %v422 = vsub.f32 %v405, %v418
      %v423 = vmul.f32 %v419, 1.442695
      %v424 = vpow.pop %v423
      %v425 = vmul.f32 %v420, 1.442695
      %v426 = vpow.pop %v425
      %v427 = vmul.f32 %v421, 1.442695
      %v428 = vpow.pop %v427
      %v429 = vmul.f32 %v422, 1.442695
      %v430 = vpow.pop %v429
      %v431 = vsel %vm406, %v424, 0.0
      %432 = vadd.xlane.f32.xlu0 %v431
      %v433 = vpop.xlane.xlu0 %432
      %v434 = vsel %vm406, %v426, 0.0
      %435 = vadd.xlane.f32.xlu0 %v434
      %v436 = vpop.xlane.xlu0 %435
      %v437 = vsel %vm406, %v428, 0.0
      %438 = vadd.xlane.f32.xlu0 %v437
      %v439 = vpop.xlane.xlu0 %438
      %v440 = vsel %vm406, %v430, 0.0
      %441 = vadd.xlane.f32.xlu0 %v440
      %v442 = vpop.xlane.xlu0 %441
      %v443 = vrcp.pop %v433
      %v444 = vrcp.pop %v436
      %v445 = vrcp.pop %v439
      %v446 = vrcp.pop %v442
      %v447 = vmul.f32 %v424, %v443
      %v448 = vmul.f32 %v426, %v444
      %v449 = vmul.f32 %v428, %v445
      %v450 = vmul.f32 %v430, %v446
      %v451 = vld [vmem:[%s270] sm:$0xff]
      %v452 = vld [vmem:[%s270 + $0x8] sm:$0xff]
      %v453 = vld [vmem:[%s270 + $0x10] sm:$0xff]
      %v454 = vld [vmem:[%s270 + $0x18] sm:$0xff]
      %v456 = vsel %vm406, %v447, 0
      %458 = vmatpush.msra.mxu0 0.0
      %459 = vmatpush.msra.mxu0 0.0
      %460 = vmatpush.msra.mxu0 0.0
      %461 = vmatpush.msra.mxu0 0.0
      %462 = vmatpush.msra.mxu0 0.0
      %463 = vmatpush.msra.mxu0 0.0
      %464 = vmatpush.msra.mxu0 0.0
      %465 = vmatpush.msra.mxu0 0.0
      %466 = vmatpush.msra.mxu0 0.0
      %467 = vmatpush.msra.mxu0 0.0
      %468 = vmatpush.msra.mxu0 0.0
      %469 = vmatpush.msra.mxu0 0.0
      %470 = vmatpush.msra.mxu0 0.0
      %471 = vmatpush.msra.mxu0 0.0
      %472 = vmatpush.msra.mxu0 0.0
      %473 = vmatpush.msra.mxu0 %v451
      %474 = vmatmul.f32.gmra.mxu0 %v456
      %v475 = vpop.f32.mrf.mxu0
      %v476 = vadd.f32 0.0, %v475
      %477 = vdwg.mxu0
      %v479 = vsel %vm406, %v448, 0
      %481 = vmatpush.msra.mxu0 0.0
      %482 = vmatpush.msra.mxu0 0.0
      %483 = vmatpush.msra.mxu0 0.0
      %484 = vmatpush.msra.mxu0 0.0
      %485 = vmatpush.msra.mxu0 0.0
      %486 = vmatpush.msra.mxu0 0.0
      %487 = vmatpush.msra.mxu0 0.0
      %488 = vmatpush.msra.mxu0 0.0
      %489 = vmatpush.msra.mxu0 0.0
      %490 = vmatpush.msra.mxu0 0.0
      %491 = vmatpush.msra.mxu0 0.0
      %492 = vmatpush.msra.mxu0 0.0
      %493 = vmatpush.msra.mxu0 0.0
      %494 = vmatpush.msra.mxu0 0.0
      %495 = vmatpush.msra.mxu0 0.0
      %496 = vmatpush.msra.mxu0 %v452
      %497 = vmatmul.f32.gmra.mxu0 %v479
      %v498 = vpop.f32.mrf.mxu0
      %v499 = vadd.f32 0.0, %v498
      %500 = vdwg.mxu0
      %v502 = vsel %vm406, %v449, 0
      %504 = vmatpush.msra.mxu0 0.0
      %505 = vmatpush.msra.mxu0 0.0
      %506 = vmatpush.msra.mxu0 0.0
      %507 = vmatpush.msra.mxu0 0.0
      %508 = vmatpush.msra.mxu0 0.0
      %509 = vmatpush.msra.mxu0 0.0
      %510 = vmatpush.msra.mxu0 0.0
      %511 = vmatpush.msra.mxu0 0.0
      %512 = vmatpush.msra.mxu0 0.0
      %513 = vmatpush.msra.mxu0 0.0
      %514 = vmatpush.msra.mxu0 0.0
      %515 = vmatpush.msra.mxu0 0.0
      %516 = vmatpush.msra.mxu0 0.0
      %517 = vmatpush.msra.mxu0 0.0
      %518 = vmatpush.msra.mxu0 0.0
      %519 = vmatpush.msra.mxu0 %v453
      %520 = vmatmul.f32.gmra.mxu0 %v502
      %v521 = vpop.f32.mrf.mxu0
      %v522 = vadd.f32 0.0, %v521
      %523 = vdwg.mxu0
      %v525 = vsel %vm406, %v450, 0
      %527 = vmatpush.msra.mxu0 0.0
      %528 = vmatpush.msra.mxu0 0.0
      %529 = vmatpush.msra.mxu0 0.0
      %530 = vmatpush.msra.mxu0 0.0
      %531 = vmatpush.msra.mxu0 0.0
      %532 = vmatpush.msra.mxu0 0.0
      %533 = vmatpush.msra.mxu0 0.0
      %534 = vmatpush.msra.mxu0 0.0
      %535 = vmatpush.msra.mxu0 0.0
      %536 = vmatpush.msra.mxu0 0.0
      %537 = vmatpush.msra.mxu0 0.0
      %538 = vmatpush.msra.mxu0 0.0
      %539 = vmatpush.msra.mxu0 0.0
      %540 = vmatpush.msra.mxu0 0.0
      %541 = vmatpush.msra.mxu0 0.0
      %542 = vmatpush.msra.mxu0 %v454
      %543 = vmatmul.f32.gmra.mxu0 %v525
      %v544 = vpop.f32.mrf.mxu0
      %v545 = vadd.f32 0.0, %v544
      %546 = vdwg.mxu0
      %548 = vrot.lane.b32.xlu0 %v499, 12
      %v549 = vpop.permute.xlu0 %548
      %552 = vrot.lane.b32.xlu0 %v522, 24
      %v553 = vpop.permute.xlu0 %552
      %556 = vrot.lane.b32.xlu0 %v545, 36
      %v557 = vpop.permute.xlu0 %556
      %v559 = vsel %vm289, %v476, %v549
      %vm560 = vcmask 195584
      %v561 = vsel %vm560, %v559, %v553
      %vm562 = vcmask 293888
      %v563 = vsel %vm562, %v561, %v557
      %vm564 = vcmask 392192
      %565 = vst.msk [vmem:[%s280] sm:$0xff] %vm564, %v563
      %p566 = scmp.lt.s32.totalorder %s19, 1
      %s567 = scalar_select %p566, %s19, 1
      %p568 = scmp.lt.s32.totalorder %s20, 0
      %s569 = scalar_select %p568, %s20, 0
      %s570 = sadd.s32 %s569, %s567
      %s571 = smul.addr %s570, 8
      %s572 = scalar_lea.vmem %s4, %s571
      // Predicated region
      $region37: #{_lambda_.55} parent=35 // pred_check
        %p573 = pneg %p153
      $region38: #{_lambda_.55} parent=35 // pred_check_branch
        %575 = sbr.rel (%p573) target = $region40
      $region39: #{_lambda_.55} parent=35 // pred_region
        _
      $region40: #{_lambda_.55} parent=35 // pred_fallthru
        _
    $region36: #{_lambda_.55} parent=5 // pred_fallthru
      _
    %p576 = scmp.le.s32.totalorder 2, %s10
    // Predicated region
    $region41: #{_lambda_.55} parent=5 // pred_check
      %p577 = pneg %p576
    $region42: #{_lambda_.55} parent=5 // pred_check_branch
      %579 = sbr.rel (%p577) target = $region44
    $region43: #{_lambda_.55} parent=5 // pred_region
      %s580 = ssub.s32 %s10, 2
      // Predicated region
      $region45: #{_lambda_.55} parent=43 // pred_check
        %p581 = pneg %p159
      $region46: #{_lambda_.55} parent=43 // pred_check_branch
        %583 = sbr.rel (%p581) target = $region48
      $region47: #{_lambda_.55} parent=43 // pred_region
        %p584 = scmp.lt.s32.totalorder %s21, 1
        %s585 = scalar_select %p584, %s21, 1
        %p586 = scmp.lt.s32.totalorder %s22, 0
        %s587 = scalar_select %p586, %s22, 0
        %s588 = sadd.s32 %s587, %s585
        %s589 = smul.addr %s588, 8
        %s590 = scalar_lea.vmem %s4, %s589
      $region48: #{_lambda_.55} parent=43 // pred_fallthru
        _
    $region44: #{_lambda_.55} parent=5 // pred_fallthru
      _
  $region6: #{_lambda_.55} parent=0 // loop_footer
    %s14 = sadd.s32 1, %s10
  $region7: #{_lambda_.55} parent=0 // loop_footer_branch
    %9 = sbr.rel target = $region3
  $region8: #{_lambda_.55} parent=0 // loop_exit
    _

// kernel: _lambda_.57
$region0: #{_lambda_.57}
  #allocation0 [shape = 'u32[]', space=smem, size = 0x4, offset = 0x4, fixed_abs, tag = 'smem constant byte address 0x4 - core index']
  #allocation1 [shape = 'u32[72,128]{1,0:T(1,128)}', space=vmem, size = 0x9000, scoped, tag = 'internal scratch']
  %s0 = inlined_call_operand.vmem [shape: f32[16,48], index: 0, kind: input, shape index: {}]
  %s1 = inlined_call_operand.vmem [shape: f32[48,48], index: 1, kind: input, shape index: {}]
  %s2 = inlined_call_operand.vmem [shape: f32[1,48], index: 2, kind: input, shape index: {}]
  %s3 = inlined_call_operand.vmem [shape: f32[48,48], index: 3, kind: input, shape index: {}]
  %s4 = inlined_call_operand.vmem [shape: f32[1,48], index: 4, kind: input, shape index: {}]
  %s5 = inlined_call_operand.vmem [shape: f32[1,48], index: 5, kind: input, shape index: {}]
  %s6 = inlined_call_operand.vmem [shape: f32[1,48], index: 6, kind: input, shape index: {}]
  %s7 = inlined_call_operand.vmem [shape: f32[16,48], index: 7, kind: output, shape index: {}]
  %s8 = sld [smem:[#allocation0]]
  $region38: #{_lambda_.57} parent=0
    _
  %s10 = ssub.s32 1, %s8
  %s11 = scalar_select 0, %s10, %s8
  // Predicated region
  $region2: #{_lambda_.57} parent=0 // pred_check
    _
  $region3: #{_lambda_.57} parent=0 // pred_check_branch
    %13 = sbr.rel (0) target = $region5
  $region4: #{_lambda_.57} parent=0 // pred_region
    _
  $region5: #{_lambda_.57} parent=0 // pred_fallthru
    _
  // Predicated region
  $region6: #{_lambda_.57} parent=0 // pred_check
    _
  $region7: #{_lambda_.57} parent=0 // pred_check_branch
    %15 = sbr.rel (0) target = $region9
  $region8: #{_lambda_.57} parent=0 // pred_region
    _
  $region9: #{_lambda_.57} parent=0 // pred_fallthru
    _
  // Predicated region
  $region10: #{_lambda_.57} parent=0 // pred_check
    _
  $region11: #{_lambda_.57} parent=0 // pred_check_branch
    %17 = sbr.rel (0) target = $region13
  $region12: #{_lambda_.57} parent=0 // pred_region
    _
  $region13: #{_lambda_.57} parent=0 // pred_fallthru
    _
  // Predicated region
  $region14: #{_lambda_.57} parent=0 // pred_check
    _
  $region15: #{_lambda_.57} parent=0 // pred_check_branch
    %19 = sbr.rel (0) target = $region17
  $region16: #{_lambda_.57} parent=0 // pred_region
    _
  $region17: #{_lambda_.57} parent=0 // pred_fallthru
    _
  // Predicated region
  $region18: #{_lambda_.57} parent=0 // pred_check
    _
  $region19: #{_lambda_.57} parent=0 // pred_check_branch
    %21 = sbr.rel (0) target = $region21
  $region20: #{_lambda_.57} parent=0 // pred_region
    _
  $region21: #{_lambda_.57} parent=0 // pred_fallthru
    _
  // Predicated region
  $region22: #{_lambda_.57} parent=0 // pred_check
    _
  $region23: #{_lambda_.57} parent=0 // pred_check_branch
    %23 = sbr.rel (0) target = $region25
  $region24: #{_lambda_.57} parent=0 // pred_region
    _
  $region25: #{_lambda_.57} parent=0 // pred_fallthru
    _
  // Predicated region
  $region26: #{_lambda_.57} parent=0 // pred_check
    _
  $region27: #{_lambda_.57} parent=0 // pred_check_branch
    %25 = sbr.rel (0) target = $region29
  $region28: #{_lambda_.57} parent=0 // pred_region
    _
  $region29: #{_lambda_.57} parent=0 // pred_fallthru
    _
  %v26 = vld [vmem:[%s0] sm:$0xff]
  %v27 = vld [vmem:[%s0 + $0x8] sm:$0xff]
  %v28 = vld [vmem:[%s1] sm:$0xff]
  %v29 = vld [vmem:[%s1 + $0x8] sm:$0xff]
  %v30 = vld [vmem:[%s1 + $0x10] sm:$0xff]
  %v31 = vld [vmem:[%s1 + $0x18] sm:$0xff]
  %v32 = vld [vmem:[%s1 + $0x20] sm:$0xff]
  %v33 = vld [vmem:[%s1 + $0x28] sm:$0xff]
  %v34 = vld [vmem:[%s2] sm:$0x1]
  %v36 = vperm.slane %v34, 0
  %vm38 = vcmask 392192
  %v40 = vsel %vm38, %v26, 0
  %v43 = vsel %vm38, %v27, 0
  %45 = vmatpush.msra.mxu0 0.0
  %46 = vmatpush.msra.mxu0 0.0
  %47 = vmatpush.msra.mxu0 0.0
  %48 = vmatpush.msra.mxu0 0.0
  %49 = vmatpush.msra.mxu0 0.0
  %50 = vmatpush.msra.mxu0 0.0
  %51 = vmatpush.msra.mxu0 0.0
  %52 = vmatpush.msra.mxu0 0.0
  %53 = vmatpush.msra.mxu0 0.0
  %54 = vmatpush.msra.mxu0 0.0
  %55 = vmatpush.msra.mxu0 %v33
  %56 = vmatpush.msra.mxu0 %v32
  %57 = vmatpush.msra.mxu0 %v31
  %58 = vmatpush.msra.mxu0 %v30
  %59 = vmatpush.msra.mxu0 %v29
  %60 = vmatpush.msra.mxu0 %v28
  %61 = vmatmul.f32.gmra.mxu0 %v40
  %v62 = vpop.f32.mrf.mxu0
  %v63 = vadd.f32 %v36, %v62
  %64 = vmatmul.f32.gmra.mxu0 %v43
  %v65 = vpop.f32.mrf.mxu0
  %v66 = vadd.f32 %v36, %v65
  %67 = vdwg.mxu0
  %v68 = vmax.f32 %v63, 0.0
  %v69 = vmax.f32 %v66, 0.0
  %v70 = vld [vmem:[%s3] sm:$0xff]
  %v71 = vld [vmem:[%s3 + $0x8] sm:$0xff]
  %v72 = vld [vmem:[%s3 + $0x10] sm:$0xff]
  %v73 = vld [vmem:[%s3 + $0x18] sm:$0xff]
  %v74 = vld [vmem:[%s3 + $0x20] sm:$0xff]
  %v75 = vld [vmem:[%s3 + $0x28] sm:$0xff]
  %v77 = vsel %vm38, %v68, 0
  %v80 = vsel %vm38, %v69, 0
  %82 = vmatpush.msra.mxu0 0.0
  %83 = vmatpush.msra.mxu0 0.0
  %84 = vmatpush.msra.mxu0 0.0
  %85 = vmatpush.msra.mxu0 0.0
  %86 = vmatpush.msra.mxu0 0.0
  %87 = vmatpush.msra.mxu0 0.0
  %88 = vmatpush.msra.mxu0 0.0
  %89 = vmatpush.msra.mxu0 0.0
  %90 = vmatpush.msra.mxu0 0.0
  %91 = vmatpush.msra.mxu0 0.0
  %92 = vmatpush.msra.mxu0 %v75
  %93 = vmatpush.msra.mxu0 %v74
  %94 = vmatpush.msra.mxu0 %v73
  %95 = vmatpush.msra.mxu0 %v72
  %96 = vmatpush.msra.mxu0 %v71
  %97 = vmatpush.msra.mxu0 %v70
  %98 = vmatmul.f32.gmra.mxu0 %v77
  %v99 = vpop.f32.mrf.mxu0
  %v100 = vadd.f32 0.0, %v99
  %101 = vmatmul.f32.gmra.mxu0 %v80
  %v102 = vpop.f32.mrf.mxu0
  %v103 = vadd.f32 0.0, %v102
  %104 = vdwg.mxu0
  %v105 = vadd.f32 %v26, %v100
  %v106 = vadd.f32 %v27, %v103
  %v107 = vld [vmem:[%s4] sm:$0x1]
  %v109 = vperm.slane %v107, 0
  %v111 = vadd.f32 %v105, %v109
  %v112 = vadd.f32 %v106, %v109
  %v113 = vsel %vm38, %v111, 0.0
  %114 = vadd.xlane.f32.xlu0 %v113
  %v115 = vpop.xlane.xlu0 %114
  %v116 = vsel %vm38, %v112, 0.0
  %117 = vadd.xlane.f32.xlu0 %v116
  %v118 = vpop.xlane.xlu0 %117
  %v119 = vrcp.pop 48.0
  %v120 = vmul.f32 48.0, %v119
  %v121 = vsub.f32 1.0, %v120
  %v122 = vmul.f32 %v119, %v121
  %v123 = vadd.f32 %v119, %v122
  %vm124 = vweird.f32 %v119
  %v125 = vsel %vm124, %v119, %v123
  %v126 = vmul.f32 %v115, %v125
  %v127 = vmul.f32 %v118, %v125
  %v128 = vsub.f32 %v111, %v126
  %v129 = vsub.f32 %v112, %v127
  %v130 = vmul.f32 %v128, %v128
  %v131 = vmul.f32 %v129, %v129
  %v132 = vsel %vm38, %v130, 0.0
  %133 = vadd.xlane.f32.xlu0 %v132
  %v134 = vpop.xlane.xlu0 %133
  %v135 = vsel %vm38, %v131, 0.0
  %136 = vadd.xlane.f32.xlu0 %v135
  %v137 = vpop.xlane.xlu0 %136
  %v138 = vmul.f32 %v134, %v125
  %v139 = vmul.f32 %v137, %v125
  %v140 = vadd.f32 %v138, 1e-05
  %v141 = vadd.f32 %v139, 1e-05
  %v142 = vrsqrt.pop %v140
  %v143 = vmul.f32 %v142, %v140
  %v144 = vmul.f32 %v143, %v142
  %v145 = vmul.f32 0.5, %v144
  %v146 = vsub.f32 1.5, %v145
  %v147 = vmul.f32 %v142, %v146
  %vm148 = vweird.f32 %v140
  %vm149 = vweird.f32 %v142
  %vm150 = vmor %vm148, %vm149
  %v151 = vsel %vm150, %v142, %v147
  %v152 = vrsqrt.pop %v141
  %v153 = vmul.f32 %v152, %v141
  %v154 = vmul.f32 %v153, %v152
  %v155 = vmul.f32 0.5, %v154
  %v156 = vsub.f32 1.5, %v155
  %v157 = vmul.f32 %v152, %v156
  %vm158 = vweird.f32 %v141
  %vm159 = vweird.f32 %v152
  %vm160 = vmor %vm158, %vm159
  %v161 = vsel %vm160, %v152, %v157
  %v162 = vmul.f32 %v128, %v151
  %v163 = vmul.f32 %v129, %v161
  %v164 = vld [vmem:[%s5] sm:$0x1]
  %v166 = vperm.slane %v164, 0
  %v168 = vmul.f32 %v162, %v166
  %v169 = vmul.f32 %v163, %v166
  %v170 = vld [vmem:[%s6] sm:$0x1]
  %v172 = vperm.slane %v170, 0
  %v174 = vadd.f32 %v168, %v172
  %v175 = vadd.f32 %v169, %v172
  %176 = vst.msk [vmem:[%s7] sm:$0xff] %vm38, %v174
  %177 = vst.msk [vmem:[%s7 + $0x8] sm:$0xff] %vm38, %v175
  // Predicated region
  $region30: #{_lambda_.57} parent=0 // pred_check
    _
  $region31: #{_lambda_.57} parent=0 // pred_check_branch
    %179 = sbr.rel (0) target = $region33
  $region32: #{_lambda_.57} parent=0 // pred_region
    _
  $region33: #{_lambda_.57} parent=0 // pred_fallthru
    _
  // Predicated region
  $region34: #{_lambda_.57} parent=0 // pred_check
    _
  $region35: #{_lambda_.57} parent=0 // pred_check_branch
    %181 = sbr.rel (0) target = $region37
  $region36: #{_lambda_.57} parent=0 // pred_region
    _
  $region37: #{_lambda_.57} parent=0 // pred_fallthru
    _

// kernel: _lambda_.62
$region0: #{_lambda_.62}
  #allocation0 [shape = 'u32[]', space=smem, size = 0x4, offset = 0x4, fixed_abs, tag = 'smem constant byte address 0x4 - core index']
  #allocation1 [shape = 'u32[72,128]{1,0:T(1,128)}', space=vmem, size = 0x9000, scoped, tag = 'internal scratch']
  %s0 = inlined_call_operand.vmem [shape: f32[16,48], index: 0, kind: input, shape index: {}]
  %s1 = inlined_call_operand.vmem [shape: f32[48,32], index: 1, kind: input, shape index: {}]
  %s2 = inlined_call_operand.vmem [shape: f32[1,32], index: 2, kind: input, shape index: {}]
  %s3 = inlined_call_operand.vmem [shape: f32[16,32], index: 3, kind: input, shape index: {}]
  %s4 = inlined_call_operand.vmem [shape: f32[16,32], index: 4, kind: output, shape index: {}]
  %s5 = sld [smem:[#allocation0]]
  $region26: #{_lambda_.62} parent=0
    _
  %s7 = ssub.s32 1, %s5
  %s8 = scalar_select 0, %s7, %s5
  // Predicated region
  $region2: #{_lambda_.62} parent=0 // pred_check
    _
  $region3: #{_lambda_.62} parent=0 // pred_check_branch
    %10 = sbr.rel (0) target = $region5
  $region4: #{_lambda_.62} parent=0 // pred_region
    _
  $region5: #{_lambda_.62} parent=0 // pred_fallthru
    _
  // Predicated region
  $region6: #{_lambda_.62} parent=0 // pred_check
    _
  $region7: #{_lambda_.62} parent=0 // pred_check_branch
    %12 = sbr.rel (0) target = $region9
  $region8: #{_lambda_.62} parent=0 // pred_region
    _
  $region9: #{_lambda_.62} parent=0 // pred_fallthru
    _
  // Predicated region
  $region10: #{_lambda_.62} parent=0 // pred_check
    _
  $region11: #{_lambda_.62} parent=0 // pred_check_branch
    %14 = sbr.rel (0) target = $region13
  $region12: #{_lambda_.62} parent=0 // pred_region
    _
  $region13: #{_lambda_.62} parent=0 // pred_fallthru
    _
  // Predicated region
  $region14: #{_lambda_.62} parent=0 // pred_check
    _
  $region15: #{_lambda_.62} parent=0 // pred_check_branch
    %16 = sbr.rel (0) target = $region17
  $region16: #{_lambda_.62} parent=0 // pred_region
    _
  $region17: #{_lambda_.62} parent=0 // pred_fallthru
    _
  %v17 = vld [vmem:[%s0] sm:$0xff]
  %v18 = vld [vmem:[%s0 + $0x8] sm:$0xff]
  %v19 = vld [vmem:[%s1] sm:$0xff]
  %v20 = vld [vmem:[%s1 + $0x8] sm:$0xff]
  %v21 = vld [vmem:[%s1 + $0x10] sm:$0xff]
  %v22 = vld [vmem:[%s1 + $0x18] sm:$0xff]
  %v23 = vld [vmem:[%s1 + $0x20] sm:$0xff]
  %v24 = vld [vmem:[%s1 + $0x28] sm:$0xff]
  %v25 = vld [vmem:[%s2] sm:$0x1]
  %v27 = vperm.slane %v25, 0
  %vm29 = vcmask 392192
  %v31 = vsel %vm29, %v17, 0
  %v34 = vsel %vm29, %v18, 0
  %36 = vmatpush.msra.mxu0 0.0
  %37 = vmatpush.msra.mxu0 0.0
  %38 = vmatpush.msra.mxu0 0.0
  %39 = vmatpush.msra.mxu0 0.0
  %40 = vmatpush.msra.mxu0 0.0
  %41 = vmatpush.msra.mxu0 0.0
  %42 = vmatpush.msra.mxu0 0.0
  %43 = vmatpush.msra.mxu0 0.0
  %44 = vmatpush.msra.mxu0 0.0
  %45 = vmatpush.msra.mxu0 0.0
  %46 = vmatpush.msra.mxu0 %v24
  %47 = vmatpush.msra.mxu0 %v23
  %48 = vmatpush.msra.mxu0 %v22
  %49 = vmatpush.msra.mxu0 %v21
  %50 = vmatpush.msra.mxu0 %v20
  %51 = vmatpush.msra.mxu0 %v19
  %52 = vmatmul.f32.gmra.mxu0 %v31
  %v53 = vpop.f32.mrf.mxu0
  %v54 = vadd.f32 %v27, %v53
  %55 = vmatmul.f32.gmra.mxu0 %v34
  %v56 = vpop.f32.mrf.mxu0
  %v57 = vadd.f32 %v27, %v56
  %58 = vdwg.mxu0
  %v59 = vld [vmem:[%s3] sm:$0xff]
  %v60 = vld [vmem:[%s3 + $0x8] sm:$0xff]
  %v61 = vadd.f32 %v54, %v59
  %v62 = vadd.f32 %v57, %v60
  %vm63 = vcmask 261120
  %64 = vst.msk [vmem:[%s4] sm:$0xff] %vm63, %v61
  %65 = vst.msk [vmem:[%s4 + $0x8] sm:$0xff] %vm63, %v62
  // Predicated region
  $region18: #{_lambda_.62} parent=0 // pred_check
    _
  $region19: #{_lambda_.62} parent=0 // pred_check_branch
    %67 = sbr.rel (0) target = $region21
  $region20: #{_lambda_.62} parent=0 // pred_region
    _
  $region21: #{_lambda_.62} parent=0 // pred_fallthru
    _
  // Predicated region
  $region22: #{_lambda_.62} parent=0 // pred_check
    _
  $region23: #{_lambda_.62} parent=0 // pred_check_branch
    %69 = sbr.rel (0) target = $region25
  $region24: #{_lambda_.62} parent=0 // pred_region
    _
  $region25: #{_lambda_.62} parent=0 // pred_fallthru
    _

// kernel: _lambda_.63
$region0: #{_lambda_.63}
  #allocation0 [shape = 'u32[]', space=smem, size = 0x4, offset = 0x4, fixed_abs, tag = 'smem constant byte address 0x4 - core index']
  #allocation1 [shape = 'u32[72,128]{1,0:T(1,128)}', space=vmem, size = 0x9000, scoped, tag = 'internal scratch']
  %s0 = inlined_call_operand.vmem [shape: f32[16,32], index: 0, kind: input, shape index: {}]
  %s1 = inlined_call_operand.vmem [shape: f32[32,32], index: 1, kind: input, shape index: {}]
  %s2 = inlined_call_operand.vmem [shape: f32[1,32], index: 2, kind: input, shape index: {}]
  %s3 = inlined_call_operand.vmem [shape: f32[16,32], index: 3, kind: output, shape index: {}]
  %s4 = sld [smem:[#allocation0]]
  $region22: #{_lambda_.63} parent=0
    _
  %s6 = ssub.s32 1, %s4
  %s7 = scalar_select 0, %s6, %s4
  // Predicated region
  $region2: #{_lambda_.63} parent=0 // pred_check
    _
  $region3: #{_lambda_.63} parent=0 // pred_check_branch
    %9 = sbr.rel (0) target = $region5
  $region4: #{_lambda_.63} parent=0 // pred_region
    _
  $region5: #{_lambda_.63} parent=0 // pred_fallthru
    _
  // Predicated region
  $region6: #{_lambda_.63} parent=0 // pred_check
    _
  $region7: #{_lambda_.63} parent=0 // pred_check_branch
    %11 = sbr.rel (0) target = $region9
  $region8: #{_lambda_.63} parent=0 // pred_region
    _
  $region9: #{_lambda_.63} parent=0 // pred_fallthru
    _
  // Predicated region
  $region10: #{_lambda_.63} parent=0 // pred_check
    _
  $region11: #{_lambda_.63} parent=0 // pred_check_branch
    %13 = sbr.rel (0) target = $region13
  $region12: #{_lambda_.63} parent=0 // pred_region
    _
  $region13: #{_lambda_.63} parent=0 // pred_fallthru
    _
  %v14 = vld [vmem:[%s0] sm:$0xff]
  %v15 = vld [vmem:[%s0 + $0x8] sm:$0xff]
  %v16 = vld [vmem:[%s1] sm:$0xff]
  %v17 = vld [vmem:[%s1 + $0x8] sm:$0xff]
  %v18 = vld [vmem:[%s1 + $0x10] sm:$0xff]
  %v19 = vld [vmem:[%s1 + $0x18] sm:$0xff]
  %v20 = vld [vmem:[%s2] sm:$0x1]
  %v22 = vperm.slane %v20, 0
  %vm24 = vcmask 261120
  %v26 = vsel %vm24, %v14, 0
  %v29 = vsel %vm24, %v15, 0
  %31 = vmatpush.msra.mxu0 0.0
  %32 = vmatpush.msra.mxu0 0.0
  %33 = vmatpush.msra.mxu0 0.0
  %34 = vmatpush.msra.mxu0 0.0
  %35 = vmatpush.msra.mxu0 0.0
  %36 = vmatpush.msra.mxu0 0.0
  %37 = vmatpush.msra.mxu0 0.0
  %38 = vmatpush.msra.mxu0 0.0
  %39 = vmatpush.msra.mxu0 0.0
  %40 = vmatpush.msra.mxu0 0.0
  %41 = vmatpush.msra.mxu0 0.0
  %42 = vmatpush.msra.mxu0 0.0
  %43 = vmatpush.msra.mxu0 %v19
  %44 = vmatpush.msra.mxu0 %v18
  %45 = vmatpush.msra.mxu0 %v17
  %46 = vmatpush.msra.mxu0 %v16
  %47 = vmatmul.f32.gmra.mxu0 %v26
  %v48 = vpop.f32.mrf.mxu0
  %v49 = vadd.f32 %v22, %v48
  %50 = vmatmul.f32.gmra.mxu0 %v29
  %v51 = vpop.f32.mrf.mxu0
  %v52 = vadd.f32 %v22, %v51
  %53 = vdwg.mxu0
  %v54 = vmax.f32 %v49, 0.0
  %v55 = vmax.f32 %v52, 0.0
  %56 = vst.msk [vmem:[%s3] sm:$0xff] %vm24, %v54
  %57 = vst.msk [vmem:[%s3 + $0x8] sm:$0xff] %vm24, %v55
  // Predicated region
  $region14: #{_lambda_.63} parent=0 // pred_check
    _
  $region15: #{_lambda_.63} parent=0 // pred_check_branch
    %59 = sbr.rel (0) target = $region17
  $region16: #{_lambda_.63} parent=0 // pred_region
    _
  $region17: #{_lambda_.63} parent=0 // pred_fallthru
    _
  // Predicated region
  $region18: #{_lambda_.63} parent=0 // pred_check
    _
  $region19: #{_lambda_.63} parent=0 // pred_check_branch
    %61 = sbr.rel (0) target = $region21
  $region20: #{_lambda_.63} parent=0 // pred_region
    _
  $region21: #{_lambda_.63} parent=0 // pred_fallthru
    _

// kernel: _lambda_.66
$region0: #{_lambda_.66}
  #allocation0 [shape = 'u32[]', space=smem, size = 0x4, offset = 0x4, fixed_abs, tag = 'smem constant byte address 0x4 - core index']
  #allocation1 [shape = 'u32[72,128]{1,0:T(1,128)}', space=vmem, size = 0x9000, scoped, tag = 'internal scratch']
  %s0 = inlined_call_operand.vmem [shape: f32[16,32], index: 0, kind: input, shape index: {}]
  %s1 = inlined_call_operand.vmem [shape: f32[32,6], index: 1, kind: input, shape index: {}]
  %s2 = inlined_call_operand.vmem [shape: f32[1,6], index: 2, kind: input, shape index: {}]
  %s3 = inlined_call_operand.vmem [shape: f32[16,6], index: 3, kind: output, shape index: {}]
  %s4 = sld [smem:[#allocation0]]
  $region22: #{_lambda_.66} parent=0
    _
  %s6 = ssub.s32 1, %s4
  %s7 = scalar_select 0, %s6, %s4
  // Predicated region
  $region2: #{_lambda_.66} parent=0 // pred_check
    _
  $region3: #{_lambda_.66} parent=0 // pred_check_branch
    %9 = sbr.rel (0) target = $region5
  $region4: #{_lambda_.66} parent=0 // pred_region
    _
  $region5: #{_lambda_.66} parent=0 // pred_fallthru
    _
  // Predicated region
  $region6: #{_lambda_.66} parent=0 // pred_check
    _
  $region7: #{_lambda_.66} parent=0 // pred_check_branch
    %11 = sbr.rel (0) target = $region9
  $region8: #{_lambda_.66} parent=0 // pred_region
    _
  $region9: #{_lambda_.66} parent=0 // pred_fallthru
    _
  // Predicated region
  $region10: #{_lambda_.66} parent=0 // pred_check
    _
  $region11: #{_lambda_.66} parent=0 // pred_check_branch
    %13 = sbr.rel (0) target = $region13
  $region12: #{_lambda_.66} parent=0 // pred_region
    _
  $region13: #{_lambda_.66} parent=0 // pred_fallthru
    _
  %v14 = vld [vmem:[%s0] sm:$0xff]
  %v15 = vld [vmem:[%s0 + $0x8] sm:$0xff]
  %v16 = vld [vmem:[%s1] sm:$0xff]
  %v17 = vld [vmem:[%s1 + $0x8] sm:$0xff]
  %v18 = vld [vmem:[%s1 + $0x10] sm:$0xff]
  %v19 = vld [vmem:[%s1 + $0x18] sm:$0xff]
  %v20 = vld [vmem:[%s2] sm:$0x1]
  %v22 = vperm.slane %v20, 0
  %vm24 = vcmask 261120
  %v26 = vsel %vm24, %v14, 0
  %v29 = vsel %vm24, %v15, 0
  %31 = vmatpush.msra.mxu0 0.0
  %32 = vmatpush.msra.mxu0 0.0
  %33 = vmatpush.msra.mxu0 0.0
  %34 = vmatpush.msra.mxu0 0.0
  %35 = vmatpush.msra.mxu0 0.0
  %36 = vmatpush.msra.mxu0 0.0
  %37 = vmatpush.msra.mxu0 0.0
  %38 = vmatpush.msra.mxu0 0.0
  %39 = vmatpush.msra.mxu0 0.0
  %40 = vmatpush.msra.mxu0 0.0
  %41 = vmatpush.msra.mxu0 0.0
  %42 = vmatpush.msra.mxu0 0.0
  %43 = vmatpush.msra.mxu0 %v19
  %44 = vmatpush.msra.mxu0 %v18
  %45 = vmatpush.msra.mxu0 %v17
  %46 = vmatpush.msra.mxu0 %v16
  %47 = vmatmul.f32.gmra.mxu0 %v26
  %v48 = vpop.f32.mrf.mxu0
  %v49 = vadd.f32 %v22, %v48
  %50 = vmatmul.f32.gmra.mxu0 %v29
  %v51 = vpop.f32.mrf.mxu0
  %v52 = vadd.f32 %v22, %v51
  %53 = vdwg.mxu0
  %vm54 = vcmask 48128
  %55 = vst.msk [vmem:[%s3] sm:$0xff] %vm54, %v49
  %56 = vst.msk [vmem:[%s3 + $0x8] sm:$0xff] %vm54, %v52
  // Predicated region
  $region14: #{_lambda_.66} parent=0 // pred_check
    _
  $region15: #{_lambda_.66} parent=0 // pred_check_branch
    %58 = sbr.rel (0) target = $region17
  $region16: #{_lambda_.66} parent=0 // pred_region
    _
  $region17: #{_lambda_.66} parent=0 // pred_fallthru
    _
  // Predicated region
  $region18: #{_lambda_.66} parent=0 // pred_check
    _
  $region19: #{_lambda_.66} parent=0 // pred_check_branch
    %60 = sbr.rel (0) target = $region21
  $region20: #{_lambda_.66} parent=0 // pred_region
    _
  $region21: #{_lambda_.66} parent=0 // pred_fallthru
    _

// kernel: _lambda_.65
$region0: #{_lambda_.65}
  #allocation0 [shape = 'u32[]', space=smem, size = 0x4, offset = 0x4, fixed_abs, tag = 'smem constant byte address 0x4 - core index']
  #allocation1 [shape = 'u32[72,128]{1,0:T(1,128)}', space=vmem, size = 0x9000, scoped, tag = 'internal scratch']
  %s0 = inlined_call_operand.vmem [shape: f32[16,32], index: 0, kind: input, shape index: {}]
  %s1 = inlined_call_operand.vmem [shape: f32[32,32], index: 1, kind: input, shape index: {}]
  %s2 = inlined_call_operand.vmem [shape: f32[1,32], index: 2, kind: input, shape index: {}]
  %s3 = inlined_call_operand.vmem [shape: f32[16,32], index: 3, kind: input, shape index: {}]
  %s4 = inlined_call_operand.vmem [shape: f32[1,32], index: 4, kind: input, shape index: {}]
  %s5 = inlined_call_operand.vmem [shape: f32[1,32], index: 5, kind: input, shape index: {}]
  %s6 = inlined_call_operand.vmem [shape: f32[16,32], index: 6, kind: output, shape index: {}]
  %s7 = sld [smem:[#allocation0]]
  $region34: #{_lambda_.65} parent=0
    _
  %s9 = ssub.s32 1, %s7
  %s10 = scalar_select 0, %s9, %s7
  // Predicated region
  $region2: #{_lambda_.65} parent=0 // pred_check
    _
  $region3: #{_lambda_.65} parent=0 // pred_check_branch
    %12 = sbr.rel (0) target = $region5
  $region4: #{_lambda_.65} parent=0 // pred_region
    _
  $region5: #{_lambda_.65} parent=0 // pred_fallthru
    _
  // Predicated region
  $region6: #{_lambda_.65} parent=0 // pred_check
    _
  $region7: #{_lambda_.65} parent=0 // pred_check_branch
    %14 = sbr.rel (0) target = $region9
  $region8: #{_lambda_.65} parent=0 // pred_region
    _
  $region9: #{_lambda_.65} parent=0 // pred_fallthru
    _
  // Predicated region
  $region10: #{_lambda_.65} parent=0 // pred_check
    _
  $region11: #{_lambda_.65} parent=0 // pred_check_branch
    %16 = sbr.rel (0) target = $region13
  $region12: #{_lambda_.65} parent=0 // pred_region
    _
  $region13: #{_lambda_.65} parent=0 // pred_fallthru
    _
  // Predicated region
  $region14: #{_lambda_.65} parent=0 // pred_check
    _
  $region15: #{_lambda_.65} parent=0 // pred_check_branch
    %18 = sbr.rel (0) target = $region17
  $region16: #{_lambda_.65} parent=0 // pred_region
    _
  $region17: #{_lambda_.65} parent=0 // pred_fallthru
    _
  // Predicated region
  $region18: #{_lambda_.65} parent=0 // pred_check
    _
  $region19: #{_lambda_.65} parent=0 // pred_check_branch
    %20 = sbr.rel (0) target = $region21
  $region20: #{_lambda_.65} parent=0 // pred_region
    _
  $region21: #{_lambda_.65} parent=0 // pred_fallthru
    _
  // Predicated region
  $region22: #{_lambda_.65} parent=0 // pred_check
    _
  $region23: #{_lambda_.65} parent=0 // pred_check_branch
    %22 = sbr.rel (0) target = $region25
  $region24: #{_lambda_.65} parent=0 // pred_region
    _
  $region25: #{_lambda_.65} parent=0 // pred_fallthru
    _
  %v23 = vld [vmem:[%s0] sm:$0xff]
  %v24 = vld [vmem:[%s0 + $0x8] sm:$0xff]
  %v25 = vld [vmem:[%s1] sm:$0xff]
  %v26 = vld [vmem:[%s1 + $0x8] sm:$0xff]
  %v27 = vld [vmem:[%s1 + $0x10] sm:$0xff]
  %v28 = vld [vmem:[%s1 + $0x18] sm:$0xff]
  %v29 = vld [vmem:[%s2] sm:$0x1]
  %v31 = vperm.slane %v29, 0
  %vm33 = vcmask 261120
  %v35 = vsel %vm33, %v23, 0
  %v38 = vsel %vm33, %v24, 0
  %40 = vmatpush.msra.mxu0 0.0
  %41 = vmatpush.msra.mxu0 0.0
  %42 = vmatpush.msra.mxu0 0.0
  %43 = vmatpush.msra.mxu0 0.0
  %44 = vmatpush.msra.mxu0 0.0
  %45 = vmatpush.msra.mxu0 0.0
  %46 = vmatpush.msra.mxu0 0.0
  %47 = vmatpush.msra.mxu0 0.0
  %48 = vmatpush.msra.mxu0 0.0
  %49 = vmatpush.msra.mxu0 0.0
  %50 = vmatpush.msra.mxu0 0.0
  %51 = vmatpush.msra.mxu0 0.0
  %52 = vmatpush.msra.mxu0 %v28
  %53 = vmatpush.msra.mxu0 %v27
  %54 = vmatpush.msra.mxu0 %v26
  %55 = vmatpush.msra.mxu0 %v25
  %56 = vmatmul.f32.gmra.mxu0 %v35
  %v57 = vpop.f32.mrf.mxu0
  %v58 = vadd.f32 %v31, %v57
  %59 = vmatmul.f32.gmra.mxu0 %v38
  %v60 = vpop.f32.mrf.mxu0
  %v61 = vadd.f32 %v31, %v60
  %62 = vdwg.mxu0
  %v63 = vld [vmem:[%s3] sm:$0xff]
  %v64 = vld [vmem:[%s3 + $0x8] sm:$0xff]
  %v65 = vadd.f32 %v58, %v63
  %v66 = vadd.f32 %v61, %v64
  %v67 = vsel %vm33, %v65, 0.0
  %68 = vadd.xlane.f32.xlu0 %v67
  %v69 = vpop.xlane.xlu0 %68
  %v70 = vsel %vm33, %v66, 0.0
  %71 = vadd.xlane.f32.xlu0 %v70
  %v72 = vpop.xlane.xlu0 %71
  %v73 = vrcp.pop 32.0
  %v74 = vmul.f32 32.0, %v73
  %v75 = vsub.f32 1.0, %v74
  %v76 = vmul.f32 %v73, %v75
  %v77 = vadd.f32 %v73, %v76
  %vm78 = vweird.f32 %v73
  %v79 = vsel %vm78, %v73, %v77
  %v80 = vmul.f32 %v69, %v79
  %v81 = vmul.f32 %v72, %v79
  %v82 = vsub.f32 %v65, %v80
  %v83 = vsub.f32 %v66, %v81
  %v84 = vmul.f32 %v82, %v82
  %v85 = vmul.f32 %v83, %v83
  %v86 = vsel %vm33, %v84, 0.0
  %87 = vadd.xlane.f32.xlu0 %v86
  %v88 = vpop.xlane.xlu0 %87
  %v89 = vsel %vm33, %v85, 0.0
  %90 = vadd.xlane.f32.xlu0 %v89
  %v91 = vpop.xlane.xlu0 %90
  %v92 = vmul.f32 %v88, %v79
  %v93 = vmul.f32 %v91, %v79
  %v94 = vadd.f32 %v92, 1e-05
  %v95 = vadd.f32 %v93, 1e-05
  %v96 = vrsqrt.pop %v94
  %v97 = vmul.f32 %v96, %v94
  %v98 = vmul.f32 %v97, %v96
  %v99 = vmul.f32 0.5, %v98
  %v100 = vsub.f32 1.5, %v99
  %v101 = vmul.f32 %v96, %v100
  %vm102 = vweird.f32 %v94
  %vm103 = vweird.f32 %v96
  %vm104 = vmor %vm102, %vm103
  %v105 = vsel %vm104, %v96, %v101
  %v106 = vrsqrt.pop %v95
  %v107 = vmul.f32 %v106, %v95
  %v108 = vmul.f32 %v107, %v106
  %v109 = vmul.f32 0.5, %v108
  %v110 = vsub.f32 1.5, %v109
  %v111 = vmul.f32 %v106, %v110
  %vm112 = vweird.f32 %v95
  %vm113 = vweird.f32 %v106
  %vm114 = vmor %vm112, %vm113
  %v115 = vsel %vm114, %v106, %v111
  %v116 = vmul.f32 %v82, %v105
  %v117 = vmul.f32 %v83, %v115
  %v118 = vld [vmem:[%s4] sm:$0x1]
  %v120 = vperm.slane %v118, 0
  %v122 = vmul.f32 %v116, %v120
  %v123 = vmul.f32 %v117, %v120
  %v124 = vld [vmem:[%s5] sm:$0x1]
  %v126 = vperm.slane %v124, 0
  %v128 = vadd.f32 %v122, %v126
  %v129 = vadd.f32 %v123, %v126
  %130 = vst.msk [vmem:[%s6] sm:$0xff] %vm33, %v128
  %131 = vst.msk [vmem:[%s6 + $0x8] sm:$0xff] %vm33, %v129
  // Predicated region
  $region26: #{_lambda_.65} parent=0 // pred_check
    _
  $region27: #{_lambda_.65} parent=0 // pred_check_branch
    %133 = sbr.rel (0) target = $region29
  $region28: #{_lambda_.65} parent=0 // pred_region
    _
  $region29: #{_lambda_.65} parent=0 // pred_fallthru
    _
  // Predicated region
  $region30: #{_lambda_.65} parent=0 // pred_check
    _
  $region31: #{_lambda_.65} parent=0 // pred_check_branch
    %135 = sbr.rel (0) target = $region33
  $region32: #{_lambda_.65} parent=0 // pred_region
    _
  $region33: #{_lambda_.65} parent=0 // pred_fallthru
    _

// kernel: _lambda_.68
$region0: #{_lambda_.68}
  #allocation0 [shape = 'u32[]', space=smem, size = 0x4, offset = 0x4, fixed_abs, tag = 'smem constant byte address 0x4 - core index']
  #allocation1 [shape = 'u32[72,128]{1,0:T(1,128)}', space=vmem, size = 0x9000, scoped, tag = 'internal scratch']
  %s0 = inlined_call_operand.vmem [shape: f32[128,48], index: 0, kind: input, shape index: {}]
  %s1 = inlined_call_operand.vmem [shape: f32[48,48], index: 1, kind: input, shape index: {}]
  %s2 = inlined_call_operand.vmem [shape: f32[1,48], index: 2, kind: input, shape index: {}]
  %s3 = inlined_call_operand.vmem [shape: f32[128,48], index: 3, kind: output, shape index: {}]
  %s4 = sld [smem:[#allocation0]]
  $region22: #{_lambda_.68} parent=0
    _
  %s6 = ssub.s32 1, %s4
  %s7 = scalar_select 0, %s6, %s4
  // Predicated region
  $region2: #{_lambda_.68} parent=0 // pred_check
    _
  $region3: #{_lambda_.68} parent=0 // pred_check_branch
    %9 = sbr.rel (0) target = $region5
  $region4: #{_lambda_.68} parent=0 // pred_region
    _
  $region5: #{_lambda_.68} parent=0 // pred_fallthru
    _
  // Predicated region
  $region6: #{_lambda_.68} parent=0 // pred_check
    _
  $region7: #{_lambda_.68} parent=0 // pred_check_branch
    %11 = sbr.rel (0) target = $region9
  $region8: #{_lambda_.68} parent=0 // pred_region
    _
  $region9: #{_lambda_.68} parent=0 // pred_fallthru
    _
  // Predicated region
  $region10: #{_lambda_.68} parent=0 // pred_check
    _
  $region11: #{_lambda_.68} parent=0 // pred_check_branch
    %13 = sbr.rel (0) target = $region13
  $region12: #{_lambda_.68} parent=0 // pred_region
    _
  $region13: #{_lambda_.68} parent=0 // pred_fallthru
    _
  %v14 = vld [vmem:[%s0] sm:$0xff]
  %v15 = vld [vmem:[%s0 + $0x8] sm:$0xff]
  %v16 = vld [vmem:[%s0 + $0x10] sm:$0xff]
  %v17 = vld [vmem:[%s0 + $0x18] sm:$0xff]
  %v18 = vld [vmem:[%s0 + $0x20] sm:$0xff]
  %v19 = vld [vmem:[%s0 + $0x28] sm:$0xff]
  %v20 = vld [vmem:[%s0 + $0x30] sm:$0xff]
  %v21 = vld [vmem:[%s0 + $0x38] sm:$0xff]
  %v22 = vld [vmem:[%s0 + $0x40] sm:$0xff]
  %v23 = vld [vmem:[%s0 + $0x48] sm:$0xff]
  %v24 = vld [vmem:[%s0 + $0x50] sm:$0xff]
  %v25 = vld [vmem:[%s0 + $0x58] sm:$0xff]
  %v26 = vld [vmem:[%s0 + $0x60] sm:$0xff]
  %v27 = vld [vmem:[%s0 + $0x68] sm:$0xff]
  %v28 = vld [vmem:[%s0 + $0x70] sm:$0xff]
  %v29 = vld [vmem:[%s0 + $0x78] sm:$0xff]
  %v30 = vld [vmem:[%s1] sm:$0xff]
  %v31 = vld [vmem:[%s1 + $0x8] sm:$0xff]
  %v32 = vld [vmem:[%s1 + $0x10] sm:$0xff]
  %v33 = vld [vmem:[%s1 + $0x18] sm:$0xff]
  %v34 = vld [vmem:[%s1 + $0x20] sm:$0xff]
  %v35 = vld [vmem:[%s1 + $0x28] sm:$0xff]
  %v36 = vld [vmem:[%s2] sm:$0x1]
  %v38 = vperm.slane %v36, 0
  %vm40 = vcmask 392192
  %v42 = vsel %vm40, %v14, 0
  %v45 = vsel %vm40, %v15, 0
  %v48 = vsel %vm40, %v16, 0
  %v51 = vsel %vm40, %v17, 0
  %v54 = vsel %vm40, %v18, 0
  %v57 = vsel %vm40, %v19, 0
  %v60 = vsel %vm40, %v20, 0
  %v63 = vsel %vm40, %v21, 0
  %v66 = vsel %vm40, %v22, 0
  %v69 = vsel %vm40, %v23, 0
  %v72 = vsel %vm40, %v24, 0
  %v75 = vsel %vm40, %v25, 0
  %v78 = vsel %vm40, %v26, 0
  %v81 = vsel %vm40, %v27, 0
  %v84 = vsel %vm40, %v28, 0
  %v87 = vsel %vm40, %v29, 0
  %89 = vmatpush.msra.mxu0 0.0
  %90 = vmatpush.msra.mxu0 0.0
  %91 = vmatpush.msra.mxu0 0.0
  %92 = vmatpush.msra.mxu0 0.0
  %93 = vmatpush.msra.mxu0 0.0
  %94 = vmatpush.msra.mxu0 0.0
  %95 = vmatpush.msra.mxu0 0.0
  %96 = vmatpush.msra.mxu0 0.0
  %97 = vmatpush.msra.mxu0 0.0
  %98 = vmatpush.msra.mxu0 0.0
  %99 = vmatpush.msra.mxu0 %v35
  %100 = vmatpush.msra.mxu0 %v34
  %101 = vmatpush.msra.mxu0 %v33
  %102 = vmatpush.msra.mxu0 %v32
  %103 = vmatpush.msra.mxu0 %v31
  %104 = vmatpush.msra.mxu0 %v30
  %105 = vmatmul.f32.gmra.mxu0 %v42
  %v106 = vpop.f32.mrf.mxu0
  %v107 = vadd.f32 %v38, %v106
  %108 = vmatmul.f32.gmra.mxu0 %v45
  %v109 = vpop.f32.mrf.mxu0
  %v110 = vadd.f32 %v38, %v109
  %111 = vmatmul.f32.gmra.mxu0 %v48
  %v112 = vpop.f32.mrf.mxu0
  %v113 = vadd.f32 %v38, %v112
  %114 = vmatmul.f32.gmra.mxu0 %v51
  %v115 = vpop.f32.mrf.mxu0
  %v116 = vadd.f32 %v38, %v115
  %117 = vmatmul.f32.gmra.mxu0 %v54
  %v118 = vpop.f32.mrf.mxu0
  %v119 = vadd.f32 %v38, %v118
  %120 = vmatmul.f32.gmra.mxu0 %v57
  %v121 = vpop.f32.mrf.mxu0
  %v122 = vadd.f32 %v38, %v121
  %123 = vmatmul.f32.gmra.mxu0 %v60
  %v124 = vpop.f32.mrf.mxu0
  %v125 = vadd.f32 %v38, %v124
  %126 = vmatmul.f32.gmra.mxu0 %v63
  %v127 = vpop.f32.mrf.mxu0
  %v128 = vadd.f32 %v38, %v127
  %129 = vmatmul.f32.gmra.mxu0 %v66
  %v130 = vpop.f32.mrf.mxu0
  %v131 = vadd.f32 %v38, %v130
  %132 = vmatmul.f32.gmra.mxu0 %v69
  %v133 = vpop.f32.mrf.mxu0
  %v134 = vadd.f32 %v38, %v133
  %135 = vmatmul.f32.gmra.mxu0 %v72
  %v136 = vpop.f32.mrf.mxu0
  %v137 = vadd.f32 %v38, %v136
  %138 = vmatmul.f32.gmra.mxu0 %v75
  %v139 = vpop.f32.mrf.mxu0
  %v140 = vadd.f32 %v38, %v139
  %141 = vmatmul.f32.gmra.mxu0 %v78
  %v142 = vpop.f32.mrf.mxu0
  %v143 = vadd.f32 %v38, %v142
  %144 = vmatmul.f32.gmra.mxu0 %v81
  %v145 = vpop.f32.mrf.mxu0
  %v146 = vadd.f32 %v38, %v145
  %147 = vmatmul.f32.gmra.mxu0 %v84
  %v148 = vpop.f32.mrf.mxu0
  %v149 = vadd.f32 %v38, %v148
  %150 = vmatmul.f32.gmra.mxu0 %v87
  %v151 = vpop.f32.mrf.mxu0
  %v152 = vadd.f32 %v38, %v151
  %153 = vdwg.mxu0
  %v154 = vmax.f32 %v107, 0.0
  %v155 = vmax.f32 %v110, 0.0
  %v156 = vmax.f32 %v113, 0.0
  %v157 = vmax.f32 %v116, 0.0
  %v158 = vmax.f32 %v119, 0.0
  %v159 = vmax.f32 %v122, 0.0
  %v160 = vmax.f32 %v125, 0.0
  %v161 = vmax.f32 %v128, 0.0
  %v162 = vmax.f32 %v131, 0.0
  %v163 = vmax.f32 %v134, 0.0
  %v164 = vmax.f32 %v137, 0.0
  %v165 = vmax.f32 %v140, 0.0
  %v166 = vmax.f32 %v143, 0.0
  %v167 = vmax.f32 %v146, 0.0
  %v168 = vmax.f32 %v149, 0.0
  %v169 = vmax.f32 %v152, 0.0
  %170 = vst.msk [vmem:[%s3] sm:$0xff] %vm40, %v154
  %171 = vst.msk [vmem:[%s3 + $0x8] sm:$0xff] %vm40, %v155
  %172 = vst.msk [vmem:[%s3 + $0x10] sm:$0xff] %vm40, %v156
  %173 = vst.msk [vmem:[%s3 + $0x18] sm:$0xff] %vm40, %v157
  %174 = vst.msk [vmem:[%s3 + $0x20] sm:$0xff] %vm40, %v158
  %175 = vst.msk [vmem:[%s3 + $0x28] sm:$0xff] %vm40, %v159
  %176 = vst.msk [vmem:[%s3 + $0x30] sm:$0xff] %vm40, %v160
  %177 = vst.msk [vmem:[%s3 + $0x38] sm:$0xff] %vm40, %v161
  %178 = vst.msk [vmem:[%s3 + $0x40] sm:$0xff] %vm40, %v162
  %179 = vst.msk [vmem:[%s3 + $0x48] sm:$0xff] %vm40, %v163
  %180 = vst.msk [vmem:[%s3 + $0x50] sm:$0xff] %vm40, %v164
  %181 = vst.msk [vmem:[%s3 + $0x58] sm:$0xff] %vm40, %v165
  %182 = vst.msk [vmem:[%s3 + $0x60] sm:$0xff] %vm40, %v166
  %183 = vst.msk [vmem:[%s3 + $0x68] sm:$0xff] %vm40, %v167
  %184 = vst.msk [vmem:[%s3 + $0x70] sm:$0xff] %vm40, %v168
  %185 = vst.msk [vmem:[%s3 + $0x78] sm:$0xff] %vm40, %v169
  // Predicated region
  $region14: #{_lambda_.68} parent=0 // pred_check
    _
  $region15: #{_lambda_.68} parent=0 // pred_check_branch
    %187 = sbr.rel (0) target = $region17
  $region16: #{_lambda_.68} parent=0 // pred_region
    _
  $region17: #{_lambda_.68} parent=0 // pred_fallthru
    _
  // Predicated region
  $region18: #{_lambda_.68} parent=0 // pred_check
    _
  $region19: #{_lambda_.68} parent=0 // pred_check_branch
    %189 = sbr.rel (0) target = $region21
  $region20: #{_lambda_.68} parent=0 // pred_region
    _
  $region21: #{_lambda_.68} parent=0 // pred_fallthru
    _

// kernel: _lambda_.70
$region0: #{_lambda_.70}
  #allocation0 [shape = 'u32[]', space=smem, size = 0x4, offset = 0x4, fixed_abs, tag = 'smem constant byte address 0x4 - core index']
  #allocation1 [shape = 'u32[72,128]{1,0:T(1,128)}', space=vmem, size = 0x9000, scoped, tag = 'internal scratch']
  %s0 = inlined_call_operand.vmem [shape: f32[128,48], index: 0, kind: input, shape index: {}]
  %s1 = inlined_call_operand.vmem [shape: f32[48,16], index: 1, kind: input, shape index: {}]
  %s2 = inlined_call_operand.vmem [shape: f32[1,16], index: 2, kind: input, shape index: {}]
  %s3 = inlined_call_operand.vmem [shape: f32[1,16], index: 3, kind: input, shape index: {}]
  %s4 = inlined_call_operand.vmem [shape: f32[1,16], index: 4, kind: input, shape index: {}]
  %s5 = inlined_call_operand.vmem [shape: f32[128,16], index: 5, kind: output, shape index: {}]
  %s6 = sld [smem:[#allocation0]]
  $region30: #{_lambda_.70} parent=0
    _
  %s8 = ssub.s32 1, %s6
  %s9 = scalar_select 0, %s8, %s6
  // Predicated region
  $region2: #{_lambda_.70} parent=0 // pred_check
    _
  $region3: #{_lambda_.70} parent=0 // pred_check_branch
    %11 = sbr.rel (0) target = $region5
  $region4: #{_lambda_.70} parent=0 // pred_region
    _
  $region5: #{_lambda_.70} parent=0 // pred_fallthru
    _
  // Predicated region
  $region6: #{_lambda_.70} parent=0 // pred_check
    _
  $region7: #{_lambda_.70} parent=0 // pred_check_branch
    %13 = sbr.rel (0) target = $region9
  $region8: #{_lambda_.70} parent=0 // pred_region
    _
  $region9: #{_lambda_.70} parent=0 // pred_fallthru
    _
  // Predicated region
  $region10: #{_lambda_.70} parent=0 // pred_check
    _
  $region11: #{_lambda_.70} parent=0 // pred_check_branch
    %15 = sbr.rel (0) target = $region13
  $region12: #{_lambda_.70} parent=0 // pred_region
    _
  $region13: #{_lambda_.70} parent=0 // pred_fallthru
    _
  // Predicated region
  $region14: #{_lambda_.70} parent=0 // pred_check
    _
  $region15: #{_lambda_.70} parent=0 // pred_check_branch
    %17 = sbr.rel (0) target = $region17
  $region16: #{_lambda_.70} parent=0 // pred_region
    _
  $region17: #{_lambda_.70} parent=0 // pred_fallthru
    _
  // Predicated region
  $region18: #{_lambda_.70} parent=0 // pred_check
    _
  $region19: #{_lambda_.70} parent=0 // pred_check_branch
    %19 = sbr.rel (0) target = $region21
  $region20: #{_lambda_.70} parent=0 // pred_region
    _
  $region21: #{_lambda_.70} parent=0 // pred_fallthru
    _
  %v20 = vld [vmem:[%s0] sm:$0xff]
  %v21 = vld [vmem:[%s0 + $0x8] sm:$0xff]
  %v22 = vld [vmem:[%s0 + $0x10] sm:$0xff]
  %v23 = vld [vmem:[%s0 + $0x18] sm:$0xff]
  %v24 = vld [vmem:[%s0 + $0x20] sm:$0xff]
  %v25 = vld [vmem:[%s0 + $0x28] sm:$0xff]
  %v26 = vld [vmem:[%s0 + $0x30] sm:$0xff]
  %v27 = vld [vmem:[%s0 + $0x38] sm:$0xff]
  %v28 = vld [vmem:[%s0 + $0x40] sm:$0xff]
  %v29 = vld [vmem:[%s0 + $0x48] sm:$0xff]
  %v30 = vld [vmem:[%s0 + $0x50] sm:$0xff]
  %v31 = vld [vmem:[%s0 + $0x58] sm:$0xff]
  %v32 = vld [vmem:[%s0 + $0x60] sm:$0xff]
  %v33 = vld [vmem:[%s0 + $0x68] sm:$0xff]
  %v34 = vld [vmem:[%s0 + $0x70] sm:$0xff]
  %v35 = vld [vmem:[%s0 + $0x78] sm:$0xff]
  %v36 = vld [vmem:[%s1] sm:$0xff]
  %v37 = vld [vmem:[%s1 + $0x8] sm:$0xff]
  %v38 = vld [vmem:[%s1 + $0x10] sm:$0xff]
  %v39 = vld [vmem:[%s1 + $0x18] sm:$0xff]
  %v40 = vld [vmem:[%s1 + $0x20] sm:$0xff]
  %v41 = vld [vmem:[%s1 + $0x28] sm:$0xff]
  %v42 = vld [vmem:[%s2] sm:$0x1]
  %v44 = vperm.slane %v42, 0
  %vm46 = vcmask 392192
  %v48 = vsel %vm46, %v20, 0
  %v51 = vsel %vm46, %v21, 0
  %v54 = vsel %vm46, %v22, 0
  %v57 = vsel %vm46, %v23, 0
  %v60 = vsel %vm46, %v24, 0
  %v63 = vsel %vm46, %v25, 0
  %v66 = vsel %vm46, %v26, 0
  %v69 = vsel %vm46, %v27, 0
  %v72 = vsel %vm46, %v28, 0
  %v75 = vsel %vm46, %v29, 0
  %v78 = vsel %vm46, %v30, 0
  %v81 = vsel %vm46, %v31, 0
  %v84 = vsel %vm46, %v32, 0
  %v87 = vsel %vm46, %v33, 0
  %v90 = vsel %vm46, %v34, 0
  %v93 = vsel %vm46, %v35, 0
  %95 = vmatpush.msra.mxu0 0.0
  %96 = vmatpush.msra.mxu0 0.0
  %97 = vmatpush.msra.mxu0 0.0
  %98 = vmatpush.msra.mxu0 0.0
  %99 = vmatpush.msra.mxu0 0.0
  %100 = vmatpush.msra.mxu0 0.0
  %101 = vmatpush.msra.mxu0 0.0
  %102 = vmatpush.msra.mxu0 0.0
  %103 = vmatpush.msra.mxu0 0.0
  %104 = vmatpush.msra.mxu0 0.0
  %105 = vmatpush.msra.mxu0 %v41
  %106 = vmatpush.msra.mxu0 %v40
  %107 = vmatpush.msra.mxu0 %v39
  %108 = vmatpush.msra.mxu0 %v38
  %109 = vmatpush.msra.mxu0 %v37
  %110 = vmatpush.msra.mxu0 %v36
  %111 = vmatmul.f32.gmra.mxu0 %v48
  %v112 = vpop.f32.mrf.mxu0
  %v113 = vadd.f32 %v44, %v112
  %114 = vmatmul.f32.gmra.mxu0 %v51
  %v115 = vpop.f32.mrf.mxu0
  %v116 = vadd.f32 %v44, %v115
  %117 = vmatmul.f32.gmra.mxu0 %v54
  %v118 = vpop.f32.mrf.mxu0
  %v119 = vadd.f32 %v44, %v118
  %120 = vmatmul.f32.gmra.mxu0 %v57
  %v121 = vpop.f32.mrf.mxu0
  %v122 = vadd.f32 %v44, %v121
  %123 = vmatmul.f32.gmra.mxu0 %v60
  %v124 = vpop.f32.mrf.mxu0
  %v125 = vadd.f32 %v44, %v124
  %126 = vmatmul.f32.gmra.mxu0 %v63
  %v127 = vpop.f32.mrf.mxu0
  %v128 = vadd.f32 %v44, %v127
  %129 = vmatmul.f32.gmra.mxu0 %v66
  %v130 = vpop.f32.mrf.mxu0
  %v131 = vadd.f32 %v44, %v130
  %132 = vmatmul.f32.gmra.mxu0 %v69
  %v133 = vpop.f32.mrf.mxu0
  %v134 = vadd.f32 %v44, %v133
  %135 = vmatmul.f32.gmra.mxu0 %v72
  %v136 = vpop.f32.mrf.mxu0
  %v137 = vadd.f32 %v44, %v136
  %138 = vmatmul.f32.gmra.mxu0 %v75
  %v139 = vpop.f32.mrf.mxu0
  %v140 = vadd.f32 %v44, %v139
  %141 = vmatmul.f32.gmra.mxu0 %v78
  %v142 = vpop.f32.mrf.mxu0
  %v143 = vadd.f32 %v44, %v142
  %144 = vmatmul.f32.gmra.mxu0 %v81
  %v145 = vpop.f32.mrf.mxu0
  %v146 = vadd.f32 %v44, %v145
  %147 = vmatmul.f32.gmra.mxu0 %v84
  %v148 = vpop.f32.mrf.mxu0
  %v149 = vadd.f32 %v44, %v148
  %150 = vmatmul.f32.gmra.mxu0 %v87
  %v151 = vpop.f32.mrf.mxu0
  %v152 = vadd.f32 %v44, %v151
  %153 = vmatmul.f32.gmra.mxu0 %v90
  %v154 = vpop.f32.mrf.mxu0
  %v155 = vadd.f32 %v44, %v154
  %156 = vmatmul.f32.gmra.mxu0 %v93
  %v157 = vpop.f32.mrf.mxu0
  %v158 = vadd.f32 %v44, %v157
  %159 = vdwg.mxu0
  %vm160 = vcmask 130048
  %v161 = vsel %vm160, %v113, 0.0
  %162 = vadd.xlane.f32.xlu0 %v161
  %v163 = vpop.xlane.xlu0 %162
  %v164 = vsel %vm160, %v116, 0.0
  %165 = vadd.xlane.f32.xlu0 %v164
  %v166 = vpop.xlane.xlu0 %165
  %v167 = vsel %vm160, %v119, 0.0
  %168 = vadd.xlane.f32.xlu0 %v167
  %v169 = vpop.xlane.xlu0 %168
  %v170 = vsel %vm160, %v122, 0.0
  %171 = vadd.xlane.f32.xlu0 %v170
  %v172 = vpop.xlane.xlu0 %171
  %v173 = vsel %vm160, %v125, 0.0
  %174 = vadd.xlane.f32.xlu0 %v173
  %v175 = vpop.xlane.xlu0 %174
  %v176 = vsel %vm160, %v128, 0.0
  %177 = vadd.xlane.f32.xlu0 %v176
  %v178 = vpop.xlane.xlu0 %177
  %v179 = vsel %vm160, %v131, 0.0
  %180 = vadd.xlane.f32.xlu0 %v179
  %v181 = vpop.xlane.xlu0 %180
  %v182 = vsel %vm160, %v134, 0.0
  %183 = vadd.xlane.f32.xlu0 %v182
  %v184 = vpop.xlane.xlu0 %183
  %v185 = vsel %vm160, %v137, 0.0
  %186 = vadd.xlane.f32.xlu0 %v185
  %v187 = vpop.xlane.xlu0 %186
  %v188 = vsel %vm160, %v140, 0.0
  %189 = vadd.xlane.f32.xlu0 %v188
  %v190 = vpop.xlane.xlu0 %189
  %v191 = vsel %vm160, %v143, 0.0
  %192 = vadd.xlane.f32.xlu0 %v191
  %v193 = vpop.xlane.xlu0 %192
  %v194 = vsel %vm160, %v146, 0.0
  %195 = vadd.xlane.f32.xlu0 %v194
  %v196 = vpop.xlane.xlu0 %195
  %v197 = vsel %vm160, %v149, 0.0
  %198 = vadd.xlane.f32.xlu0 %v197
  %v199 = vpop.xlane.xlu0 %198
  %v200 = vsel %vm160, %v152, 0.0
  %201 = vadd.xlane.f32.xlu0 %v200
  %v202 = vpop.xlane.xlu0 %201
  %v203 = vsel %vm160, %v155, 0.0
  %204 = vadd.xlane.f32.xlu0 %v203
  %v205 = vpop.xlane.xlu0 %204
  %v206 = vsel %vm160, %v158, 0.0
  %207 = vadd.xlane.f32.xlu0 %v206
  %v208 = vpop.xlane.xlu0 %207
  %v209 = vrcp.pop 16.0
  %v210 = vmul.f32 16.0, %v209
  %v211 = vsub.f32 1.0, %v210
  %v212 = vmul.f32 %v209, %v211
  %v213 = vadd.f32 %v209, %v212
  %vm214 = vweird.f32 %v209
  %v215 = vsel %vm214, %v209, %v213
  %v216 = vmul.f32 %v163, %v215
  %v217 = vmul.f32 %v166, %v215
  %v218 = vmul.f32 %v169, %v215
  %v219 = vmul.f32 %v172, %v215
  %v220 = vmul.f32 %v175, %v215
  %v221 = vmul.f32 %v178, %v215
  %v222 = vmul.f32 %v181, %v215
  %v223 = vmul.f32 %v184, %v215
  %v224 = vmul.f32 %v187, %v215
  %v225 = vmul.f32 %v190, %v215
  %v226 = vmul.f32 %v193, %v215
  %v227 = vmul.f32 %v196, %v215
  %v228 = vmul.f32 %v199, %v215
  %v229 = vmul.f32 %v202, %v215
  %v230 = vmul.f32 %v205, %v215
  %v231 = vmul.f32 %v208, %v215
  %v232 = vsub.f32 %v113, %v216
  %v233 = vsub.f32 %v116, %v217
  %v234 = vsub.f32 %v119, %v218
  %v235 = vsub.f32 %v122, %v219
  %v236 = vsub.f32 %v125, %v220
  %v237 = vsub.f32 %v128, %v221
  %v238 = vsub.f32 %v131, %v222
  %v239 = vsub.f32 %v134, %v223
  %v240 = vsub.f32 %v137, %v224
  %v241 = vsub.f32 %v140, %v225
  %v242 = vsub.f32 %v143, %v226
  %v243 = vsub.f32 %v146, %v227
  %v244 = vsub.f32 %v149, %v228
  %v245 = vsub.f32 %v152, %v229
  %v246 = vsub.f32 %v155, %v230
  %v247 = vsub.f32 %v158, %v231
  %v248 = vmul.f32 %v232, %v232
  %v249 = vmul.f32 %v233, %v233
  %v250 = vmul.f32 %v234, %v234
  %v251 = vmul.f32 %v235, %v235
  %v252 = vmul.f32 %v236, %v236
  %v253 = vmul.f32 %v237, %v237
  %v254 = vmul.f32 %v238, %v238
  %v255 = vmul.f32 %v239, %v239
  %v256 = vmul.f32 %v240, %v240
  %v257 = vmul.f32 %v241, %v241
  %v258 = vmul.f32 %v242, %v242
  %v259 = vmul.f32 %v243, %v243
  %v260 = vmul.f32 %v244, %v244
  %v261 = vmul.f32 %v245, %v245
  %v262 = vmul.f32 %v246, %v246
  %v263 = vmul.f32 %v247, %v247
  %v264 = vsel %vm160, %v248, 0.0
  %265 = vadd.xlane.f32.xlu0 %v264
  %v266 = vpop.xlane.xlu0 %265
  %v267 = vsel %vm160, %v249, 0.0
  %268 = vadd.xlane.f32.xlu0 %v267
  %v269 = vpop.xlane.xlu0 %268
  %v270 = vsel %vm160, %v250, 0.0
  %271 = vadd.xlane.f32.xlu0 %v270
  %v272 = vpop.xlane.xlu0 %271
  %v273 = vsel %vm160, %v251, 0.0
  %274 = vadd.xlane.f32.xlu0 %v273
  %v275 = vpop.xlane.xlu0 %274
  %v276 = vsel %vm160, %v252, 0.0
  %277 = vadd.xlane.f32.xlu0 %v276
  %v278 = vpop.xlane.xlu0 %277
  %v279 = vsel %vm160, %v253, 0.0
  %280 = vadd.xlane.f32.xlu0 %v279
  %v281 = vpop.xlane.xlu0 %280
  %v282 = vsel %vm160, %v254, 0.0
  %283 = vadd.xlane.f32.xlu0 %v282
  %v284 = vpop.xlane.xlu0 %283
  %v285 = vsel %vm160, %v255, 0.0
  %286 = vadd.xlane.f32.xlu0 %v285
  %v287 = vpop.xlane.xlu0 %286
  %v288 = vsel %vm160, %v256, 0.0
  %289 = vadd.xlane.f32.xlu0 %v288
  %v290 = vpop.xlane.xlu0 %289
  %v291 = vsel %vm160, %v257, 0.0
  %292 = vadd.xlane.f32.xlu0 %v291
  %v293 = vpop.xlane.xlu0 %292
  %v294 = vsel %vm160, %v258, 0.0
  %295 = vadd.xlane.f32.xlu0 %v294
  %v296 = vpop.xlane.xlu0 %295
  %v297 = vsel %vm160, %v259, 0.0
  %298 = vadd.xlane.f32.xlu0 %v297
  %v299 = vpop.xlane.xlu0 %298
  %v300 = vsel %vm160, %v260, 0.0
  %301 = vadd.xlane.f32.xlu0 %v300
  %v302 = vpop.xlane.xlu0 %301
  %v303 = vsel %vm160, %v261, 0.0
  %304 = vadd.xlane.f32.xlu0 %v303
  %v305 = vpop.xlane.xlu0 %304
  %v306 = vsel %vm160, %v262, 0.0
  %307 = vadd.xlane.f32.xlu0 %v306
  %v308 = vpop.xlane.xlu0 %307
  %v309 = vsel %vm160, %v263, 0.0
  %310 = vadd.xlane.f32.xlu0 %v309
  %v311 = vpop.xlane.xlu0 %310
  %v312 = vmul.f32 %v266, %v215
  %v313 = vmul.f32 %v269, %v215
  %v314 = vmul.f32 %v272, %v215
  %v315 = vmul.f32 %v275, %v215
  %v316 = vmul.f32 %v278, %v215
  %v317 = vmul.f32 %v281, %v215
  %v318 = vmul.f32 %v284, %v215
  %v319 = vmul.f32 %v287, %v215
  %v320 = vmul.f32 %v290, %v215
  %v321 = vmul.f32 %v293, %v215
  %v322 = vmul.f32 %v296, %v215
  %v323 = vmul.f32 %v299, %v215
  %v324 = vmul.f32 %v302, %v215
  %v325 = vmul.f32 %v305, %v215
  %v326 = vmul.f32 %v308, %v215
  %v327 = vmul.f32 %v311, %v215
  %v328 = vadd.f32 %v312, 1e-05
  %v329 = vadd.f32 %v313, 1e-05
  %v330 = vadd.f32 %v314, 1e-05
  %v331 = vadd.f32 %v315, 1e-05
  %v332 = vadd.f32 %v316, 1e-05
  %v333 = vadd.f32 %v317, 1e-05
  %v334 = vadd.f32 %v318, 1e-05
  %v335 = vadd.f32 %v319, 1e-05
  %v336 = vadd.f32 %v320, 1e-05
  %v337 = vadd.f32 %v321, 1e-05
  %v338 = vadd.f32 %v322, 1e-05
  %v339 = vadd.f32 %v323, 1e-05
  %v340 = vadd.f32 %v324, 1e-05
  %v341 = vadd.f32 %v325, 1e-05
  %v342 = vadd.f32 %v326, 1e-05
  %v343 = vadd.f32 %v327, 1e-05
  %v344 = vrsqrt.pop %v328
  %v345 = vmul.f32 %v344, %v328
  %v346 = vmul.f32 %v345, %v344
  %v347 = vmul.f32 0.5, %v346
  %v348 = vsub.f32 1.5, %v347
  %v349 = vmul.f32 %v344, %v348
  %vm350 = vweird.f32 %v328
  %vm351 = vweird.f32 %v344
  %vm352 = vmor %vm350, %vm351
  %v353 = vsel %vm352, %v344, %v349
  %v354 = vrsqrt.pop %v329
  %v355 = vmul.f32 %v354, %v329
  %v356 = vmul.f32 %v355, %v354
  %v357 = vmul.f32 0.5, %v356
  %v358 = vsub.f32 1.5, %v357
  %v359 = vmul.f32 %v354, %v358
  %vm360 = vweird.f32 %v329
  %vm361 = vweird.f32 %v354
  %vm362 = vmor %vm360, %vm361
  %v363 = vsel %vm362, %v354, %v359
  %v364 = vrsqrt.pop %v330
  %v365 = vmul.f32 %v364, %v330
  %v366 = vmul.f32 %v365, %v364
  %v367 = vmul.f32 0.5, %v366
  %v368 = vsub.f32 1.5, %v367
  %v369 = vmul.f32 %v364, %v368
  %vm370 = vweird.f32 %v330
  %vm371 = vweird.f32 %v364
  %vm372 = vmor %vm370, %vm371
  %v373 = vsel %vm372, %v364, %v369
  %v374 = vrsqrt.pop %v331
  %v375 = vmul.f32 %v374, %v331
  %v376 = vmul.f32 %v375, %v374
  %v377 = vmul.f32 0.5, %v376
  %v378 = vsub.f32 1.5, %v377
  %v379 = vmul.f32 %v374, %v378
  %vm380 = vweird.f32 %v331
  %vm381 = vweird.f32 %v374
  %vm382 = vmor %vm380, %vm381
  %v383 = vsel %vm382, %v374, %v379
  %v384 = vrsqrt.pop %v332
  %v385 = vmul.f32 %v384, %v332
  %v386 = vmul.f32 %v385, %v384
  %v387 = vmul.f32 0.5, %v386
  %v388 = vsub.f32 1.5, %v387
  %v389 = vmul.f32 %v384, %v388
  %vm390 = vweird.f32 %v332
  %vm391 = vweird.f32 %v384
  %vm392 = vmor %vm390, %vm391
  %v393 = vsel %vm392, %v384, %v389
  %v394 = vrsqrt.pop %v333
  %v395 = vmul.f32 %v394, %v333
  %v396 = vmul.f32 %v395, %v394
  %v397 = vmul.f32 0.5, %v396
  %v398 = vsub.f32 1.5, %v397
  %v399 = vmul.f32 %v394, %v398
  %vm400 = vweird.f32 %v333
  %vm401 = vweird.f32 %v394
  %vm402 = vmor %vm400, %vm401
  %v403 = vsel %vm402, %v394, %v399
  %v404 = vrsqrt.pop %v334
  %v405 = vmul.f32 %v404, %v334
  %v406 = vmul.f32 %v405, %v404
  %v407 = vmul.f32 0.5, %v406
  %v408 = vsub.f32 1.5, %v407
  %v409 = vmul.f32 %v404, %v408
  %vm410 = vweird.f32 %v334
  %vm411 = vweird.f32 %v404
  %vm412 = vmor %vm410, %vm411
  %v413 = vsel %vm412, %v404, %v409
  %v414 = vrsqrt.pop %v335
  %v415 = vmul.f32 %v414, %v335
  %v416 = vmul.f32 %v415, %v414
  %v417 = vmul.f32 0.5, %v416
  %v418 = vsub.f32 1.5, %v417
  %v419 = vmul.f32 %v414, %v418
  %vm420 = vweird.f32 %v335
  %vm421 = vweird.f32 %v414
  %vm422 = vmor %vm420, %vm421
  %v423 = vsel %vm422, %v414, %v419
  %v424 = vrsqrt.pop %v336
  %v425 = vmul.f32 %v424, %v336
  %v426 = vmul.f32 %v425, %v424
  %v427 = vmul.f32 0.5, %v426
  %v428 = vsub.f32 1.5, %v427
  %v429 = vmul.f32 %v424, %v428
  %vm430 = vweird.f32 %v336
  %vm431 = vweird.f32 %v424
  %vm432 = vmor %vm430, %vm431
  %v433 = vsel %vm432, %v424, %v429
  %v434 = vrsqrt.pop %v337
  %v435 = vmul.f32 %v434, %v337
  %v436 = vmul.f32 %v435, %v434
  %v437 = vmul.f32 0.5, %v436
  %v438 = vsub.f32 1.5, %v437
  %v439 = vmul.f32 %v434, %v438
  %vm440 = vweird.f32 %v337
  %vm441 = vweird.f32 %v434
  %vm442 = vmor %vm440, %vm441
  %v443 = vsel %vm442, %v434, %v439
  %v444 = vrsqrt.pop %v338
  %v445 = vmul.f32 %v444, %v338
  %v446 = vmul.f32 %v445, %v444
  %v447 = vmul.f32 0.5, %v446
  %v448 = vsub.f32 1.5, %v447
  %v449 = vmul.f32 %v444, %v448
  %vm450 = vweird.f32 %v338
  %vm451 = vweird.f32 %v444
  %vm452 = vmor %vm450, %vm451
  %v453 = vsel %vm452, %v444, %v449
  %v454 = vrsqrt.pop %v339
  %v455 = vmul.f32 %v454, %v339
  %v456 = vmul.f32 %v455, %v454
  %v457 = vmul.f32 0.5, %v456
  %v458 = vsub.f32 1.5, %v457
  %v459 = vmul.f32 %v454, %v458
  %vm460 = vweird.f32 %v339
  %vm461 = vweird.f32 %v454
  %vm462 = vmor %vm460, %vm461
  %v463 = vsel %vm462, %v454, %v459
  %v464 = vrsqrt.pop %v340
  %v465 = vmul.f32 %v464, %v340
  %v466 = vmul.f32 %v465, %v464
  %v467 = vmul.f32 0.5, %v466
  %v468 = vsub.f32 1.5, %v467
  %v469 = vmul.f32 %v464, %v468
  %vm470 = vweird.f32 %v340
  %vm471 = vweird.f32 %v464
  %vm472 = vmor %vm470, %vm471
  %v473 = vsel %vm472, %v464, %v469
  %v474 = vrsqrt.pop %v341
  %v475 = vmul.f32 %v474, %v341
  %v476 = vmul.f32 %v475, %v474
  %v477 = vmul.f32 0.5, %v476
  %v478 = vsub.f32 1.5, %v477
  %v479 = vmul.f32 %v474, %v478
  %vm480 = vweird.f32 %v341
  %vm481 = vweird.f32 %v474
  %vm482 = vmor %vm480, %vm481
  %v483 = vsel %vm482, %v474, %v479
  %v484 = vrsqrt.pop %v342
  %v485 = vmul.f32 %v484, %v342
  %v486 = vmul.f32 %v485, %v484
  %v487 = vmul.f32 0.5, %v486
  %v488 = vsub.f32 1.5, %v487
  %v489 = vmul.f32 %v484, %v488
  %vm490 = vweird.f32 %v342
  %vm491 = vweird.f32 %v484
  %vm492 = vmor %vm490, %vm491
  %v493 = vsel %vm492, %v484, %v489
  %v494 = vrsqrt.pop %v343
  %v495 = vmul.f32 %v494, %v343
  %v496 = vmul.f32 %v495, %v494
  %v497 = vmul.f32 0.5, %v496
  %v498 = vsub.f32 1.5, %v497
  %v499 = vmul.f32 %v494, %v498
  %vm500 = vweird.f32 %v343
  %vm501 = vweird.f32 %v494
  %vm502 = vmor %vm500, %vm501
  %v503 = vsel %vm502, %v494, %v499
  %v504 = vmul.f32 %v232, %v353
  %v505 = vmul.f32 %v233, %v363
  %v506 = vmul.f32 %v234, %v373
  %v507 = vmul.f32 %v235, %v383
  %v508 = vmul.f32 %v236, %v393
  %v509 = vmul.f32 %v237, %v403
  %v510 = vmul.f32 %v238, %v413
  %v511 = vmul.f32 %v239, %v423
  %v512 = vmul.f32 %v240, %v433
  %v513 = vmul.f32 %v241, %v443
  %v514 = vmul.f32 %v242, %v453
  %v515 = vmul.f32 %v243, %v463
  %v516 = vmul.f32 %v244, %v473
  %v517 = vmul.f32 %v245, %v483
  %v518 = vmul.f32 %v246, %v493
  %v519 = vmul.f32 %v247, %v503
  %v520 = vld [vmem:[%s3] sm:$0x1]
  %v522 = vperm.slane %v520, 0
  %v524 = vmul.f32 %v504, %v522
  %v525 = vmul.f32 %v505, %v522
  %v526 = vmul.f32 %v506, %v522
  %v527 = vmul.f32 %v507, %v522
  %v528 = vmul.f32 %v508, %v522
  %v529 = vmul.f32 %v509, %v522
  %v530 = vmul.f32 %v510, %v522
  %v531 = vmul.f32 %v511, %v522
  %v532 = vmul.f32 %v512, %v522
  %v533 = vmul.f32 %v513, %v522
  %v534 = vmul.f32 %v514, %v522
  %v535 = vmul.f32 %v515, %v522
  %v536 = vmul.f32 %v516, %v522
  %v537 = vmul.f32 %v517, %v522
  %v538 = vmul.f32 %v518, %v522
  %v539 = vmul.f32 %v519, %v522
  %v540 = vld [vmem:[%s4] sm:$0x1]
  %v542 = vperm.slane %v540, 0
  %v544 = vadd.f32 %v524, %v542
  %v545 = vadd.f32 %v525, %v542
  %v546 = vadd.f32 %v526, %v542
  %v547 = vadd.f32 %v527, %v542
  %v548 = vadd.f32 %v528, %v542
  %v549 = vadd.f32 %v529, %v542
  %v550 = vadd.f32 %v530, %v542
  %v551 = vadd.f32 %v531, %v542
  %v552 = vadd.f32 %v532, %v542
  %v553 = vadd.f32 %v533, %v542
  %v554 = vadd.f32 %v534, %v542
  %v555 = vadd.f32 %v535, %v542
  %v556 = vadd.f32 %v536, %v542
  %v557 = vadd.f32 %v537, %v542
  %v558 = vadd.f32 %v538, %v542
  %v559 = vadd.f32 %v539, %v542
  %560 = vst.msk [vmem:[%s5] sm:$0xff] %vm160, %v544
  %561 = vst.msk [vmem:[%s5 + $0x8] sm:$0xff] %vm160, %v545
  %562 = vst.msk [vmem:[%s5 + $0x10] sm:$0xff] %vm160, %v546
  %563 = vst.msk [vmem:[%s5 + $0x18] sm:$0xff] %vm160, %v547
  %564 = vst.msk [vmem:[%s5 + $0x20] sm:$0xff] %vm160, %v548
  %565 = vst.msk [vmem:[%s5 + $0x28] sm:$0xff] %vm160, %v549
  %566 = vst.msk [vmem:[%s5 + $0x30] sm:$0xff] %vm160, %v550
  %567 = vst.msk [vmem:[%s5 + $0x38] sm:$0xff] %vm160, %v551
  %568 = vst.msk [vmem:[%s5 + $0x40] sm:$0xff] %vm160, %v552
  %569 = vst.msk [vmem:[%s5 + $0x48] sm:$0xff] %vm160, %v553
  %570 = vst.msk [vmem:[%s5 + $0x50] sm:$0xff] %vm160, %v554
  %571 = vst.msk [vmem:[%s5 + $0x58] sm:$0xff] %vm160, %v555
  %572 = vst.msk [vmem:[%s5 + $0x60] sm:$0xff] %vm160, %v556
  %573 = vst.msk [vmem:[%s5 + $0x68] sm:$0xff] %vm160, %v557
  %574 = vst.msk [vmem:[%s5 + $0x70] sm:$0xff] %vm160, %v558
  %575 = vst.msk [vmem:[%s5 + $0x78] sm:$0xff] %vm160, %v559
  // Predicated region
  $region22: #{_lambda_.70} parent=0 // pred_check
    _
  $region23: #{_lambda_.70} parent=0 // pred_check_branch
    %577 = sbr.rel (0) target = $region25
  $region24: #{_lambda_.70} parent=0 // pred_region
    _
  $region25: #{_lambda_.70} parent=0 // pred_fallthru
    _
  // Predicated region
  $region26: #{_lambda_.70} parent=0 // pred_check
    _
  $region27: #{_lambda_.70} parent=0 // pred_check_branch
    %579 = sbr.rel (0) target = $region29
  $region28: #{_lambda_.70} parent=0 // pred_region
    _
  $region29: #{_lambda_.70} parent=0 // pred_fallthru
    _

// kernel: _lambda_.92
$region0: #{_lambda_.92}
  #allocation0 [shape = 'u32[]', space=smem, size = 0x4, offset = 0x4, fixed_abs, tag = 'smem constant byte address 0x4 - core index']
  #allocation1 [shape = 'u32[72,128]{1,0:T(1,128)}', space=vmem, size = 0x9000, scoped, tag = 'internal scratch']
  %s0 = inlined_call_operand.vmem [shape: f32[16,32], index: 0, kind: input, shape index: {}]
  %s1 = inlined_call_operand.vmem [shape: f32[32,32], index: 1, kind: input, shape index: {}]
  %s2 = inlined_call_operand.vmem [shape: f32[1,32], index: 2, kind: input, shape index: {}]
  %s3 = inlined_call_operand.vmem [shape: f32[16,32], index: 3, kind: input, shape index: {}]
  %s4 = inlined_call_operand.vmem [shape: f32[16,32], index: 4, kind: output, shape index: {}]
  %s5 = sld [smem:[#allocation0]]
  $region26: #{_lambda_.92} parent=0
    _
  %s7 = ssub.s32 1, %s5
  %s8 = scalar_select 0, %s7, %s5
  // Predicated region
  $region2: #{_lambda_.92} parent=0 // pred_check
    _
  $region3: #{_lambda_.92} parent=0 // pred_check_branch
    %10 = sbr.rel (0) target = $region5
  $region4: #{_lambda_.92} parent=0 // pred_region
    _
  $region5: #{_lambda_.92} parent=0 // pred_fallthru
    _
  // Predicated region
  $region6: #{_lambda_.92} parent=0 // pred_check
    _
  $region7: #{_lambda_.92} parent=0 // pred_check_branch
    %12 = sbr.rel (0) target = $region9
  $region8: #{_lambda_.92} parent=0 // pred_region
    _
  $region9: #{_lambda_.92} parent=0 // pred_fallthru
    _
  // Predicated region
  $region10: #{_lambda_.92} parent=0 // pred_check
    _
  $region11: #{_lambda_.92} parent=0 // pred_check_branch
    %14 = sbr.rel (0) target = $region13
  $region12: #{_lambda_.92} parent=0 // pred_region
    _
  $region13: #{_lambda_.92} parent=0 // pred_fallthru
    _
  // Predicated region
  $region14: #{_lambda_.92} parent=0 // pred_check
    _
  $region15: #{_lambda_.92} parent=0 // pred_check_branch
    %16 = sbr.rel (0) target = $region17
  $region16: #{_lambda_.92} parent=0 // pred_region
    _
  $region17: #{_lambda_.92} parent=0 // pred_fallthru
    _
  %v17 = vld [vmem:[%s0] sm:$0xff]
  %v18 = vld [vmem:[%s0 + $0x8] sm:$0xff]
  %v19 = vld [vmem:[%s1] sm:$0xff]
  %v20 = vld [vmem:[%s1 + $0x8] sm:$0xff]
  %v21 = vld [vmem:[%s1 + $0x10] sm:$0xff]
  %v22 = vld [vmem:[%s1 + $0x18] sm:$0xff]
  %v23 = vld [vmem:[%s2] sm:$0x1]
  %v25 = vperm.slane %v23, 0
  %vm27 = vcmask 261120
  %v29 = vsel %vm27, %v17, 0
  %v32 = vsel %vm27, %v18, 0
  %34 = vmatpush.msra.mxu0 0.0
  %35 = vmatpush.msra.mxu0 0.0
  %36 = vmatpush.msra.mxu0 0.0
  %37 = vmatpush.msra.mxu0 0.0
  %38 = vmatpush.msra.mxu0 0.0
  %39 = vmatpush.msra.mxu0 0.0
  %40 = vmatpush.msra.mxu0 0.0
  %41 = vmatpush.msra.mxu0 0.0
  %42 = vmatpush.msra.mxu0 0.0
  %43 = vmatpush.msra.mxu0 0.0
  %44 = vmatpush.msra.mxu0 0.0
  %45 = vmatpush.msra.mxu0 0.0
  %46 = vmatpush.msra.mxu0 %v22
  %47 = vmatpush.msra.mxu0 %v21
  %48 = vmatpush.msra.mxu0 %v20
  %49 = vmatpush.msra.mxu0 %v19
  %50 = vmatmul.f32.gmra.mxu0 %v29
  %v51 = vpop.f32.mrf.mxu0
  %v52 = vadd.f32 %v25, %v51
  %53 = vmatmul.f32.gmra.mxu0 %v32
  %v54 = vpop.f32.mrf.mxu0
  %v55 = vadd.f32 %v25, %v54
  %56 = vdwg.mxu0
  %v57 = vmax.f32 %v52, 0.0
  %v58 = vmax.f32 %v55, 0.0
  %v59 = vld [vmem:[%s3] sm:$0xff]
  %v60 = vld [vmem:[%s3 + $0x8] sm:$0xff]
  %v61 = vadd.f32 %v57, %v59
  %v62 = vadd.f32 %v58, %v60
  %63 = vst.msk [vmem:[%s4] sm:$0xff] %vm27, %v61
  %64 = vst.msk [vmem:[%s4 + $0x8] sm:$0xff] %vm27, %v62
  // Predicated region
  $region18: #{_lambda_.92} parent=0 // pred_check
    _
  $region19: #{_lambda_.92} parent=0 // pred_check_branch
    %66 = sbr.rel (0) target = $region21
  $region20: #{_lambda_.92} parent=0 // pred_region
    _
  $region21: #{_lambda_.92} parent=0 // pred_fallthru
    _
  // Predicated region
  $region22: #{_lambda_.92} parent=0 // pred_check
    _
  $region23: #{_lambda_.92} parent=0 // pred_check_branch
    %68 = sbr.rel (0) target = $region25
  $region24: #{_lambda_.92} parent=0 // pred_region
    _
  $region25: #{_lambda_.92} parent=0 // pred_fallthru
    _

// kernel: _lambda_.93
$region0: #{_lambda_.93}
  #allocation0 [shape = 'u32[]', space=smem, size = 0x4, offset = 0x4, fixed_abs, tag = 'smem constant byte address 0x4 - core index']
  #allocation1 [shape = 'u32[72,128]{1,0:T(1,128)}', space=vmem, size = 0x9000, scoped, tag = 'internal scratch']
  %s0 = inlined_call_operand.vmem [shape: f32[16,32], index: 0, kind: input, shape index: {}]
  %s1 = inlined_call_operand.vmem [shape: f32[32,2], index: 1, kind: input, shape index: {}]
  %s2 = inlined_call_operand.vmem [shape: f32[1,2], index: 2, kind: input, shape index: {}]
  %s3 = inlined_call_operand.vmem [shape: f32[16,2], index: 3, kind: output, shape index: {}]
  %s4 = sld [smem:[#allocation0]]
  $region22: #{_lambda_.93} parent=0
    _
  %s6 = ssub.s32 1, %s4
  %s7 = scalar_select 0, %s6, %s4
  // Predicated region
  $region2: #{_lambda_.93} parent=0 // pred_check
    _
  $region3: #{_lambda_.93} parent=0 // pred_check_branch
    %9 = sbr.rel (0) target = $region5
  $region4: #{_lambda_.93} parent=0 // pred_region
    _
  $region5: #{_lambda_.93} parent=0 // pred_fallthru
    _
  // Predicated region
  $region6: #{_lambda_.93} parent=0 // pred_check
    _
  $region7: #{_lambda_.93} parent=0 // pred_check_branch
    %11 = sbr.rel (0) target = $region9
  $region8: #{_lambda_.93} parent=0 // pred_region
    _
  $region9: #{_lambda_.93} parent=0 // pred_fallthru
    _
  // Predicated region
  $region10: #{_lambda_.93} parent=0 // pred_check
    _
  $region11: #{_lambda_.93} parent=0 // pred_check_branch
    %13 = sbr.rel (0) target = $region13
  $region12: #{_lambda_.93} parent=0 // pred_region
    _
  $region13: #{_lambda_.93} parent=0 // pred_fallthru
    _
  %v14 = vld [vmem:[%s0] sm:$0xff]
  %v15 = vld [vmem:[%s0 + $0x8] sm:$0xff]
  %v16 = vld [vmem:[%s1] sm:$0xff]
  %v17 = vld [vmem:[%s1 + $0x8] sm:$0xff]
  %v18 = vld [vmem:[%s1 + $0x10] sm:$0xff]
  %v19 = vld [vmem:[%s1 + $0x18] sm:$0xff]
  %v20 = vld [vmem:[%s2] sm:$0x1]
  %v22 = vperm.slane %v20, 0
  %vm24 = vcmask 261120
  %v26 = vsel %vm24, %v14, 0
  %v29 = vsel %vm24, %v15, 0
  %31 = vmatpush.msra.mxu0 0.0
  %32 = vmatpush.msra.mxu0 0.0
  %33 = vmatpush.msra.mxu0 0.0
  %34 = vmatpush.msra.mxu0 0.0
  %35 = vmatpush.msra.mxu0 0.0
  %36 = vmatpush.msra.mxu0 0.0
  %37 = vmatpush.msra.mxu0 0.0
  %38 = vmatpush.msra.mxu0 0.0
  %39 = vmatpush.msra.mxu0 0.0
  %40 = vmatpush.msra.mxu0 0.0
  %41 = vmatpush.msra.mxu0 0.0
  %42 = vmatpush.msra.mxu0 0.0
  %43 = vmatpush.msra.mxu0 %v19
  %44 = vmatpush.msra.mxu0 %v18
  %45 = vmatpush.msra.mxu0 %v17
  %46 = vmatpush.msra.mxu0 %v16
  %47 = vmatmul.f32.gmra.mxu0 %v26
  %v48 = vpop.f32.mrf.mxu0
  %v49 = vadd.f32 %v22, %v48
  %50 = vmatmul.f32.gmra.mxu0 %v29
  %v51 = vpop.f32.mrf.mxu0
  %v52 = vadd.f32 %v22, %v51
  %53 = vdwg.mxu0
  %vm54 = vcmask 15360
  %55 = vst.msk [vmem:[%s3] sm:$0xff] %vm54, %v49
  %56 = vst.msk [vmem:[%s3 + $0x8] sm:$0xff] %vm54, %v52
  // Predicated region
  $region14: #{_lambda_.93} parent=0 // pred_check
    _
  $region15: #{_lambda_.93} parent=0 // pred_check_branch
    %58 = sbr.rel (0) target = $region17
  $region16: #{_lambda_.93} parent=0 // pred_region
    _
  $region17: #{_lambda_.93} parent=0 // pred_fallthru
    _
  // Predicated region
  $region18: #{_lambda_.93} parent=0 // pred_check
    _
  $region19: #{_lambda_.93} parent=0 // pred_check_branch
    %60 = sbr.rel (0) target = $region21
  $region20: #{_lambda_.93} parent=0 // pred_region
    _
  $region21: #{_lambda_.93} parent=0 // pred_fallthru
    _

</llo_original>
